<compile_context>
chip_gen: v7x
topology: tpu7x:2x2x1
jax: 0.10.0
libtpu: 0.0.40
codegen_flags: <defaults>
</compile_context>

<pallas_src>
import jax
import jax.numpy as jnp
from jax import lax
from jax.experimental import pallas as pl
from jax.experimental.pallas import tpu as pltpu

HIGHEST = jax.lax.Precision.HIGHEST
_VMEM_SPEC = pl.BlockSpec(memory_space=pltpu.MemorySpace.VMEM)


# ------------------------------ Pallas kernel ---------------------------------

def _encoder_fused_kernel(gi_ref, mask_ref, whh_ref, bhh_ref,
                          whf_ref, whb_ref, wz_ref, b_ref, eps_ref,
                          ml_ref, z_ref,
                          hf_ref, hb_ref, base_ref):
    """Fused bidirectional GRU + autoregressive posterior head.

    Inputs (all VMEM, whole arrays):
      gi_ref   : (T, B, 6H) precomputed x @ W_ih + b_ih, gate-interleaved as
                 [r_f|r_b|z_f|z_b|n_f|n_b]; fwd gates in forward time order,
                 bwd gates in reversed time order.
      mask_ref : (T, B, 2H) validity mask, fwd mask on lanes [:H], reversed
                 bwd mask on lanes [H:].
      whh_ref  : (2H, 6H) block-structured recurrent weight for both dirs.
      bhh_ref  : (B, 6H)  recurrent bias (gate-interleaved, broadcast rows).
      whf_ref  : (H, 2E)  posterior linear rows for h_fwd.
      whb_ref  : (H, 2E)  posterior linear rows for h_bwd.
      wz_ref   : (E, 2E)  posterior linear rows for z_{t-1} (serial part).
      b_ref    : (B, 2E)  posterior linear bias (broadcast rows).
      eps_ref  : (T, B, E) standard-normal noise.
    Outputs:
      ml_ref   : (T, B, 2E) raw posterior output (mean ‖ log), split in glue.
      z_ref    : (T, B, E)  reparameterized samples.
    Scratch:
      hf_ref   : (T, B, H) masked forward hidden states (forward time order).
      hb_ref   : (T, B, H) masked backward hidden states (forward time order).
      base_ref : (T, B, 2E) hoisted non-recurrent part of the posterior linear.
    """
    T, B, H = hf_ref.shape
    E = z_ref.shape[-1]
    H2 = 2 * H

    whh = whh_ref[...]
    bhh = bhh_ref[...]

    # ---- phase 1: bidirectional GRU recurrence (one MXU push per step) ------
    def gru_step(t, h):
        # h: (B, 2H) lane-stacked [h_fwd | h_bwd]; block-structured whh keeps
        # the two directions independent.
        gh = jnp.dot(h, whh, preferred_element_type=jnp.float32) + bhh
        gi = gi_ref[t]                                           # (B, 6H)
        r = jax.nn.sigmoid(gi[:, 0 * H2:1 * H2] + gh[:, 0 * H2:1 * H2])
        zg = jax.nn.sigmoid(gi[:, 1 * H2:2 * H2] + gh[:, 1 * H2:2 * H2])
        # PyTorch GRU: b_hh_n stays inside r * (h @ W_hn + b_hn); gh carries it.
        n = jnp.tanh(gi[:, 2 * H2:3 * H2] + r * gh[:, 2 * H2:3 * H2])
        h_new = (1.0 - zg) * n + zg * h
        m = mask_ref[t]                                          # (B, 2H)
        h_masked = m * h_new                      # padded steps emit zeros
        hf_ref[t] = h_masked[:, :H]               # fwd dir: forward order
        hb_ref[T - 1 - t] = h_masked[:, H:]       # bwd dir: un-reverse on store
        return h_masked + (1.0 - m) * h           # padded steps keep the state

    h0 = jnp.zeros((B, H2), jnp.float32)
    lax.fori_loop(0, T, gru_step, h0, unroll=True)

    # ---- phase 2: hoisted non-recurrent part of the posterior linear --------
    whf = whf_ref[...]
    whb = whb_ref[...]
    b = b_ref[...]

    def base_step(t, carry):
        base_ref[t] = (
            jnp.dot(hf_ref[t], whf, preferred_element_type=jnp.float32)
            + jnp.dot(hb_ref[t], whb, preferred_element_type=jnp.float32)
            + b)
        return carry

    lax.fori_loop(0, T, base_step, 0, unroll=True)

    # ---- phase 3: autoregressive reparameterized posterior ------------------
    wz = wz_ref[...]

    def post_step(t, z_prev):
        out = base_ref[t] + jnp.dot(z_prev, wz,
                                    preferred_element_type=jnp.float32)
        mean = out[:, :E]
        logv = out[:, E:]
        z_t = eps_ref[t] * jnp.exp(0.5 * logv) + mean
        ml_ref[t] = out                     # single lane-dense store per step
        z_ref[t] = z_t
        return z_t

    z0 = jnp.zeros((B, E), jnp.float32)
    lax.fori_loop(0, T, post_step, z0, unroll=True)


# -------------------------------- wrappers -------------------------------------

def _interleave_gates(a, b, H):
    """[r|z|n] x 2 -> [r_a|r_b|z_a|z_b|n_a|n_b] along the last axis."""
    return jnp.concatenate(
        [a[..., 0 * H:1 * H], b[..., 0 * H:1 * H],
         a[..., 1 * H:2 * H], b[..., 1 * H:2 * H],
         a[..., 2 * H:3 * H], b[..., 2 * H:3 * H]], axis=-1)


def posterior_rnn_forward(tokens, lengths, params, eps_key):
    """Returns {'q_means','q_logs','q_z'} of shape (B, L-1, embed_size).
    Assumes max(lengths) == L so the autoregressive loop covers all L-1
    positions (as in the reference when the longest sequence is full)."""
    B, L = tokens.shape
    T = L - 1
    H = params["whh_f"].shape[0]
    E = params["lin_b"].shape[-1] // 2
    lens = lengths - 1

    # embedding gather stays in JAX glue
    emb = params["embedding"][tokens[:, :-1]].astype(jnp.float32)   # (B, T, D)
    x_tm = jnp.transpose(emb, (1, 0, 2))                            # (T, B, D)
    mask_tm = (jnp.arange(T)[:, None] < lens[None, :]
               ).astype(jnp.float32)[:, :, None]                    # (T, B, 1)

    # hoisted input projections: one big matmul per direction for all timesteps
    gi_f = (jnp.einsum("tbd,dg->tbg", x_tm, params["wih_f"],
                       precision=HIGHEST) + params["bih_f"])
    gi_b = (jnp.einsum("tbd,dg->tbg", x_tm[::-1], params["wih_b"],
                       precision=HIGHEST) + params["bih_b"])
    gi_all = _interleave_gates(gi_f, gi_b, H)                       # (T, B, 6H)

    mask2h = jnp.concatenate(
        [jnp.broadcast_to(mask_tm, (T, B, H)),
         jnp.broadcast_to(mask_tm[::-1], (T, B, H))], axis=-1)      # (T, B, 2H)

    # block-structured recurrent weight covering both directions (1 push/step)
    whh_big = jnp.concatenate(
        [_interleave_gates(params["whh_f"], jnp.zeros_like(params["whh_f"]), H),
         _interleave_gates(jnp.zeros_like(params["whh_b"]), params["whh_b"], H)],
        axis=0)                                                     # (2H, 6H)
    bhh_big = jnp.broadcast_to(
        _interleave_gates(params["bhh_f"], params["bhh_b"], H), (B, 6 * H))

    w = params["lin_w"]                    # (2H + E, 2E), rows [h_f | h_b | z]
    w_hf = w[:H]
    w_hb = w[H:2 * H]
    wz = w[2 * H:]
    lin_b = jnp.broadcast_to(params["lin_b"], (B, 2 * E))

    eps = jax.random.normal(eps_key, (T, B, E), dtype=jnp.float32)

    ml, z = pl.pallas_call(
        _encoder_fused_kernel,
        out_shape=(jax.ShapeDtypeStruct((T, B, 2 * E), jnp.float32),
                   jax.ShapeDtypeStruct((T, B, E), jnp.float32)),
        in_specs=[_VMEM_SPEC] * 9,
        out_specs=(_VMEM_SPEC, _VMEM_SPEC),
        scratch_shapes=[pltpu.VMEM((T, B, H), jnp.float32),
                        pltpu.VMEM((T, B, H), jnp.float32),
                        pltpu.VMEM((T, B, 2 * E), jnp.float32)],
    )(gi_all, mask2h, whh_big, bhh_big, w_hf, w_hb, wz, lin_b, eps)

    to_batch_first = lambda a: jnp.transpose(a, (1, 0, 2))
    return {"q_means": to_batch_first(ml[..., :E]),
            "q_logs": to_batch_first(ml[..., E:]),
            "q_z": to_batch_first(z)}


def init_params(key, vocab, word_dim, hidden, embed):
    ks = jax.random.split(key, 6)
    kH = 1.0 / float(hidden) ** 0.5
    xav = (6.0 / (2 * hidden + embed + 2 * embed)) ** 0.5

    def u(k, shape, bound):
        return jax.random.uniform(k, shape, jnp.float32, -bound, bound)

    return {
        "embedding": 0.1 * jax.random.normal(ks[0], (vocab, word_dim), jnp.float32),
        "wih_f": u(ks[1], (word_dim, 3 * hidden), kH),
        "whh_f": u(ks[2], (hidden, 3 * hidden), kH),
        "bih_f": jnp.zeros((1, 3 * hidden), jnp.float32),
        "bhh_f": jnp.zeros((1, 3 * hidden), jnp.float32),
        "wih_b": u(ks[3], (word_dim, 3 * hidden), kH),
        "whh_b": u(ks[4], (hidden, 3 * hidden), kH),
        "bih_b": jnp.zeros((1, 3 * hidden), jnp.float32),
        "bhh_b": jnp.zeros((1, 3 * hidden), jnp.float32),
        # nn.Linear(embed + 2*hidden, 2*embed): xavier_uniform weight, zero bias
        "lin_w": u(ks[5], (2 * hidden + embed, 2 * embed), xav),
        "lin_b": jnp.zeros((1, 2 * embed), jnp.float32),
    }


# --------------------------- pure-JAX reference --------------------------------

def posterior_rnn_reference(tokens, lengths, params, eps):
    B, L = tokens.shape
    H = params["whh_f"].shape[0]
    E = params["lin_b"].shape[-1] // 2
    T = L - 1
    lens = lengths - 1
    emb = params["embedding"][tokens[:, :-1]].astype(jnp.float32)
    x = jnp.transpose(emb, (1, 0, 2))                              # (T, B, D)
    mask = (jnp.arange(T)[:, None] < lens[None, :]
            ).astype(jnp.float32)[:, :, None]                      # (T, B, 1)

    def gru_cell(x_t, h, wih, whh, bih, bhh):
        gi = jnp.dot(x_t, wih, precision=HIGHEST) + bih
        gh = jnp.dot(h, whh, precision=HIGHEST) + bhh
        r = jax.nn.sigmoid(gi[:, :H] + gh[:, :H])
        z = jax.nn.sigmoid(gi[:, H:2 * H] + gh[:, H:2 * H])
        n = jnp.tanh(gi[:, 2 * H:] + r * gh[:, 2 * H:])
        return (1.0 - z) * n + z * h

    def make_step(wih, whh, bih, bhh):
        def step(h, inp):
            x_t, m_t = inp
            h_new = gru_cell(x_t, h, wih, whh, bih, bhh)
            h_keep = m_t * h_new + (1.0 - m_t) * h
            return h_keep, m_t * h_new
        return step

    h0 = jnp.zeros((B, H), jnp.float32)
    _, of = lax.scan(make_step(params["wih_f"], params["whh_f"],
                               params["bih_f"], params["bhh_f"]), h0, (x, mask))
    _, ob_rev = lax.scan(make_step(params["wih_b"], params["whh_b"],
                                   params["bih_b"], params["bhh_b"]),
                         h0, (x[::-1], mask[::-1]))
    ob = ob_rev[::-1]

    w, b = params["lin_w"], params["lin_b"]

    def post_step(z_prev, inp):
        hf_t, hb_t, eps_t = inp
        o = jnp.dot(jnp.concatenate([hf_t, hb_t, z_prev], axis=1), w,
                    precision=HIGHEST) + b
        mean, logv = o[:, :E], o[:, E:]
        z_t = eps_t * jnp.exp(0.5 * logv) + mean
        return z_t, (mean, logv, z_t)

    z0 = jnp.zeros((B, E), jnp.float32)
    _, (means, logs, zs) = lax.scan(post_step, z0, (of, ob, eps))
    tb = lambda a: jnp.transpose(a, (1, 0, 2))
    return {"q_means": tb(means), "q_logs": tb(logs), "q_z": tb(zs)}


if __name__ == "__main__":
    key = jax.random.PRNGKey(0)
    k_par, k_tok, k_eps = jax.random.split(key, 3)

    B, L, V = 2, 9, 50          # batch, token sequence length, vocab
    D, H, E = 32, 32, 32        # word_dim, hidden_size, embed_size
    T = L - 1

    params = init_params(k_par, V, D, H, E)
    tokens = jax.random.randint(k_tok, (B, L), 0, V, dtype=jnp.int32)
    lengths = jnp.array([L, L - 2], dtype=jnp.int32)   # max length == L

    out = posterior_rnn_forward(tokens, lengths, params, k_eps)
    out = jax.block_until_ready(out)

    assert out["q_means"].shape == (B, T, E)
    assert out["q_logs"].shape == (B, T, E)
    assert out["q_z"].shape == (B, T, E)

    # numerical check against a pure-JAX lax.scan reference of the same module
    eps = jax.random.normal(k_eps, (T, B, E), dtype=jnp.float32)
    ref = posterior_rnn_reference(tokens, lengths, params, eps)
    for name in ("q_means", "q_logs", "q_z"):
        err = float(jnp.max(jnp.abs(out[name] - ref[name])))
        assert err < 5e-3, (name, err)

    print("KERNEL_OK")
</pallas_src>

<mosaic_0001>
module attributes {stable_mosaic.version = 11 : i64} {
  func.func @_encoder_fused_kernel(%arg0: memref<8x2x192xf32, #tpu.memory_space<vmem>>, %arg1: memref<8x2x64xf32, #tpu.memory_space<vmem>>, %arg2: memref<64x192xf32, #tpu.memory_space<vmem>>, %arg3: memref<2x192xf32, #tpu.memory_space<vmem>>, %arg4: memref<32x64xf32, #tpu.memory_space<vmem>>, %arg5: memref<32x64xf32, #tpu.memory_space<vmem>>, %arg6: memref<32x64xf32, #tpu.memory_space<vmem>>, %arg7: memref<2x64xf32, #tpu.memory_space<vmem>>, %arg8: memref<8x2x32xf32, #tpu.memory_space<vmem>>, %arg9: memref<8x2x64xf32, #tpu.memory_space<vmem>>, %arg10: memref<8x2x32xf32, #tpu.memory_space<vmem>>, %arg11: memref<8x2x32xf32, #tpu.memory_space<vmem>>, %arg12: memref<8x2x32xf32, #tpu.memory_space<vmem>>, %arg13: memref<8x2x64xf32, #tpu.memory_space<vmem>>) attributes {dimension_semantics = [], scalar_prefetch = 0 : i64, scratch_operands = 3 : i64, tpu.core_type = #tpu.core_type<tc>} {
    %c0 = arith.constant 0 : index
    %c0_0 = arith.constant 0 : index
    %0 = vector.load %arg2[%c0, %c0_0] : memref<64x192xf32, #tpu.memory_space<vmem>>, vector<64x192xf32>
    %c0_1 = arith.constant 0 : index
    %c0_2 = arith.constant 0 : index
    %1 = vector.load %arg3[%c0_1, %c0_2] : memref<2x192xf32, #tpu.memory_space<vmem>>, vector<2x192xf32>
    %cst = arith.constant 0.000000e+00 : f32
    %2 = vector.broadcast %cst : f32 to vector<2x64xf32>
    %c0_i32 = arith.constant 0 : i32
    %cst_3 = arith.constant dense<0.000000e+00> : vector<2x192xf32>
    %3 = tpu.matmul %2, %0, %cst_3 {dimension_numbers = #tpu.dot_dimension_numbers<[1], [0], [0], [1], [0, 0, 1, 1], [], []>} : vector<2x64xf32>, vector<64x192xf32>, vector<2x192xf32> -> vector<2x192xf32>
    %4 = arith.addf %3, %1 : vector<2x192xf32>
    %5 = arith.index_cast %c0_i32 : i32 to index
    %c0_4 = arith.constant 0 : index
    %c0_5 = arith.constant 0 : index
    %6 = vector.load %arg0[%5, %c0_4, %c0_5] : memref<8x2x192xf32, #tpu.memory_space<vmem>>, vector<1x2x192xf32>
    %7 = vector.shape_cast %6 : vector<1x2x192xf32> to vector<2x192xf32>
    %8 = vector.extract_strided_slice %7 {offsets = [0, 0], sizes = [2, 64], strides = [1, 1]} : vector<2x192xf32> to vector<2x64xf32>
    %9 = vector.extract_strided_slice %4 {offsets = [0, 0], sizes = [2, 64], strides = [1, 1]} : vector<2x192xf32> to vector<2x64xf32>
    %10 = arith.addf %8, %9 : vector<2x64xf32>
    %11 = arith.negf %10 : vector<2x64xf32>
    %12 = math.exp %11 : vector<2x64xf32>
    %cst_6 = arith.constant 1.000000e+00 : f32
    %13 = vector.broadcast %cst_6 : f32 to vector<2x64xf32>
    %14 = arith.addf %13, %12 : vector<2x64xf32>
    %15 = arith.divf %13, %14 : vector<2x64xf32>
    %16 = vector.extract_strided_slice %7 {offsets = [0, 64], sizes = [2, 64], strides = [1, 1]} : vector<2x192xf32> to vector<2x64xf32>
    %17 = vector.extract_strided_slice %4 {offsets = [0, 64], sizes = [2, 64], strides = [1, 1]} : vector<2x192xf32> to vector<2x64xf32>
    %18 = arith.addf %16, %17 : vector<2x64xf32>
    %19 = arith.negf %18 : vector<2x64xf32>
    %20 = math.exp %19 : vector<2x64xf32>
    %cst_7 = arith.constant 1.000000e+00 : f32
    %21 = vector.broadcast %cst_7 : f32 to vector<2x64xf32>
    %22 = arith.addf %21, %20 : vector<2x64xf32>
    %23 = arith.divf %21, %22 : vector<2x64xf32>
    %24 = vector.extract_strided_slice %7 {offsets = [0, 128], sizes = [2, 64], strides = [1, 1]} : vector<2x192xf32> to vector<2x64xf32>
    %25 = vector.extract_strided_slice %4 {offsets = [0, 128], sizes = [2, 64], strides = [1, 1]} : vector<2x192xf32> to vector<2x64xf32>
    %26 = arith.mulf %15, %25 : vector<2x64xf32>
    %27 = arith.addf %24, %26 : vector<2x64xf32>
    %28 = math.tanh %27 : vector<2x64xf32>
    %cst_8 = arith.constant 1.000000e+00 : f32
    %29 = vector.broadcast %cst_8 : f32 to vector<2x64xf32>
    %30 = arith.subf %29, %23 : vector<2x64xf32>
    %31 = arith.mulf %30, %28 : vector<2x64xf32>
    %32 = arith.mulf %23, %2 : vector<2x64xf32>
    %33 = arith.addf %31, %32 : vector<2x64xf32>
    %34 = arith.index_cast %c0_i32 : i32 to index
    %c0_9 = arith.constant 0 : index
    %c0_10 = arith.constant 0 : index
    %35 = vector.load %arg1[%34, %c0_9, %c0_10] : memref<8x2x64xf32, #tpu.memory_space<vmem>>, vector<1x2x64xf32>
    %36 = vector.shape_cast %35 : vector<1x2x64xf32> to vector<2x64xf32>
    %37 = arith.mulf %36, %33 : vector<2x64xf32>
    %38 = vector.extract_strided_slice %37 {offsets = [0, 0], sizes = [2, 32], strides = [1, 1]} : vector<2x64xf32> to vector<2x32xf32>
    %39 = arith.index_cast %c0_i32 : i32 to index
    %c0_11 = arith.constant 0 : index
    %c0_12 = arith.constant 0 : index
    %40 = vector.load %arg11[%39, %c0_11, %c0_12] : memref<8x2x32xf32, #tpu.memory_space<vmem>>, vector<1x2x32xf32>
    %41 = vector.shape_cast %40 : vector<1x2x32xf32> to vector<2x32xf32>
    %42 = vector.shape_cast %38 : vector<2x32xf32> to vector<1x2x32xf32>
    tpu.vector_store %arg11[%39, %c0_11, %c0_12], %42 {strides = array<i32>} : memref<8x2x32xf32, #tpu.memory_space<vmem>>, vector<1x2x32xf32>,
    %43 = vector.extract_strided_slice %37 {offsets = [0, 32], sizes = [2, 32], strides = [1, 1]} : vector<2x64xf32> to vector<2x32xf32>
    %c7_i32 = arith.constant 7 : i32
    %44 = arith.subi %c7_i32, %c0_i32 : i32
    %45 = arith.index_cast %44 : i32 to index
    %c0_13 = arith.constant 0 : index
    %c0_14 = arith.constant 0 : index
    %46 = vector.load %arg12[%45, %c0_13, %c0_14] : memref<8x2x32xf32, #tpu.memory_space<vmem>>, vector<1x2x32xf32>
    %47 = vector.shape_cast %46 : vector<1x2x32xf32> to vector<2x32xf32>
    %48 = vector.shape_cast %43 : vector<2x32xf32> to vector<1x2x32xf32>
    tpu.vector_store %arg12[%45, %c0_13, %c0_14], %48 {strides = array<i32>} : memref<8x2x32xf32, #tpu.memory_space<vmem>>, vector<1x2x32xf32>,
    %cst_15 = arith.constant 1.000000e+00 : f32
    %49 = vector.broadcast %cst_15 : f32 to vector<2x64xf32>
    %50 = arith.subf %49, %36 : vector<2x64xf32>
    %51 = arith.mulf %50, %2 : vector<2x64xf32>
    %52 = arith.addf %37, %51 : vector<2x64xf32>
    %c1_i32 = arith.constant 1 : i32
    %cst_16 = arith.constant dense<0.000000e+00> : vector<2x192xf32>
    %53 = tpu.matmul %52, %0, %cst_16 {dimension_numbers = #tpu.dot_dimension_numbers<[1], [0], [0], [1], [0, 0, 1, 1], [], []>} : vector<2x64xf32>, vector<64x192xf32>, vector<2x192xf32> -> vector<2x192xf32>
    %54 = arith.addf %53, %1 : vector<2x192xf32>
    %55 = arith.index_cast %c1_i32 : i32 to index
    %c0_17 = arith.constant 0 : index
    %c0_18 = arith.constant 0 : index
    %56 = vector.load %arg0[%55, %c0_17, %c0_18] : memref<8x2x192xf32, #tpu.memory_space<vmem>>, vector<1x2x192xf32>
    %57 = vector.shape_cast %56 : vector<1x2x192xf32> to vector<2x192xf32>
    %58 = vector.extract_strided_slice %57 {offsets = [0, 0], sizes = [2, 64], strides = [1, 1]} : vector<2x192xf32> to vector<2x64xf32>
    %59 = vector.extract_strided_slice %54 {offsets = [0, 0], sizes = [2, 64], strides = [1, 1]} : vector<2x192xf32> to vector<2x64xf32>
    %60 = arith.addf %58, %59 : vector<2x64xf32>
    %61 = arith.negf %60 : vector<2x64xf32>
    %62 = math.exp %61 : vector<2x64xf32>
    %cst_19 = arith.constant 1.000000e+00 : f32
    %63 = vector.broadcast %cst_19 : f32 to vector<2x64xf32>
    %64 = arith.addf %63, %62 : vector<2x64xf32>
    %65 = arith.divf %63, %64 : vector<2x64xf32>
    %66 = vector.extract_strided_slice %57 {offsets = [0, 64], sizes = [2, 64], strides = [1, 1]} : vector<2x192xf32> to vector<2x64xf32>
    %67 = vector.extract_strided_slice %54 {offsets = [0, 64], sizes = [2, 64], strides = [1, 1]} : vector<2x192xf32> to vector<2x64xf32>
    %68 = arith.addf %66, %67 : vector<2x64xf32>
    %69 = arith.negf %68 : vector<2x64xf32>
    %70 = math.exp %69 : vector<2x64xf32>
    %cst_20 = arith.constant 1.000000e+00 : f32
    %71 = vector.broadcast %cst_20 : f32 to vector<2x64xf32>
    %72 = arith.addf %71, %70 : vector<2x64xf32>
    %73 = arith.divf %71, %72 : vector<2x64xf32>
    %74 = vector.extract_strided_slice %57 {offsets = [0, 128], sizes = [2, 64], strides = [1, 1]} : vector<2x192xf32> to vector<2x64xf32>
    %75 = vector.extract_strided_slice %54 {offsets = [0, 128], sizes = [2, 64], strides = [1, 1]} : vector<2x192xf32> to vector<2x64xf32>
    %76 = arith.mulf %65, %75 : vector<2x64xf32>
    %77 = arith.addf %74, %76 : vector<2x64xf32>
    %78 = math.tanh %77 : vector<2x64xf32>
    %cst_21 = arith.constant 1.000000e+00 : f32
    %79 = vector.broadcast %cst_21 : f32 to vector<2x64xf32>
    %80 = arith.subf %79, %73 : vector<2x64xf32>
    %81 = arith.mulf %80, %78 : vector<2x64xf32>
    %82 = arith.mulf %73, %52 : vector<2x64xf32>
    %83 = arith.addf %81, %82 : vector<2x64xf32>
    %84 = arith.index_cast %c1_i32 : i32 to index
    %c0_22 = arith.constant 0 : index
    %c0_23 = arith.constant 0 : index
    %85 = vector.load %arg1[%84, %c0_22, %c0_23] : memref<8x2x64xf32, #tpu.memory_space<vmem>>, vector<1x2x64xf32>
    %86 = vector.shape_cast %85 : vector<1x2x64xf32> to vector<2x64xf32>
    %87 = arith.mulf %86, %83 : vector<2x64xf32>
    %88 = vector.extract_strided_slice %87 {offsets = [0, 0], sizes = [2, 32], strides = [1, 1]} : vector<2x64xf32> to vector<2x32xf32>
    %89 = arith.index_cast %c1_i32 : i32 to index
    %c0_24 = arith.constant 0 : index
    %c0_25 = arith.constant 0 : index
    %90 = vector.load %arg11[%89, %c0_24, %c0_25] : memref<8x2x32xf32, #tpu.memory_space<vmem>>, vector<1x2x32xf32>
    %91 = vector.shape_cast %90 : vector<1x2x32xf32> to vector<2x32xf32>
    %92 = vector.shape_cast %88 : vector<2x32xf32> to vector<1x2x32xf32>
    tpu.vector_store %arg11[%89, %c0_24, %c0_25], %92 {strides = array<i32>} : memref<8x2x32xf32, #tpu.memory_space<vmem>>, vector<1x2x32xf32>,
    %93 = vector.extract_strided_slice %87 {offsets = [0, 32], sizes = [2, 32], strides = [1, 1]} : vector<2x64xf32> to vector<2x32xf32>
    %c7_i32_26 = arith.constant 7 : i32
    %94 = arith.subi %c7_i32_26, %c1_i32 : i32
    %95 = arith.index_cast %94 : i32 to index
    %c0_27 = arith.constant 0 : index
    %c0_28 = arith.constant 0 : index
    %96 = vector.load %arg12[%95, %c0_27, %c0_28] : memref<8x2x32xf32, #tpu.memory_space<vmem>>, vector<1x2x32xf32>
    %97 = vector.shape_cast %96 : vector<1x2x32xf32> to vector<2x32xf32>
    %98 = vector.shape_cast %93 : vector<2x32xf32> to vector<1x2x32xf32>
    tpu.vector_store %arg12[%95, %c0_27, %c0_28], %98 {strides = array<i32>} : memref<8x2x32xf32, #tpu.memory_space<vmem>>, vector<1x2x32xf32>,
    %cst_29 = arith.constant 1.000000e+00 : f32
    %99 = vector.broadcast %cst_29 : f32 to vector<2x64xf32>
    %100 = arith.subf %99, %86 : vector<2x64xf32>
    %101 = arith.mulf %100, %52 : vector<2x64xf32>
    %102 = arith.addf %87, %101 : vector<2x64xf32>
    %c2_i32 = arith.constant 2 : i32
    %cst_30 = arith.constant dense<0.000000e+00> : vector<2x192xf32>
    %103 = tpu.matmul %102, %0, %cst_30 {dimension_numbers = #tpu.dot_dimension_numbers<[1], [0], [0], [1], [0, 0, 1, 1], [], []>} : vector<2x64xf32>, vector<64x192xf32>, vector<2x192xf32> -> vector<2x192xf32>
    %104 = arith.addf %103, %1 : vector<2x192xf32>
    %105 = arith.index_cast %c2_i32 : i32 to index
    %c0_31 = arith.constant 0 : index
    %c0_32 = arith.constant 0 : index
    %106 = vector.load %arg0[%105, %c0_31, %c0_32] : memref<8x2x192xf32, #tpu.memory_space<vmem>>, vector<1x2x192xf32>
    %107 = vector.shape_cast %106 : vector<1x2x192xf32> to vector<2x192xf32>
    %108 = vector.extract_strided_slice %107 {offsets = [0, 0], sizes = [2, 64], strides = [1, 1]} : vector<2x192xf32> to vector<2x64xf32>
    %109 = vector.extract_strided_slice %104 {offsets = [0, 0], sizes = [2, 64], strides = [1, 1]} : vector<2x192xf32> to vector<2x64xf32>
    %110 = arith.addf %108, %109 : vector<2x64xf32>
    %111 = arith.negf %110 : vector<2x64xf32>
    %112 = math.exp %111 : vector<2x64xf32>
    %cst_33 = arith.constant 1.000000e+00 : f32
    %113 = vector.broadcast %cst_33 : f32 to vector<2x64xf32>
    %114 = arith.addf %113, %112 : vector<2x64xf32>
    %115 = arith.divf %113, %114 : vector<2x64xf32>
    %116 = vector.extract_strided_slice %107 {offsets = [0, 64], sizes = [2, 64], strides = [1, 1]} : vector<2x192xf32> to vector<2x64xf32>
    %117 = vector.extract_strided_slice %104 {offsets = [0, 64], sizes = [2, 64], strides = [1, 1]} : vector<2x192xf32> to vector<2x64xf32>
    %118 = arith.addf %116, %117 : vector<2x64xf32>
    %119 = arith.negf %118 : vector<2x64xf32>
    %120 = math.exp %119 : vector<2x64xf32>
    %cst_34 = arith.constant 1.000000e+00 : f32
    %121 = vector.broadcast %cst_34 : f32 to vector<2x64xf32>
    %122 = arith.addf %121, %120 : vector<2x64xf32>
    %123 = arith.divf %121, %122 : vector<2x64xf32>
    %124 = vector.extract_strided_slice %107 {offsets = [0, 128], sizes = [2, 64], strides = [1, 1]} : vector<2x192xf32> to vector<2x64xf32>
    %125 = vector.extract_strided_slice %104 {offsets = [0, 128], sizes = [2, 64], strides = [1, 1]} : vector<2x192xf32> to vector<2x64xf32>
    %126 = arith.mulf %115, %125 : vector<2x64xf32>
    %127 = arith.addf %124, %126 : vector<2x64xf32>
    %128 = math.tanh %127 : vector<2x64xf32>
    %cst_35 = arith.constant 1.000000e+00 : f32
    %129 = vector.broadcast %cst_35 : f32 to vector<2x64xf32>
    %130 = arith.subf %129, %123 : vector<2x64xf32>
    %131 = arith.mulf %130, %128 : vector<2x64xf32>
    %132 = arith.mulf %123, %102 : vector<2x64xf32>
    %133 = arith.addf %131, %132 : vector<2x64xf32>
    %134 = arith.index_cast %c2_i32 : i32 to index
    %c0_36 = arith.constant 0 : index
    %c0_37 = arith.constant 0 : index
    %135 = vector.load %arg1[%134, %c0_36, %c0_37] : memref<8x2x64xf32, #tpu.memory_space<vmem>>, vector<1x2x64xf32>
    %136 = vector.shape_cast %135 : vector<1x2x64xf32> to vector<2x64xf32>
    %137 = arith.mulf %136, %133 : vector<2x64xf32>
    %138 = vector.extract_strided_slice %137 {offsets = [0, 0], sizes = [2, 32], strides = [1, 1]} : vector<2x64xf32> to vector<2x32xf32>
    %139 = arith.index_cast %c2_i32 : i32 to index
    %c0_38 = arith.constant 0 : index
    %c0_39 = arith.constant 0 : index
    %140 = vector.load %arg11[%139, %c0_38, %c0_39] : memref<8x2x32xf32, #tpu.memory_space<vmem>>, vector<1x2x32xf32>
    %141 = vector.shape_cast %140 : vector<1x2x32xf32> to vector<2x32xf32>
    %142 = vector.shape_cast %138 : vector<2x32xf32> to vector<1x2x32xf32>
    tpu.vector_store %arg11[%139, %c0_38, %c0_39], %142 {strides = array<i32>} : memref<8x2x32xf32, #tpu.memory_space<vmem>>, vector<1x2x32xf32>,
    %143 = vector.extract_strided_slice %137 {offsets = [0, 32], sizes = [2, 32], strides = [1, 1]} : vector<2x64xf32> to vector<2x32xf32>
    %c7_i32_40 = arith.constant 7 : i32
    %144 = arith.subi %c7_i32_40, %c2_i32 : i32
    %145 = arith.index_cast %144 : i32 to index
    %c0_41 = arith.constant 0 : index
    %c0_42 = arith.constant 0 : index
    %146 = vector.load %arg12[%145, %c0_41, %c0_42] : memref<8x2x32xf32, #tpu.memory_space<vmem>>, vector<1x2x32xf32>
    %147 = vector.shape_cast %146 : vector<1x2x32xf32> to vector<2x32xf32>
    %148 = vector.shape_cast %143 : vector<2x32xf32> to vector<1x2x32xf32>
    tpu.vector_store %arg12[%145, %c0_41, %c0_42], %148 {strides = array<i32>} : memref<8x2x32xf32, #tpu.memory_space<vmem>>, vector<1x2x32xf32>,
    %cst_43 = arith.constant 1.000000e+00 : f32
    %149 = vector.broadcast %cst_43 : f32 to vector<2x64xf32>
    %150 = arith.subf %149, %136 : vector<2x64xf32>
    %151 = arith.mulf %150, %102 : vector<2x64xf32>
    %152 = arith.addf %137, %151 : vector<2x64xf32>
    %c3_i32 = arith.constant 3 : i32
    %cst_44 = arith.constant dense<0.000000e+00> : vector<2x192xf32>
    %153 = tpu.matmul %152, %0, %cst_44 {dimension_numbers = #tpu.dot_dimension_numbers<[1], [0], [0], [1], [0, 0, 1, 1], [], []>} : vector<2x64xf32>, vector<64x192xf32>, vector<2x192xf32> -> vector<2x192xf32>
    %154 = arith.addf %153, %1 : vector<2x192xf32>
    %155 = arith.index_cast %c3_i32 : i32 to index
    %c0_45 = arith.constant 0 : index
    %c0_46 = arith.constant 0 : index
    %156 = vector.load %arg0[%155, %c0_45, %c0_46] : memref<8x2x192xf32, #tpu.memory_space<vmem>>, vector<1x2x192xf32>
    %157 = vector.shape_cast %156 : vector<1x2x192xf32> to vector<2x192xf32>
    %158 = vector.extract_strided_slice %157 {offsets = [0, 0], sizes = [2, 64], strides = [1, 1]} : vector<2x192xf32> to vector<2x64xf32>
    %159 = vector.extract_strided_slice %154 {offsets = [0, 0], sizes = [2, 64], strides = [1, 1]} : vector<2x192xf32> to vector<2x64xf32>
    %160 = arith.addf %158, %159 : vector<2x64xf32>
    %161 = arith.negf %160 : vector<2x64xf32>
    %162 = math.exp %161 : vector<2x64xf32>
    %cst_47 = arith.constant 1.000000e+00 : f32
    %163 = vector.broadcast %cst_47 : f32 to vector<2x64xf32>
    %164 = arith.addf %163, %162 : vector<2x64xf32>
    %165 = arith.divf %163, %164 : vector<2x64xf32>
    %166 = vector.extract_strided_slice %157 {offsets = [0, 64], sizes = [2, 64], strides = [1, 1]} : vector<2x192xf32> to vector<2x64xf32>
    %167 = vector.extract_strided_slice %154 {offsets = [0, 64], sizes = [2, 64], strides = [1, 1]} : vector<2x192xf32> to vector<2x64xf32>
    %168 = arith.addf %166, %167 : vector<2x64xf32>
    %169 = arith.negf %168 : vector<2x64xf32>
    %170 = math.exp %169 : vector<2x64xf32>
    %cst_48 = arith.constant 1.000000e+00 : f32
    %171 = vector.broadcast %cst_48 : f32 to vector<2x64xf32>
    %172 = arith.addf %171, %170 : vector<2x64xf32>
    %173 = arith.divf %171, %172 : vector<2x64xf32>
    %174 = vector.extract_strided_slice %157 {offsets = [0, 128], sizes = [2, 64], strides = [1, 1]} : vector<2x192xf32> to vector<2x64xf32>
    %175 = vector.extract_strided_slice %154 {offsets = [0, 128], sizes = [2, 64], strides = [1, 1]} : vector<2x192xf32> to vector<2x64xf32>
    %176 = arith.mulf %165, %175 : vector<2x64xf32>
    %177 = arith.addf %174, %176 : vector<2x64xf32>
    %178 = math.tanh %177 : vector<2x64xf32>
    %cst_49 = arith.constant 1.000000e+00 : f32
    %179 = vector.broadcast %cst_49 : f32 to vector<2x64xf32>
    %180 = arith.subf %179, %173 : vector<2x64xf32>
    %181 = arith.mulf %180, %178 : vector<2x64xf32>
    %182 = arith.mulf %173, %152 : vector<2x64xf32>
    %183 = arith.addf %181, %182 : vector<2x64xf32>
    %184 = arith.index_cast %c3_i32 : i32 to index
    %c0_50 = arith.constant 0 : index
    %c0_51 = arith.constant 0 : index
    %185 = vector.load %arg1[%184, %c0_50, %c0_51] : memref<8x2x64xf32, #tpu.memory_space<vmem>>, vector<1x2x64xf32>
    %186 = vector.shape_cast %185 : vector<1x2x64xf32> to vector<2x64xf32>
    %187 = arith.mulf %186, %183 : vector<2x64xf32>
    %188 = vector.extract_strided_slice %187 {offsets = [0, 0], sizes = [2, 32], strides = [1, 1]} : vector<2x64xf32> to vector<2x32xf32>
    %189 = arith.index_cast %c3_i32 : i32 to index
    %c0_52 = arith.constant 0 : index
    %c0_53 = arith.constant 0 : index
    %190 = vector.load %arg11[%189, %c0_52, %c0_53] : memref<8x2x32xf32, #tpu.memory_space<vmem>>, vector<1x2x32xf32>
    %191 = vector.shape_cast %190 : vector<1x2x32xf32> to vector<2x32xf32>
    %192 = vector.shape_cast %188 : vector<2x32xf32> to vector<1x2x32xf32>
    tpu.vector_store %arg11[%189, %c0_52, %c0_53], %192 {strides = array<i32>} : memref<8x2x32xf32, #tpu.memory_space<vmem>>, vector<1x2x32xf32>,
    %193 = vector.extract_strided_slice %187 {offsets = [0, 32], sizes = [2, 32], strides = [1, 1]} : vector<2x64xf32> to vector<2x32xf32>
    %c7_i32_54 = arith.constant 7 : i32
    %194 = arith.subi %c7_i32_54, %c3_i32 : i32
    %195 = arith.index_cast %194 : i32 to index
    %c0_55 = arith.constant 0 : index
    %c0_56 = arith.constant 0 : index
    %196 = vector.load %arg12[%195, %c0_55, %c0_56] : memref<8x2x32xf32, #tpu.memory_space<vmem>>, vector<1x2x32xf32>
    %197 = vector.shape_cast %196 : vector<1x2x32xf32> to vector<2x32xf32>
    %198 = vector.shape_cast %193 : vector<2x32xf32> to vector<1x2x32xf32>
    tpu.vector_store %arg12[%195, %c0_55, %c0_56], %198 {strides = array<i32>} : memref<8x2x32xf32, #tpu.memory_space<vmem>>, vector<1x2x32xf32>,
    %cst_57 = arith.constant 1.000000e+00 : f32
    %199 = vector.broadcast %cst_57 : f32 to vector<2x64xf32>
    %200 = arith.subf %199, %186 : vector<2x64xf32>
    %201 = arith.mulf %200, %152 : vector<2x64xf32>
    %202 = arith.addf %187, %201 : vector<2x64xf32>
    %c4_i32 = arith.constant 4 : i32
    %cst_58 = arith.constant dense<0.000000e+00> : vector<2x192xf32>
    %203 = tpu.matmul %202, %0, %cst_58 {dimension_numbers = #tpu.dot_dimension_numbers<[1], [0], [0], [1], [0, 0, 1, 1], [], []>} : vector<2x64xf32>, vector<64x192xf32>, vector<2x192xf32> -> vector<2x192xf32>
    %204 = arith.addf %203, %1 : vector<2x192xf32>
    %205 = arith.index_cast %c4_i32 : i32 to index
    %c0_59 = arith.constant 0 : index
    %c0_60 = arith.constant 0 : index
    %206 = vector.load %arg0[%205, %c0_59, %c0_60] : memref<8x2x192xf32, #tpu.memory_space<vmem>>, vector<1x2x192xf32>
    %207 = vector.shape_cast %206 : vector<1x2x192xf32> to vector<2x192xf32>
    %208 = vector.extract_strided_slice %207 {offsets = [0, 0], sizes = [2, 64], strides = [1, 1]} : vector<2x192xf32> to vector<2x64xf32>
    %209 = vector.extract_strided_slice %204 {offsets = [0, 0], sizes = [2, 64], strides = [1, 1]} : vector<2x192xf32> to vector<2x64xf32>
    %210 = arith.addf %208, %209 : vector<2x64xf32>
    %211 = arith.negf %210 : vector<2x64xf32>
    %212 = math.exp %211 : vector<2x64xf32>
    %cst_61 = arith.constant 1.000000e+00 : f32
    %213 = vector.broadcast %cst_61 : f32 to vector<2x64xf32>
    %214 = arith.addf %213, %212 : vector<2x64xf32>
    %215 = arith.divf %213, %214 : vector<2x64xf32>
    %216 = vector.extract_strided_slice %207 {offsets = [0, 64], sizes = [2, 64], strides = [1, 1]} : vector<2x192xf32> to vector<2x64xf32>
    %217 = vector.extract_strided_slice %204 {offsets = [0, 64], sizes = [2, 64], strides = [1, 1]} : vector<2x192xf32> to vector<2x64xf32>
    %218 = arith.addf %216, %217 : vector<2x64xf32>
    %219 = arith.negf %218 : vector<2x64xf32>
    %220 = math.exp %219 : vector<2x64xf32>
    %cst_62 = arith.constant 1.000000e+00 : f32
    %221 = vector.broadcast %cst_62 : f32 to vector<2x64xf32>
    %222 = arith.addf %221, %220 : vector<2x64xf32>
    %223 = arith.divf %221, %222 : vector<2x64xf32>
    %224 = vector.extract_strided_slice %207 {offsets = [0, 128], sizes = [2, 64], strides = [1, 1]} : vector<2x192xf32> to vector<2x64xf32>
    %225 = vector.extract_strided_slice %204 {offsets = [0, 128], sizes = [2, 64], strides = [1, 1]} : vector<2x192xf32> to vector<2x64xf32>
    %226 = arith.mulf %215, %225 : vector<2x64xf32>
    %227 = arith.addf %224, %226 : vector<2x64xf32>
    %228 = math.tanh %227 : vector<2x64xf32>
    %cst_63 = arith.constant 1.000000e+00 : f32
    %229 = vector.broadcast %cst_63 : f32 to vector<2x64xf32>
    %230 = arith.subf %229, %223 : vector<2x64xf32>
    %231 = arith.mulf %230, %228 : vector<2x64xf32>
    %232 = arith.mulf %223, %202 : vector<2x64xf32>
    %233 = arith.addf %231, %232 : vector<2x64xf32>
    %234 = arith.index_cast %c4_i32 : i32 to index
    %c0_64 = arith.constant 0 : index
    %c0_65 = arith.constant 0 : index
    %235 = vector.load %arg1[%234, %c0_64, %c0_65] : memref<8x2x64xf32, #tpu.memory_space<vmem>>, vector<1x2x64xf32>
    %236 = vector.shape_cast %235 : vector<1x2x64xf32> to vector<2x64xf32>
    %237 = arith.mulf %236, %233 : vector<2x64xf32>
    %238 = vector.extract_strided_slice %237 {offsets = [0, 0], sizes = [2, 32], strides = [1, 1]} : vector<2x64xf32> to vector<2x32xf32>
    %239 = arith.index_cast %c4_i32 : i32 to index
    %c0_66 = arith.constant 0 : index
    %c0_67 = arith.constant 0 : index
    %240 = vector.load %arg11[%239, %c0_66, %c0_67] : memref<8x2x32xf32, #tpu.memory_space<vmem>>, vector<1x2x32xf32>
    %241 = vector.shape_cast %240 : vector<1x2x32xf32> to vector<2x32xf32>
    %242 = vector.shape_cast %238 : vector<2x32xf32> to vector<1x2x32xf32>
    tpu.vector_store %arg11[%239, %c0_66, %c0_67], %242 {strides = array<i32>} : memref<8x2x32xf32, #tpu.memory_space<vmem>>, vector<1x2x32xf32>,
    %243 = vector.extract_strided_slice %237 {offsets = [0, 32], sizes = [2, 32], strides = [1, 1]} : vector<2x64xf32> to vector<2x32xf32>
    %c7_i32_68 = arith.constant 7 : i32
    %244 = arith.subi %c7_i32_68, %c4_i32 : i32
    %245 = arith.index_cast %244 : i32 to index
    %c0_69 = arith.constant 0 : index
    %c0_70 = arith.constant 0 : index
    %246 = vector.load %arg12[%245, %c0_69, %c0_70] : memref<8x2x32xf32, #tpu.memory_space<vmem>>, vector<1x2x32xf32>
    %247 = vector.shape_cast %246 : vector<1x2x32xf32> to vector<2x32xf32>
    %248 = vector.shape_cast %243 : vector<2x32xf32> to vector<1x2x32xf32>
    tpu.vector_store %arg12[%245, %c0_69, %c0_70], %248 {strides = array<i32>} : memref<8x2x32xf32, #tpu.memory_space<vmem>>, vector<1x2x32xf32>,
    %cst_71 = arith.constant 1.000000e+00 : f32
    %249 = vector.broadcast %cst_71 : f32 to vector<2x64xf32>
    %250 = arith.subf %249, %236 : vector<2x64xf32>
    %251 = arith.mulf %250, %202 : vector<2x64xf32>
    %252 = arith.addf %237, %251 : vector<2x64xf32>
    %c5_i32 = arith.constant 5 : i32
    %cst_72 = arith.constant dense<0.000000e+00> : vector<2x192xf32>
    %253 = tpu.matmul %252, %0, %cst_72 {dimension_numbers = #tpu.dot_dimension_numbers<[1], [0], [0], [1], [0, 0, 1, 1], [], []>} : vector<2x64xf32>, vector<64x192xf32>, vector<2x192xf32> -> vector<2x192xf32>
    %254 = arith.addf %253, %1 : vector<2x192xf32>
    %255 = arith.index_cast %c5_i32 : i32 to index
    %c0_73 = arith.constant 0 : index
    %c0_74 = arith.constant 0 : index
    %256 = vector.load %arg0[%255, %c0_73, %c0_74] : memref<8x2x192xf32, #tpu.memory_space<vmem>>, vector<1x2x192xf32>
    %257 = vector.shape_cast %256 : vector<1x2x192xf32> to vector<2x192xf32>
    %258 = vector.extract_strided_slice %257 {offsets = [0, 0], sizes = [2, 64], strides = [1, 1]} : vector<2x192xf32> to vector<2x64xf32>
    %259 = vector.extract_strided_slice %254 {offsets = [0, 0], sizes = [2, 64], strides = [1, 1]} : vector<2x192xf32> to vector<2x64xf32>
    %260 = arith.addf %258, %259 : vector<2x64xf32>
    %261 = arith.negf %260 : vector<2x64xf32>
    %262 = math.exp %261 : vector<2x64xf32>
    %cst_75 = arith.constant 1.000000e+00 : f32
    %263 = vector.broadcast %cst_75 : f32 to vector<2x64xf32>
    %264 = arith.addf %263, %262 : vector<2x64xf32>
    %265 = arith.divf %263, %264 : vector<2x64xf32>
    %266 = vector.extract_strided_slice %257 {offsets = [0, 64], sizes = [2, 64], strides = [1, 1]} : vector<2x192xf32> to vector<2x64xf32>
    %267 = vector.extract_strided_slice %254 {offsets = [0, 64], sizes = [2, 64], strides = [1, 1]} : vector<2x192xf32> to vector<2x64xf32>
    %268 = arith.addf %266, %267 : vector<2x64xf32>
    %269 = arith.negf %268 : vector<2x64xf32>
    %270 = math.exp %269 : vector<2x64xf32>
    %cst_76 = arith.constant 1.000000e+00 : f32
    %271 = vector.broadcast %cst_76 : f32 to vector<2x64xf32>
    %272 = arith.addf %271, %270 : vector<2x64xf32>
    %273 = arith.divf %271, %272 : vector<2x64xf32>
    %274 = vector.extract_strided_slice %257 {offsets = [0, 128], sizes = [2, 64], strides = [1, 1]} : vector<2x192xf32> to vector<2x64xf32>
    %275 = vector.extract_strided_slice %254 {offsets = [0, 128], sizes = [2, 64], strides = [1, 1]} : vector<2x192xf32> to vector<2x64xf32>
    %276 = arith.mulf %265, %275 : vector<2x64xf32>
    %277 = arith.addf %274, %276 : vector<2x64xf32>
    %278 = math.tanh %277 : vector<2x64xf32>
    %cst_77 = arith.constant 1.000000e+00 : f32
    %279 = vector.broadcast %cst_77 : f32 to vector<2x64xf32>
    %280 = arith.subf %279, %273 : vector<2x64xf32>
    %281 = arith.mulf %280, %278 : vector<2x64xf32>
    %282 = arith.mulf %273, %252 : vector<2x64xf32>
    %283 = arith.addf %281, %282 : vector<2x64xf32>
    %284 = arith.index_cast %c5_i32 : i32 to index
    %c0_78 = arith.constant 0 : index
    %c0_79 = arith.constant 0 : index
    %285 = vector.load %arg1[%284, %c0_78, %c0_79] : memref<8x2x64xf32, #tpu.memory_space<vmem>>, vector<1x2x64xf32>
    %286 = vector.shape_cast %285 : vector<1x2x64xf32> to vector<2x64xf32>
    %287 = arith.mulf %286, %283 : vector<2x64xf32>
    %288 = vector.extract_strided_slice %287 {offsets = [0, 0], sizes = [2, 32], strides = [1, 1]} : vector<2x64xf32> to vector<2x32xf32>
    %289 = arith.index_cast %c5_i32 : i32 to index
    %c0_80 = arith.constant 0 : index
    %c0_81 = arith.constant 0 : index
    %290 = vector.load %arg11[%289, %c0_80, %c0_81] : memref<8x2x32xf32, #tpu.memory_space<vmem>>, vector<1x2x32xf32>
    %291 = vector.shape_cast %290 : vector<1x2x32xf32> to vector<2x32xf32>
    %292 = vector.shape_cast %288 : vector<2x32xf32> to vector<1x2x32xf32>
    tpu.vector_store %arg11[%289, %c0_80, %c0_81], %292 {strides = array<i32>} : memref<8x2x32xf32, #tpu.memory_space<vmem>>, vector<1x2x32xf32>,
    %293 = vector.extract_strided_slice %287 {offsets = [0, 32], sizes = [2, 32], strides = [1, 1]} : vector<2x64xf32> to vector<2x32xf32>
    %c7_i32_82 = arith.constant 7 : i32
    %294 = arith.subi %c7_i32_82, %c5_i32 : i32
    %295 = arith.index_cast %294 : i32 to index
    %c0_83 = arith.constant 0 : index
    %c0_84 = arith.constant 0 : index
    %296 = vector.load %arg12[%295, %c0_83, %c0_84] : memref<8x2x32xf32, #tpu.memory_space<vmem>>, vector<1x2x32xf32>
    %297 = vector.shape_cast %296 : vector<1x2x32xf32> to vector<2x32xf32>
    %298 = vector.shape_cast %293 : vector<2x32xf32> to vector<1x2x32xf32>
    tpu.vector_store %arg12[%295, %c0_83, %c0_84], %298 {strides = array<i32>} : memref<8x2x32xf32, #tpu.memory_space<vmem>>, vector<1x2x32xf32>,
    %cst_85 = arith.constant 1.000000e+00 : f32
    %299 = vector.broadcast %cst_85 : f32 to vector<2x64xf32>
    %300 = arith.subf %299, %286 : vector<2x64xf32>
    %301 = arith.mulf %300, %252 : vector<2x64xf32>
    %302 = arith.addf %287, %301 : vector<2x64xf32>
    %c6_i32 = arith.constant 6 : i32
    %cst_86 = arith.constant dense<0.000000e+00> : vector<2x192xf32>
    %303 = tpu.matmul %302, %0, %cst_86 {dimension_numbers = #tpu.dot_dimension_numbers<[1], [0], [0], [1], [0, 0, 1, 1], [], []>} : vector<2x64xf32>, vector<64x192xf32>, vector<2x192xf32> -> vector<2x192xf32>
    %304 = arith.addf %303, %1 : vector<2x192xf32>
    %305 = arith.index_cast %c6_i32 : i32 to index
    %c0_87 = arith.constant 0 : index
    %c0_88 = arith.constant 0 : index
    %306 = vector.load %arg0[%305, %c0_87, %c0_88] : memref<8x2x192xf32, #tpu.memory_space<vmem>>, vector<1x2x192xf32>
    %307 = vector.shape_cast %306 : vector<1x2x192xf32> to vector<2x192xf32>
    %308 = vector.extract_strided_slice %307 {offsets = [0, 0], sizes = [2, 64], strides = [1, 1]} : vector<2x192xf32> to vector<2x64xf32>
    %309 = vector.extract_strided_slice %304 {offsets = [0, 0], sizes = [2, 64], strides = [1, 1]} : vector<2x192xf32> to vector<2x64xf32>
    %310 = arith.addf %308, %309 : vector<2x64xf32>
    %311 = arith.negf %310 : vector<2x64xf32>
    %312 = math.exp %311 : vector<2x64xf32>
    %cst_89 = arith.constant 1.000000e+00 : f32
    %313 = vector.broadcast %cst_89 : f32 to vector<2x64xf32>
    %314 = arith.addf %313, %312 : vector<2x64xf32>
    %315 = arith.divf %313, %314 : vector<2x64xf32>
    %316 = vector.extract_strided_slice %307 {offsets = [0, 64], sizes = [2, 64], strides = [1, 1]} : vector<2x192xf32> to vector<2x64xf32>
    %317 = vector.extract_strided_slice %304 {offsets = [0, 64], sizes = [2, 64], strides = [1, 1]} : vector<2x192xf32> to vector<2x64xf32>
    %318 = arith.addf %316, %317 : vector<2x64xf32>
    %319 = arith.negf %318 : vector<2x64xf32>
    %320 = math.exp %319 : vector<2x64xf32>
    %cst_90 = arith.constant 1.000000e+00 : f32
    %321 = vector.broadcast %cst_90 : f32 to vector<2x64xf32>
    %322 = arith.addf %321, %320 : vector<2x64xf32>
    %323 = arith.divf %321, %322 : vector<2x64xf32>
    %324 = vector.extract_strided_slice %307 {offsets = [0, 128], sizes = [2, 64], strides = [1, 1]} : vector<2x192xf32> to vector<2x64xf32>
    %325 = vector.extract_strided_slice %304 {offsets = [0, 128], sizes = [2, 64], strides = [1, 1]} : vector<2x192xf32> to vector<2x64xf32>
    %326 = arith.mulf %315, %325 : vector<2x64xf32>
    %327 = arith.addf %324, %326 : vector<2x64xf32>
    %328 = math.tanh %327 : vector<2x64xf32>
    %cst_91 = arith.constant 1.000000e+00 : f32
    %329 = vector.broadcast %cst_91 : f32 to vector<2x64xf32>
    %330 = arith.subf %329, %323 : vector<2x64xf32>
    %331 = arith.mulf %330, %328 : vector<2x64xf32>
    %332 = arith.mulf %323, %302 : vector<2x64xf32>
    %333 = arith.addf %331, %332 : vector<2x64xf32>
    %334 = arith.index_cast %c6_i32 : i32 to index
    %c0_92 = arith.constant 0 : index
    %c0_93 = arith.constant 0 : index
    %335 = vector.load %arg1[%334, %c0_92, %c0_93] : memref<8x2x64xf32, #tpu.memory_space<vmem>>, vector<1x2x64xf32>
    %336 = vector.shape_cast %335 : vector<1x2x64xf32> to vector<2x64xf32>
    %337 = arith.mulf %336, %333 : vector<2x64xf32>
    %338 = vector.extract_strided_slice %337 {offsets = [0, 0], sizes = [2, 32], strides = [1, 1]} : vector<2x64xf32> to vector<2x32xf32>
    %339 = arith.index_cast %c6_i32 : i32 to index
    %c0_94 = arith.constant 0 : index
    %c0_95 = arith.constant 0 : index
    %340 = vector.load %arg11[%339, %c0_94, %c0_95] : memref<8x2x32xf32, #tpu.memory_space<vmem>>, vector<1x2x32xf32>
    %341 = vector.shape_cast %340 : vector<1x2x32xf32> to vector<2x32xf32>
    %342 = vector.shape_cast %338 : vector<2x32xf32> to vector<1x2x32xf32>
    tpu.vector_store %arg11[%339, %c0_94, %c0_95], %342 {strides = array<i32>} : memref<8x2x32xf32, #tpu.memory_space<vmem>>, vector<1x2x32xf32>,
    %343 = vector.extract_strided_slice %337 {offsets = [0, 32], sizes = [2, 32], strides = [1, 1]} : vector<2x64xf32> to vector<2x32xf32>
    %c7_i32_96 = arith.constant 7 : i32
    %344 = arith.subi %c7_i32_96, %c6_i32 : i32
    %345 = arith.index_cast %344 : i32 to index
    %c0_97 = arith.constant 0 : index
    %c0_98 = arith.constant 0 : index
    %346 = vector.load %arg12[%345, %c0_97, %c0_98] : memref<8x2x32xf32, #tpu.memory_space<vmem>>, vector<1x2x32xf32>
    %347 = vector.shape_cast %346 : vector<1x2x32xf32> to vector<2x32xf32>
    %348 = vector.shape_cast %343 : vector<2x32xf32> to vector<1x2x32xf32>
    tpu.vector_store %arg12[%345, %c0_97, %c0_98], %348 {strides = array<i32>} : memref<8x2x32xf32, #tpu.memory_space<vmem>>, vector<1x2x32xf32>,
    %cst_99 = arith.constant 1.000000e+00 : f32
    %349 = vector.broadcast %cst_99 : f32 to vector<2x64xf32>
    %350 = arith.subf %349, %336 : vector<2x64xf32>
    %351 = arith.mulf %350, %302 : vector<2x64xf32>
    %352 = arith.addf %337, %351 : vector<2x64xf32>
    %c7_i32_100 = arith.constant 7 : i32
    %cst_101 = arith.constant dense<0.000000e+00> : vector<2x192xf32>
    %353 = tpu.matmul %352, %0, %cst_101 {dimension_numbers = #tpu.dot_dimension_numbers<[1], [0], [0], [1], [0, 0, 1, 1], [], []>} : vector<2x64xf32>, vector<64x192xf32>, vector<2x192xf32> -> vector<2x192xf32>
    %354 = arith.addf %353, %1 : vector<2x192xf32>
    %355 = arith.index_cast %c7_i32_100 : i32 to index
    %c0_102 = arith.constant 0 : index
    %c0_103 = arith.constant 0 : index
    %356 = vector.load %arg0[%355, %c0_102, %c0_103] : memref<8x2x192xf32, #tpu.memory_space<vmem>>, vector<1x2x192xf32>
    %357 = vector.shape_cast %356 : vector<1x2x192xf32> to vector<2x192xf32>
    %358 = vector.extract_strided_slice %357 {offsets = [0, 0], sizes = [2, 64], strides = [1, 1]} : vector<2x192xf32> to vector<2x64xf32>
    %359 = vector.extract_strided_slice %354 {offsets = [0, 0], sizes = [2, 64], strides = [1, 1]} : vector<2x192xf32> to vector<2x64xf32>
    %360 = arith.addf %358, %359 : vector<2x64xf32>
    %361 = arith.negf %360 : vector<2x64xf32>
    %362 = math.exp %361 : vector<2x64xf32>
    %cst_104 = arith.constant 1.000000e+00 : f32
    %363 = vector.broadcast %cst_104 : f32 to vector<2x64xf32>
    %364 = arith.addf %363, %362 : vector<2x64xf32>
    %365 = arith.divf %363, %364 : vector<2x64xf32>
    %366 = vector.extract_strided_slice %357 {offsets = [0, 64], sizes = [2, 64], strides = [1, 1]} : vector<2x192xf32> to vector<2x64xf32>
    %367 = vector.extract_strided_slice %354 {offsets = [0, 64], sizes = [2, 64], strides = [1, 1]} : vector<2x192xf32> to vector<2x64xf32>
    %368 = arith.addf %366, %367 : vector<2x64xf32>
    %369 = arith.negf %368 : vector<2x64xf32>
    %370 = math.exp %369 : vector<2x64xf32>
    %cst_105 = arith.constant 1.000000e+00 : f32
    %371 = vector.broadcast %cst_105 : f32 to vector<2x64xf32>
    %372 = arith.addf %371, %370 : vector<2x64xf32>
    %373 = arith.divf %371, %372 : vector<2x64xf32>
    %374 = vector.extract_strided_slice %357 {offsets = [0, 128], sizes = [2, 64], strides = [1, 1]} : vector<2x192xf32> to vector<2x64xf32>
    %375 = vector.extract_strided_slice %354 {offsets = [0, 128], sizes = [2, 64], strides = [1, 1]} : vector<2x192xf32> to vector<2x64xf32>
    %376 = arith.mulf %365, %375 : vector<2x64xf32>
    %377 = arith.addf %374, %376 : vector<2x64xf32>
    %378 = math.tanh %377 : vector<2x64xf32>
    %cst_106 = arith.constant 1.000000e+00 : f32
    %379 = vector.broadcast %cst_106 : f32 to vector<2x64xf32>
    %380 = arith.subf %379, %373 : vector<2x64xf32>
    %381 = arith.mulf %380, %378 : vector<2x64xf32>
    %382 = arith.mulf %373, %352 : vector<2x64xf32>
    %383 = arith.addf %381, %382 : vector<2x64xf32>
    %384 = arith.index_cast %c7_i32_100 : i32 to index
    %c0_107 = arith.constant 0 : index
    %c0_108 = arith.constant 0 : index
    %385 = vector.load %arg1[%384, %c0_107, %c0_108] : memref<8x2x64xf32, #tpu.memory_space<vmem>>, vector<1x2x64xf32>
    %386 = vector.shape_cast %385 : vector<1x2x64xf32> to vector<2x64xf32>
    %387 = arith.mulf %386, %383 : vector<2x64xf32>
    %388 = vector.extract_strided_slice %387 {offsets = [0, 0], sizes = [2, 32], strides = [1, 1]} : vector<2x64xf32> to vector<2x32xf32>
    %389 = arith.index_cast %c7_i32_100 : i32 to index
    %c0_109 = arith.constant 0 : index
    %c0_110 = arith.constant 0 : index
    %390 = vector.load %arg11[%389, %c0_109, %c0_110] : memref<8x2x32xf32, #tpu.memory_space<vmem>>, vector<1x2x32xf32>
    %391 = vector.shape_cast %390 : vector<1x2x32xf32> to vector<2x32xf32>
    %392 = vector.shape_cast %388 : vector<2x32xf32> to vector<1x2x32xf32>
    tpu.vector_store %arg11[%389, %c0_109, %c0_110], %392 {strides = array<i32>} : memref<8x2x32xf32, #tpu.memory_space<vmem>>, vector<1x2x32xf32>,
    %393 = vector.extract_strided_slice %387 {offsets = [0, 32], sizes = [2, 32], strides = [1, 1]} : vector<2x64xf32> to vector<2x32xf32>
    %c7_i32_111 = arith.constant 7 : i32
    %394 = arith.subi %c7_i32_111, %c7_i32_100 : i32
    %395 = arith.index_cast %394 : i32 to index
    %c0_112 = arith.constant 0 : index
    %c0_113 = arith.constant 0 : index
    %396 = vector.load %arg12[%395, %c0_112, %c0_113] : memref<8x2x32xf32, #tpu.memory_space<vmem>>, vector<1x2x32xf32>
    %397 = vector.shape_cast %396 : vector<1x2x32xf32> to vector<2x32xf32>
    %398 = vector.shape_cast %393 : vector<2x32xf32> to vector<1x2x32xf32>
    tpu.vector_store %arg12[%395, %c0_112, %c0_113], %398 {strides = array<i32>} : memref<8x2x32xf32, #tpu.memory_space<vmem>>, vector<1x2x32xf32>,
    %cst_114 = arith.constant 1.000000e+00 : f32
    %399 = vector.broadcast %cst_114 : f32 to vector<2x64xf32>
    %400 = arith.subf %399, %386 : vector<2x64xf32>
    %401 = arith.mulf %400, %352 : vector<2x64xf32>
    %402 = arith.addf %387, %401 : vector<2x64xf32>
    %c8_i32 = arith.constant 8 : i32
    %c0_115 = arith.constant 0 : index
    %c0_116 = arith.constant 0 : index
    %403 = vector.load %arg4[%c0_115, %c0_116] : memref<32x64xf32, #tpu.memory_space<vmem>>, vector<32x64xf32>
    %c0_117 = arith.constant 0 : index
    %c0_118 = arith.constant 0 : index
    %404 = vector.load %arg5[%c0_117, %c0_118] : memref<32x64xf32, #tpu.memory_space<vmem>>, vector<32x64xf32>
    %c0_119 = arith.constant 0 : index
    %c0_120 = arith.constant 0 : index
    %405 = vector.load %arg7[%c0_119, %c0_120] : memref<2x64xf32, #tpu.memory_space<vmem>>, vector<2x64xf32>
    %c0_i32_121 = arith.constant 0 : i32
    %406 = arith.index_cast %c0_i32_121 : i32 to index
    %c0_122 = arith.constant 0 : index
    %c0_123 = arith.constant 0 : index
    %407 = vector.load %arg11[%406, %c0_122, %c0_123] : memref<8x2x32xf32, #tpu.memory_space<vmem>>, vector<1x2x32xf32>
    %408 = vector.shape_cast %407 : vector<1x2x32xf32> to vector<2x32xf32>
    %cst_124 = arith.constant dense<0.000000e+00> : vector<2x64xf32>
    %409 = tpu.matmul %408, %403, %cst_124 {dimension_numbers = #tpu.dot_dimension_numbers<[1], [0], [0], [1], [0, 0, 1, 1], [], []>} : vector<2x32xf32>, vector<32x64xf32>, vector<2x64xf32> -> vector<2x64xf32>
    %410 = arith.index_cast %c0_i32_121 : i32 to index
    %c0_125 = arith.constant 0 : index
    %c0_126 = arith.constant 0 : index
    %411 = vector.load %arg12[%410, %c0_125, %c0_126] : memref<8x2x32xf32, #tpu.memory_space<vmem>>, vector<1x2x32xf32>
    %412 = vector.shape_cast %411 : vector<1x2x32xf32> to vector<2x32xf32>
    %cst_127 = arith.constant dense<0.000000e+00> : vector<2x64xf32>
    %413 = tpu.matmul %412, %404, %cst_127 {dimension_numbers = #tpu.dot_dimension_numbers<[1], [0], [0], [1], [0, 0, 1, 1], [], []>} : vector<2x32xf32>, vector<32x64xf32>, vector<2x64xf32> -> vector<2x64xf32>
    %414 = arith.addf %409, %413 : vector<2x64xf32>
    %415 = arith.addf %414, %405 : vector<2x64xf32>
    %416 = arith.index_cast %c0_i32_121 : i32 to index
    %c0_128 = arith.constant 0 : index
    %c0_129 = arith.constant 0 : index
    %417 = vector.load %arg13[%416, %c0_128, %c0_129] : memref<8x2x64xf32, #tpu.memory_space<vmem>>, vector<1x2x64xf32>
    %418 = vector.shape_cast %417 : vector<1x2x64xf32> to vector<2x64xf32>
    %419 = vector.shape_cast %415 : vector<2x64xf32> to vector<1x2x64xf32>
    tpu.vector_store %arg13[%416, %c0_128, %c0_129], %419 {strides = array<i32>} : memref<8x2x64xf32, #tpu.memory_space<vmem>>, vector<1x2x64xf32>,
    %c1_i32_130 = arith.constant 1 : i32
    %420 = arith.index_cast %c1_i32_130 : i32 to index
    %c0_131 = arith.constant 0 : index
    %c0_132 = arith.constant 0 : index
    %421 = vector.load %arg11[%420, %c0_131, %c0_132] : memref<8x2x32xf32, #tpu.memory_space<vmem>>, vector<1x2x32xf32>
    %422 = vector.shape_cast %421 : vector<1x2x32xf32> to vector<2x32xf32>
    %cst_133 = arith.constant dense<0.000000e+00> : vector<2x64xf32>
    %423 = tpu.matmul %422, %403, %cst_133 {dimension_numbers = #tpu.dot_dimension_numbers<[1], [0], [0], [1], [0, 0, 1, 1], [], []>} : vector<2x32xf32>, vector<32x64xf32>, vector<2x64xf32> -> vector<2x64xf32>
    %424 = arith.index_cast %c1_i32_130 : i32 to index
    %c0_134 = arith.constant 0 : index
    %c0_135 = arith.constant 0 : index
    %425 = vector.load %arg12[%424, %c0_134, %c0_135] : memref<8x2x32xf32, #tpu.memory_space<vmem>>, vector<1x2x32xf32>
    %426 = vector.shape_cast %425 : vector<1x2x32xf32> to vector<2x32xf32>
    %cst_136 = arith.constant dense<0.000000e+00> : vector<2x64xf32>
    %427 = tpu.matmul %426, %404, %cst_136 {dimension_numbers = #tpu.dot_dimension_numbers<[1], [0], [0], [1], [0, 0, 1, 1], [], []>} : vector<2x32xf32>, vector<32x64xf32>, vector<2x64xf32> -> vector<2x64xf32>
    %428 = arith.addf %423, %427 : vector<2x64xf32>
    %429 = arith.addf %428, %405 : vector<2x64xf32>
    %430 = arith.index_cast %c1_i32_130 : i32 to index
    %c0_137 = arith.constant 0 : index
    %c0_138 = arith.constant 0 : index
    %431 = vector.load %arg13[%430, %c0_137, %c0_138] : memref<8x2x64xf32, #tpu.memory_space<vmem>>, vector<1x2x64xf32>
    %432 = vector.shape_cast %431 : vector<1x2x64xf32> to vector<2x64xf32>
    %433 = vector.shape_cast %429 : vector<2x64xf32> to vector<1x2x64xf32>
    tpu.vector_store %arg13[%430, %c0_137, %c0_138], %433 {strides = array<i32>} : memref<8x2x64xf32, #tpu.memory_space<vmem>>, vector<1x2x64xf32>,
    %c2_i32_139 = arith.constant 2 : i32
    %434 = arith.index_cast %c2_i32_139 : i32 to index
    %c0_140 = arith.constant 0 : index
    %c0_141 = arith.constant 0 : index
    %435 = vector.load %arg11[%434, %c0_140, %c0_141] : memref<8x2x32xf32, #tpu.memory_space<vmem>>, vector<1x2x32xf32>
    %436 = vector.shape_cast %435 : vector<1x2x32xf32> to vector<2x32xf32>
    %cst_142 = arith.constant dense<0.000000e+00> : vector<2x64xf32>
    %437 = tpu.matmul %436, %403, %cst_142 {dimension_numbers = #tpu.dot_dimension_numbers<[1], [0], [0], [1], [0, 0, 1, 1], [], []>} : vector<2x32xf32>, vector<32x64xf32>, vector<2x64xf32> -> vector<2x64xf32>
    %438 = arith.index_cast %c2_i32_139 : i32 to index
    %c0_143 = arith.constant 0 : index
    %c0_144 = arith.constant 0 : index
    %439 = vector.load %arg12[%438, %c0_143, %c0_144] : memref<8x2x32xf32, #tpu.memory_space<vmem>>, vector<1x2x32xf32>
    %440 = vector.shape_cast %439 : vector<1x2x32xf32> to vector<2x32xf32>
    %cst_145 = arith.constant dense<0.000000e+00> : vector<2x64xf32>
    %441 = tpu.matmul %440, %404, %cst_145 {dimension_numbers = #tpu.dot_dimension_numbers<[1], [0], [0], [1], [0, 0, 1, 1], [], []>} : vector<2x32xf32>, vector<32x64xf32>, vector<2x64xf32> -> vector<2x64xf32>
    %442 = arith.addf %437, %441 : vector<2x64xf32>
    %443 = arith.addf %442, %405 : vector<2x64xf32>
    %444 = arith.index_cast %c2_i32_139 : i32 to index
    %c0_146 = arith.constant 0 : index
    %c0_147 = arith.constant 0 : index
    %445 = vector.load %arg13[%444, %c0_146, %c0_147] : memref<8x2x64xf32, #tpu.memory_space<vmem>>, vector<1x2x64xf32>
    %446 = vector.shape_cast %445 : vector<1x2x64xf32> to vector<2x64xf32>
    %447 = vector.shape_cast %443 : vector<2x64xf32> to vector<1x2x64xf32>
    tpu.vector_store %arg13[%444, %c0_146, %c0_147], %447 {strides = array<i32>} : memref<8x2x64xf32, #tpu.memory_space<vmem>>, vector<1x2x64xf32>,
    %c3_i32_148 = arith.constant 3 : i32
    %448 = arith.index_cast %c3_i32_148 : i32 to index
    %c0_149 = arith.constant 0 : index
    %c0_150 = arith.constant 0 : index
    %449 = vector.load %arg11[%448, %c0_149, %c0_150] : memref<8x2x32xf32, #tpu.memory_space<vmem>>, vector<1x2x32xf32>
    %450 = vector.shape_cast %449 : vector<1x2x32xf32> to vector<2x32xf32>
    %cst_151 = arith.constant dense<0.000000e+00> : vector<2x64xf32>
    %451 = tpu.matmul %450, %403, %cst_151 {dimension_numbers = #tpu.dot_dimension_numbers<[1], [0], [0], [1], [0, 0, 1, 1], [], []>} : vector<2x32xf32>, vector<32x64xf32>, vector<2x64xf32> -> vector<2x64xf32>
    %452 = arith.index_cast %c3_i32_148 : i32 to index
    %c0_152 = arith.constant 0 : index
    %c0_153 = arith.constant 0 : index
    %453 = vector.load %arg12[%452, %c0_152, %c0_153] : memref<8x2x32xf32, #tpu.memory_space<vmem>>, vector<1x2x32xf32>
    %454 = vector.shape_cast %453 : vector<1x2x32xf32> to vector<2x32xf32>
    %cst_154 = arith.constant dense<0.000000e+00> : vector<2x64xf32>
    %455 = tpu.matmul %454, %404, %cst_154 {dimension_numbers = #tpu.dot_dimension_numbers<[1], [0], [0], [1], [0, 0, 1, 1], [], []>} : vector<2x32xf32>, vector<32x64xf32>, vector<2x64xf32> -> vector<2x64xf32>
    %456 = arith.addf %451, %455 : vector<2x64xf32>
    %457 = arith.addf %456, %405 : vector<2x64xf32>
    %458 = arith.index_cast %c3_i32_148 : i32 to index
    %c0_155 = arith.constant 0 : index
    %c0_156 = arith.constant 0 : index
    %459 = vector.load %arg13[%458, %c0_155, %c0_156] : memref<8x2x64xf32, #tpu.memory_space<vmem>>, vector<1x2x64xf32>
    %460 = vector.shape_cast %459 : vector<1x2x64xf32> to vector<2x64xf32>
    %461 = vector.shape_cast %457 : vector<2x64xf32> to vector<1x2x64xf32>
    tpu.vector_store %arg13[%458, %c0_155, %c0_156], %461 {strides = array<i32>} : memref<8x2x64xf32, #tpu.memory_space<vmem>>, vector<1x2x64xf32>,
    %c4_i32_157 = arith.constant 4 : i32
    %462 = arith.index_cast %c4_i32_157 : i32 to index
    %c0_158 = arith.constant 0 : index
    %c0_159 = arith.constant 0 : index
    %463 = vector.load %arg11[%462, %c0_158, %c0_159] : memref<8x2x32xf32, #tpu.memory_space<vmem>>, vector<1x2x32xf32>
    %464 = vector.shape_cast %463 : vector<1x2x32xf32> to vector<2x32xf32>
    %cst_160 = arith.constant dense<0.000000e+00> : vector<2x64xf32>
    %465 = tpu.matmul %464, %403, %cst_160 {dimension_numbers = #tpu.dot_dimension_numbers<[1], [0], [0], [1], [0, 0, 1, 1], [], []>} : vector<2x32xf32>, vector<32x64xf32>, vector<2x64xf32> -> vector<2x64xf32>
    %466 = arith.index_cast %c4_i32_157 : i32 to index
    %c0_161 = arith.constant 0 : index
    %c0_162 = arith.constant 0 : index
    %467 = vector.load %arg12[%466, %c0_161, %c0_162] : memref<8x2x32xf32, #tpu.memory_space<vmem>>, vector<1x2x32xf32>
    %468 = vector.shape_cast %467 : vector<1x2x32xf32> to vector<2x32xf32>
    %cst_163 = arith.constant dense<0.000000e+00> : vector<2x64xf32>
    %469 = tpu.matmul %468, %404, %cst_163 {dimension_numbers = #tpu.dot_dimension_numbers<[1], [0], [0], [1], [0, 0, 1, 1], [], []>} : vector<2x32xf32>, vector<32x64xf32>, vector<2x64xf32> -> vector<2x64xf32>
    %470 = arith.addf %465, %469 : vector<2x64xf32>
    %471 = arith.addf %470, %405 : vector<2x64xf32>
    %472 = arith.index_cast %c4_i32_157 : i32 to index
    %c0_164 = arith.constant 0 : index
    %c0_165 = arith.constant 0 : index
    %473 = vector.load %arg13[%472, %c0_164, %c0_165] : memref<8x2x64xf32, #tpu.memory_space<vmem>>, vector<1x2x64xf32>
    %474 = vector.shape_cast %473 : vector<1x2x64xf32> to vector<2x64xf32>
    %475 = vector.shape_cast %471 : vector<2x64xf32> to vector<1x2x64xf32>
    tpu.vector_store %arg13[%472, %c0_164, %c0_165], %475 {strides = array<i32>} : memref<8x2x64xf32, #tpu.memory_space<vmem>>, vector<1x2x64xf32>,
    %c5_i32_166 = arith.constant 5 : i32
    %476 = arith.index_cast %c5_i32_166 : i32 to index
    %c0_167 = arith.constant 0 : index
    %c0_168 = arith.constant 0 : index
    %477 = vector.load %arg11[%476, %c0_167, %c0_168] : memref<8x2x32xf32, #tpu.memory_space<vmem>>, vector<1x2x32xf32>
    %478 = vector.shape_cast %477 : vector<1x2x32xf32> to vector<2x32xf32>
    %cst_169 = arith.constant dense<0.000000e+00> : vector<2x64xf32>
    %479 = tpu.matmul %478, %403, %cst_169 {dimension_numbers = #tpu.dot_dimension_numbers<[1], [0], [0], [1], [0, 0, 1, 1], [], []>} : vector<2x32xf32>, vector<32x64xf32>, vector<2x64xf32> -> vector<2x64xf32>
    %480 = arith.index_cast %c5_i32_166 : i32 to index
    %c0_170 = arith.constant 0 : index
    %c0_171 = arith.constant 0 : index
    %481 = vector.load %arg12[%480, %c0_170, %c0_171] : memref<8x2x32xf32, #tpu.memory_space<vmem>>, vector<1x2x32xf32>
    %482 = vector.shape_cast %481 : vector<1x2x32xf32> to vector<2x32xf32>
    %cst_172 = arith.constant dense<0.000000e+00> : vector<2x64xf32>
    %483 = tpu.matmul %482, %404, %cst_172 {dimension_numbers = #tpu.dot_dimension_numbers<[1], [0], [0], [1], [0, 0, 1, 1], [], []>} : vector<2x32xf32>, vector<32x64xf32>, vector<2x64xf32> -> vector<2x64xf32>
    %484 = arith.addf %479, %483 : vector<2x64xf32>
    %485 = arith.addf %484, %405 : vector<2x64xf32>
    %486 = arith.index_cast %c5_i32_166 : i32 to index
    %c0_173 = arith.constant 0 : index
    %c0_174 = arith.constant 0 : index
    %487 = vector.load %arg13[%486, %c0_173, %c0_174] : memref<8x2x64xf32, #tpu.memory_space<vmem>>, vector<1x2x64xf32>
    %488 = vector.shape_cast %487 : vector<1x2x64xf32> to vector<2x64xf32>
    %489 = vector.shape_cast %485 : vector<2x64xf32> to vector<1x2x64xf32>
    tpu.vector_store %arg13[%486, %c0_173, %c0_174], %489 {strides = array<i32>} : memref<8x2x64xf32, #tpu.memory_space<vmem>>, vector<1x2x64xf32>,
    %c6_i32_175 = arith.constant 6 : i32
    %490 = arith.index_cast %c6_i32_175 : i32 to index
    %c0_176 = arith.constant 0 : index
    %c0_177 = arith.constant 0 : index
    %491 = vector.load %arg11[%490, %c0_176, %c0_177] : memref<8x2x32xf32, #tpu.memory_space<vmem>>, vector<1x2x32xf32>
    %492 = vector.shape_cast %491 : vector<1x2x32xf32> to vector<2x32xf32>
    %cst_178 = arith.constant dense<0.000000e+00> : vector<2x64xf32>
    %493 = tpu.matmul %492, %403, %cst_178 {dimension_numbers = #tpu.dot_dimension_numbers<[1], [0], [0], [1], [0, 0, 1, 1], [], []>} : vector<2x32xf32>, vector<32x64xf32>, vector<2x64xf32> -> vector<2x64xf32>
    %494 = arith.index_cast %c6_i32_175 : i32 to index
    %c0_179 = arith.constant 0 : index
    %c0_180 = arith.constant 0 : index
    %495 = vector.load %arg12[%494, %c0_179, %c0_180] : memref<8x2x32xf32, #tpu.memory_space<vmem>>, vector<1x2x32xf32>
    %496 = vector.shape_cast %495 : vector<1x2x32xf32> to vector<2x32xf32>
    %cst_181 = arith.constant dense<0.000000e+00> : vector<2x64xf32>
    %497 = tpu.matmul %496, %404, %cst_181 {dimension_numbers = #tpu.dot_dimension_numbers<[1], [0], [0], [1], [0, 0, 1, 1], [], []>} : vector<2x32xf32>, vector<32x64xf32>, vector<2x64xf32> -> vector<2x64xf32>
    %498 = arith.addf %493, %497 : vector<2x64xf32>
    %499 = arith.addf %498, %405 : vector<2x64xf32>
    %500 = arith.index_cast %c6_i32_175 : i32 to index
    %c0_182 = arith.constant 0 : index
    %c0_183 = arith.constant 0 : index
    %501 = vector.load %arg13[%500, %c0_182, %c0_183] : memref<8x2x64xf32, #tpu.memory_space<vmem>>, vector<1x2x64xf32>
    %502 = vector.shape_cast %501 : vector<1x2x64xf32> to vector<2x64xf32>
    %503 = vector.shape_cast %499 : vector<2x64xf32> to vector<1x2x64xf32>
    tpu.vector_store %arg13[%500, %c0_182, %c0_183], %503 {strides = array<i32>} : memref<8x2x64xf32, #tpu.memory_space<vmem>>, vector<1x2x64xf32>,
    %c7_i32_184 = arith.constant 7 : i32
    %504 = arith.index_cast %c7_i32_184 : i32 to index
    %c0_185 = arith.constant 0 : index
    %c0_186 = arith.constant 0 : index
    %505 = vector.load %arg11[%504, %c0_185, %c0_186] : memref<8x2x32xf32, #tpu.memory_space<vmem>>, vector<1x2x32xf32>
    %506 = vector.shape_cast %505 : vector<1x2x32xf32> to vector<2x32xf32>
    %cst_187 = arith.constant dense<0.000000e+00> : vector<2x64xf32>
    %507 = tpu.matmul %506, %403, %cst_187 {dimension_numbers = #tpu.dot_dimension_numbers<[1], [0], [0], [1], [0, 0, 1, 1], [], []>} : vector<2x32xf32>, vector<32x64xf32>, vector<2x64xf32> -> vector<2x64xf32>
    %508 = arith.index_cast %c7_i32_184 : i32 to index
    %c0_188 = arith.constant 0 : index
    %c0_189 = arith.constant 0 : index
    %509 = vector.load %arg12[%508, %c0_188, %c0_189] : memref<8x2x32xf32, #tpu.memory_space<vmem>>, vector<1x2x32xf32>
    %510 = vector.shape_cast %509 : vector<1x2x32xf32> to vector<2x32xf32>
    %cst_190 = arith.constant dense<0.000000e+00> : vector<2x64xf32>
    %511 = tpu.matmul %510, %404, %cst_190 {dimension_numbers = #tpu.dot_dimension_numbers<[1], [0], [0], [1], [0, 0, 1, 1], [], []>} : vector<2x32xf32>, vector<32x64xf32>, vector<2x64xf32> -> vector<2x64xf32>
    %512 = arith.addf %507, %511 : vector<2x64xf32>
    %513 = arith.addf %512, %405 : vector<2x64xf32>
    %514 = arith.index_cast %c7_i32_184 : i32 to index
    %c0_191 = arith.constant 0 : index
    %c0_192 = arith.constant 0 : index
    %515 = vector.load %arg13[%514, %c0_191, %c0_192] : memref<8x2x64xf32, #tpu.memory_space<vmem>>, vector<1x2x64xf32>
    %516 = vector.shape_cast %515 : vector<1x2x64xf32> to vector<2x64xf32>
    %517 = vector.shape_cast %513 : vector<2x64xf32> to vector<1x2x64xf32>
    tpu.vector_store %arg13[%514, %c0_191, %c0_192], %517 {strides = array<i32>} : memref<8x2x64xf32, #tpu.memory_space<vmem>>, vector<1x2x64xf32>,
    %c8_i32_193 = arith.constant 8 : i32
    %c0_194 = arith.constant 0 : index
    %c0_195 = arith.constant 0 : index
    %518 = vector.load %arg6[%c0_194, %c0_195] : memref<32x64xf32, #tpu.memory_space<vmem>>, vector<32x64xf32>
    %cst_196 = arith.constant 0.000000e+00 : f32
    %519 = vector.broadcast %cst_196 : f32 to vector<2x32xf32>
    %c0_i32_197 = arith.constant 0 : i32
    %520 = arith.index_cast %c0_i32_197 : i32 to index
    %c0_198 = arith.constant 0 : index
    %c0_199 = arith.constant 0 : index
    %521 = vector.load %arg13[%520, %c0_198, %c0_199] : memref<8x2x64xf32, #tpu.memory_space<vmem>>, vector<1x2x64xf32>
    %522 = vector.shape_cast %521 : vector<1x2x64xf32> to vector<2x64xf32>
    %cst_200 = arith.constant dense<0.000000e+00> : vector<2x64xf32>
    %523 = tpu.matmul %519, %518, %cst_200 {dimension_numbers = #tpu.dot_dimension_numbers<[1], [0], [0], [1], [0, 0, 1, 1], [], []>} : vector<2x32xf32>, vector<32x64xf32>, vector<2x64xf32> -> vector<2x64xf32>
    %524 = arith.addf %522, %523 : vector<2x64xf32>
    %525 = vector.extract_strided_slice %524 {offsets = [0, 0], sizes = [2, 32], strides = [1, 1]} : vector<2x64xf32> to vector<2x32xf32>
    %526 = vector.extract_strided_slice %524 {offsets = [0, 32], sizes = [2, 32], strides = [1, 1]} : vector<2x64xf32> to vector<2x32xf32>
    %527 = arith.index_cast %c0_i32_197 : i32 to index
    %c0_201 = arith.constant 0 : index
    %c0_202 = arith.constant 0 : index
    %528 = vector.load %arg8[%527, %c0_201, %c0_202] : memref<8x2x32xf32, #tpu.memory_space<vmem>>, vector<1x2x32xf32>
    %529 = vector.shape_cast %528 : vector<1x2x32xf32> to vector<2x32xf32>
    %cst_203 = arith.constant 5.000000e-01 : f32
    %530 = vector.broadcast %cst_203 : f32 to vector<2x32xf32>
    %531 = arith.mulf %530, %526 : vector<2x32xf32>
    %532 = math.exp %531 : vector<2x32xf32>
    %533 = arith.mulf %529, %532 : vector<2x32xf32>
    %534 = arith.addf %533, %525 : vector<2x32xf32>
    %535 = arith.index_cast %c0_i32_197 : i32 to index
    %c0_204 = arith.constant 0 : index
    %c0_205 = arith.constant 0 : index
    %536 = vector.load %arg9[%535, %c0_204, %c0_205] : memref<8x2x64xf32, #tpu.memory_space<vmem>>, vector<1x2x64xf32>
    %537 = vector.shape_cast %536 : vector<1x2x64xf32> to vector<2x64xf32>
    %538 = vector.shape_cast %524 : vector<2x64xf32> to vector<1x2x64xf32>
    tpu.vector_store %arg9[%535, %c0_204, %c0_205], %538 {strides = array<i32>} : memref<8x2x64xf32, #tpu.memory_space<vmem>>, vector<1x2x64xf32>,
    %539 = arith.index_cast %c0_i32_197 : i32 to index
    %c0_206 = arith.constant 0 : index
    %c0_207 = arith.constant 0 : index
    %540 = vector.load %arg10[%539, %c0_206, %c0_207] : memref<8x2x32xf32, #tpu.memory_space<vmem>>, vector<1x2x32xf32>
    %541 = vector.shape_cast %540 : vector<1x2x32xf32> to vector<2x32xf32>
    %542 = vector.shape_cast %534 : vector<2x32xf32> to vector<1x2x32xf32>
    tpu.vector_store %arg10[%539, %c0_206, %c0_207], %542 {strides = array<i32>} : memref<8x2x32xf32, #tpu.memory_space<vmem>>, vector<1x2x32xf32>,
    %c1_i32_208 = arith.constant 1 : i32
    %543 = arith.index_cast %c1_i32_208 : i32 to index
    %c0_209 = arith.constant 0 : index
    %c0_210 = arith.constant 0 : index
    %544 = vector.load %arg13[%543, %c0_209, %c0_210] : memref<8x2x64xf32, #tpu.memory_space<vmem>>, vector<1x2x64xf32>
    %545 = vector.shape_cast %544 : vector<1x2x64xf32> to vector<2x64xf32>
    %cst_211 = arith.constant dense<0.000000e+00> : vector<2x64xf32>
    %546 = tpu.matmul %534, %518, %cst_211 {dimension_numbers = #tpu.dot_dimension_numbers<[1], [0], [0], [1], [0, 0, 1, 1], [], []>} : vector<2x32xf32>, vector<32x64xf32>, vector<2x64xf32> -> vector<2x64xf32>
    %547 = arith.addf %545, %546 : vector<2x64xf32>
    %548 = vector.extract_strided_slice %547 {offsets = [0, 0], sizes = [2, 32], strides = [1, 1]} : vector<2x64xf32> to vector<2x32xf32>
    %549 = vector.extract_strided_slice %547 {offsets = [0, 32], sizes = [2, 32], strides = [1, 1]} : vector<2x64xf32> to vector<2x32xf32>
    %550 = arith.index_cast %c1_i32_208 : i32 to index
    %c0_212 = arith.constant 0 : index
    %c0_213 = arith.constant 0 : index
    %551 = vector.load %arg8[%550, %c0_212, %c0_213] : memref<8x2x32xf32, #tpu.memory_space<vmem>>, vector<1x2x32xf32>
    %552 = vector.shape_cast %551 : vector<1x2x32xf32> to vector<2x32xf32>
    %cst_214 = arith.constant 5.000000e-01 : f32
    %553 = vector.broadcast %cst_214 : f32 to vector<2x32xf32>
    %554 = arith.mulf %553, %549 : vector<2x32xf32>
    %555 = math.exp %554 : vector<2x32xf32>
    %556 = arith.mulf %552, %555 : vector<2x32xf32>
    %557 = arith.addf %556, %548 : vector<2x32xf32>
    %558 = arith.index_cast %c1_i32_208 : i32 to index
    %c0_215 = arith.constant 0 : index
    %c0_216 = arith.constant 0 : index
    %559 = vector.load %arg9[%558, %c0_215, %c0_216] : memref<8x2x64xf32, #tpu.memory_space<vmem>>, vector<1x2x64xf32>
    %560 = vector.shape_cast %559 : vector<1x2x64xf32> to vector<2x64xf32>
    %561 = vector.shape_cast %547 : vector<2x64xf32> to vector<1x2x64xf32>
    tpu.vector_store %arg9[%558, %c0_215, %c0_216], %561 {strides = array<i32>} : memref<8x2x64xf32, #tpu.memory_space<vmem>>, vector<1x2x64xf32>,
    %562 = arith.index_cast %c1_i32_208 : i32 to index
    %c0_217 = arith.constant 0 : index
    %c0_218 = arith.constant 0 : index
    %563 = vector.load %arg10[%562, %c0_217, %c0_218] : memref<8x2x32xf32, #tpu.memory_space<vmem>>, vector<1x2x32xf32>
    %564 = vector.shape_cast %563 : vector<1x2x32xf32> to vector<2x32xf32>
    %565 = vector.shape_cast %557 : vector<2x32xf32> to vector<1x2x32xf32>
    tpu.vector_store %arg10[%562, %c0_217, %c0_218], %565 {strides = array<i32>} : memref<8x2x32xf32, #tpu.memory_space<vmem>>, vector<1x2x32xf32>,
    %c2_i32_219 = arith.constant 2 : i32
    %566 = arith.index_cast %c2_i32_219 : i32 to index
    %c0_220 = arith.constant 0 : index
    %c0_221 = arith.constant 0 : index
    %567 = vector.load %arg13[%566, %c0_220, %c0_221] : memref<8x2x64xf32, #tpu.memory_space<vmem>>, vector<1x2x64xf32>
    %568 = vector.shape_cast %567 : vector<1x2x64xf32> to vector<2x64xf32>
    %cst_222 = arith.constant dense<0.000000e+00> : vector<2x64xf32>
    %569 = tpu.matmul %557, %518, %cst_222 {dimension_numbers = #tpu.dot_dimension_numbers<[1], [0], [0], [1], [0, 0, 1, 1], [], []>} : vector<2x32xf32>, vector<32x64xf32>, vector<2x64xf32> -> vector<2x64xf32>
    %570 = arith.addf %568, %569 : vector<2x64xf32>
    %571 = vector.extract_strided_slice %570 {offsets = [0, 0], sizes = [2, 32], strides = [1, 1]} : vector<2x64xf32> to vector<2x32xf32>
    %572 = vector.extract_strided_slice %570 {offsets = [0, 32], sizes = [2, 32], strides = [1, 1]} : vector<2x64xf32> to vector<2x32xf32>
    %573 = arith.index_cast %c2_i32_219 : i32 to index
    %c0_223 = arith.constant 0 : index
    %c0_224 = arith.constant 0 : index
    %574 = vector.load %arg8[%573, %c0_223, %c0_224] : memref<8x2x32xf32, #tpu.memory_space<vmem>>, vector<1x2x32xf32>
    %575 = vector.shape_cast %574 : vector<1x2x32xf32> to vector<2x32xf32>
    %cst_225 = arith.constant 5.000000e-01 : f32
    %576 = vector.broadcast %cst_225 : f32 to vector<2x32xf32>
    %577 = arith.mulf %576, %572 : vector<2x32xf32>
    %578 = math.exp %577 : vector<2x32xf32>
    %579 = arith.mulf %575, %578 : vector<2x32xf32>
    %580 = arith.addf %579, %571 : vector<2x32xf32>
    %581 = arith.index_cast %c2_i32_219 : i32 to index
    %c0_226 = arith.constant 0 : index
    %c0_227 = arith.constant 0 : index
    %582 = vector.load %arg9[%581, %c0_226, %c0_227] : memref<8x2x64xf32, #tpu.memory_space<vmem>>, vector<1x2x64xf32>
    %583 = vector.shape_cast %582 : vector<1x2x64xf32> to vector<2x64xf32>
    %584 = vector.shape_cast %570 : vector<2x64xf32> to vector<1x2x64xf32>
    tpu.vector_store %arg9[%581, %c0_226, %c0_227], %584 {strides = array<i32>} : memref<8x2x64xf32, #tpu.memory_space<vmem>>, vector<1x2x64xf32>,
    %585 = arith.index_cast %c2_i32_219 : i32 to index
    %c0_228 = arith.constant 0 : index
    %c0_229 = arith.constant 0 : index
    %586 = vector.load %arg10[%585, %c0_228, %c0_229] : memref<8x2x32xf32, #tpu.memory_space<vmem>>, vector<1x2x32xf32>
    %587 = vector.shape_cast %586 : vector<1x2x32xf32> to vector<2x32xf32>
    %588 = vector.shape_cast %580 : vector<2x32xf32> to vector<1x2x32xf32>
    tpu.vector_store %arg10[%585, %c0_228, %c0_229], %588 {strides = array<i32>} : memref<8x2x32xf32, #tpu.memory_space<vmem>>, vector<1x2x32xf32>,
    %c3_i32_230 = arith.constant 3 : i32
    %589 = arith.index_cast %c3_i32_230 : i32 to index
    %c0_231 = arith.constant 0 : index
    %c0_232 = arith.constant 0 : index
    %590 = vector.load %arg13[%589, %c0_231, %c0_232] : memref<8x2x64xf32, #tpu.memory_space<vmem>>, vector<1x2x64xf32>
    %591 = vector.shape_cast %590 : vector<1x2x64xf32> to vector<2x64xf32>
    %cst_233 = arith.constant dense<0.000000e+00> : vector<2x64xf32>
    %592 = tpu.matmul %580, %518, %cst_233 {dimension_numbers = #tpu.dot_dimension_numbers<[1], [0], [0], [1], [0, 0, 1, 1], [], []>} : vector<2x32xf32>, vector<32x64xf32>, vector<2x64xf32> -> vector<2x64xf32>
    %593 = arith.addf %591, %592 : vector<2x64xf32>
    %594 = vector.extract_strided_slice %593 {offsets = [0, 0], sizes = [2, 32], strides = [1, 1]} : vector<2x64xf32> to vector<2x32xf32>
    %595 = vector.extract_strided_slice %593 {offsets = [0, 32], sizes = [2, 32], strides = [1, 1]} : vector<2x64xf32> to vector<2x32xf32>
    %596 = arith.index_cast %c3_i32_230 : i32 to index
    %c0_234 = arith.constant 0 : index
    %c0_235 = arith.constant 0 : index
    %597 = vector.load %arg8[%596, %c0_234, %c0_235] : memref<8x2x32xf32, #tpu.memory_space<vmem>>, vector<1x2x32xf32>
    %598 = vector.shape_cast %597 : vector<1x2x32xf32> to vector<2x32xf32>
    %cst_236 = arith.constant 5.000000e-01 : f32
    %599 = vector.broadcast %cst_236 : f32 to vector<2x32xf32>
    %600 = arith.mulf %599, %595 : vector<2x32xf32>
    %601 = math.exp %600 : vector<2x32xf32>
    %602 = arith.mulf %598, %601 : vector<2x32xf32>
    %603 = arith.addf %602, %594 : vector<2x32xf32>
    %604 = arith.index_cast %c3_i32_230 : i32 to index
    %c0_237 = arith.constant 0 : index
    %c0_238 = arith.constant 0 : index
    %605 = vector.load %arg9[%604, %c0_237, %c0_238] : memref<8x2x64xf32, #tpu.memory_space<vmem>>, vector<1x2x64xf32>
    %606 = vector.shape_cast %605 : vector<1x2x64xf32> to vector<2x64xf32>
    %607 = vector.shape_cast %593 : vector<2x64xf32> to vector<1x2x64xf32>
    tpu.vector_store %arg9[%604, %c0_237, %c0_238], %607 {strides = array<i32>} : memref<8x2x64xf32, #tpu.memory_space<vmem>>, vector<1x2x64xf32>,
    %608 = arith.index_cast %c3_i32_230 : i32 to index
    %c0_239 = arith.constant 0 : index
    %c0_240 = arith.constant 0 : index
    %609 = vector.load %arg10[%608, %c0_239, %c0_240] : memref<8x2x32xf32, #tpu.memory_space<vmem>>, vector<1x2x32xf32>
    %610 = vector.shape_cast %609 : vector<1x2x32xf32> to vector<2x32xf32>
    %611 = vector.shape_cast %603 : vector<2x32xf32> to vector<1x2x32xf32>
    tpu.vector_store %arg10[%608, %c0_239, %c0_240], %611 {strides = array<i32>} : memref<8x2x32xf32, #tpu.memory_space<vmem>>, vector<1x2x32xf32>,
    %c4_i32_241 = arith.constant 4 : i32
    %612 = arith.index_cast %c4_i32_241 : i32 to index
    %c0_242 = arith.constant 0 : index
    %c0_243 = arith.constant 0 : index
    %613 = vector.load %arg13[%612, %c0_242, %c0_243] : memref<8x2x64xf32, #tpu.memory_space<vmem>>, vector<1x2x64xf32>
    %614 = vector.shape_cast %613 : vector<1x2x64xf32> to vector<2x64xf32>
    %cst_244 = arith.constant dense<0.000000e+00> : vector<2x64xf32>
    %615 = tpu.matmul %603, %518, %cst_244 {dimension_numbers = #tpu.dot_dimension_numbers<[1], [0], [0], [1], [0, 0, 1, 1], [], []>} : vector<2x32xf32>, vector<32x64xf32>, vector<2x64xf32> -> vector<2x64xf32>
    %616 = arith.addf %614, %615 : vector<2x64xf32>
    %617 = vector.extract_strided_slice %616 {offsets = [0, 0], sizes = [2, 32], strides = [1, 1]} : vector<2x64xf32> to vector<2x32xf32>
    %618 = vector.extract_strided_slice %616 {offsets = [0, 32], sizes = [2, 32], strides = [1, 1]} : vector<2x64xf32> to vector<2x32xf32>
    %619 = arith.index_cast %c4_i32_241 : i32 to index
    %c0_245 = arith.constant 0 : index
    %c0_246 = arith.constant 0 : index
    %620 = vector.load %arg8[%619, %c0_245, %c0_246] : memref<8x2x32xf32, #tpu.memory_space<vmem>>, vector<1x2x32xf32>
    %621 = vector.shape_cast %620 : vector<1x2x32xf32> to vector<2x32xf32>
    %cst_247 = arith.constant 5.000000e-01 : f32
    %622 = vector.broadcast %cst_247 : f32 to vector<2x32xf32>
    %623 = arith.mulf %622, %618 : vector<2x32xf32>
    %624 = math.exp %623 : vector<2x32xf32>
    %625 = arith.mulf %621, %624 : vector<2x32xf32>
    %626 = arith.addf %625, %617 : vector<2x32xf32>
    %627 = arith.index_cast %c4_i32_241 : i32 to index
    %c0_248 = arith.constant 0 : index
    %c0_249 = arith.constant 0 : index
    %628 = vector.load %arg9[%627, %c0_248, %c0_249] : memref<8x2x64xf32, #tpu.memory_space<vmem>>, vector<1x2x64xf32>
    %629 = vector.shape_cast %628 : vector<1x2x64xf32> to vector<2x64xf32>
    %630 = vector.shape_cast %616 : vector<2x64xf32> to vector<1x2x64xf32>
    tpu.vector_store %arg9[%627, %c0_248, %c0_249], %630 {strides = array<i32>} : memref<8x2x64xf32, #tpu.memory_space<vmem>>, vector<1x2x64xf32>,
    %631 = arith.index_cast %c4_i32_241 : i32 to index
    %c0_250 = arith.constant 0 : index
    %c0_251 = arith.constant 0 : index
    %632 = vector.load %arg10[%631, %c0_250, %c0_251] : memref<8x2x32xf32, #tpu.memory_space<vmem>>, vector<1x2x32xf32>
    %633 = vector.shape_cast %632 : vector<1x2x32xf32> to vector<2x32xf32>
    %634 = vector.shape_cast %626 : vector<2x32xf32> to vector<1x2x32xf32>
    tpu.vector_store %arg10[%631, %c0_250, %c0_251], %634 {strides = array<i32>} : memref<8x2x32xf32, #tpu.memory_space<vmem>>, vector<1x2x32xf32>,
    %c5_i32_252 = arith.constant 5 : i32
    %635 = arith.index_cast %c5_i32_252 : i32 to index
    %c0_253 = arith.constant 0 : index
    %c0_254 = arith.constant 0 : index
    %636 = vector.load %arg13[%635, %c0_253, %c0_254] : memref<8x2x64xf32, #tpu.memory_space<vmem>>, vector<1x2x64xf32>
    %637 = vector.shape_cast %636 : vector<1x2x64xf32> to vector<2x64xf32>
    %cst_255 = arith.constant dense<0.000000e+00> : vector<2x64xf32>
    %638 = tpu.matmul %626, %518, %cst_255 {dimension_numbers = #tpu.dot_dimension_numbers<[1], [0], [0], [1], [0, 0, 1, 1], [], []>} : vector<2x32xf32>, vector<32x64xf32>, vector<2x64xf32> -> vector<2x64xf32>
    %639 = arith.addf %637, %638 : vector<2x64xf32>
    %640 = vector.extract_strided_slice %639 {offsets = [0, 0], sizes = [2, 32], strides = [1, 1]} : vector<2x64xf32> to vector<2x32xf32>
    %641 = vector.extract_strided_slice %639 {offsets = [0, 32], sizes = [2, 32], strides = [1, 1]} : vector<2x64xf32> to vector<2x32xf32>
    %642 = arith.index_cast %c5_i32_252 : i32 to index
    %c0_256 = arith.constant 0 : index
    %c0_257 = arith.constant 0 : index
    %643 = vector.load %arg8[%642, %c0_256, %c0_257] : memref<8x2x32xf32, #tpu.memory_space<vmem>>, vector<1x2x32xf32>
    %644 = vector.shape_cast %643 : vector<1x2x32xf32> to vector<2x32xf32>
    %cst_258 = arith.constant 5.000000e-01 : f32
    %645 = vector.broadcast %cst_258 : f32 to vector<2x32xf32>
    %646 = arith.mulf %645, %641 : vector<2x32xf32>
    %647 = math.exp %646 : vector<2x32xf32>
    %648 = arith.mulf %644, %647 : vector<2x32xf32>
    %649 = arith.addf %648, %640 : vector<2x32xf32>
    %650 = arith.index_cast %c5_i32_252 : i32 to index
    %c0_259 = arith.constant 0 : index
    %c0_260 = arith.constant 0 : index
    %651 = vector.load %arg9[%650, %c0_259, %c0_260] : memref<8x2x64xf32, #tpu.memory_space<vmem>>, vector<1x2x64xf32>
    %652 = vector.shape_cast %651 : vector<1x2x64xf32> to vector<2x64xf32>
    %653 = vector.shape_cast %639 : vector<2x64xf32> to vector<1x2x64xf32>
    tpu.vector_store %arg9[%650, %c0_259, %c0_260], %653 {strides = array<i32>} : memref<8x2x64xf32, #tpu.memory_space<vmem>>, vector<1x2x64xf32>,
    %654 = arith.index_cast %c5_i32_252 : i32 to index
    %c0_261 = arith.constant 0 : index
    %c0_262 = arith.constant 0 : index
    %655 = vector.load %arg10[%654, %c0_261, %c0_262] : memref<8x2x32xf32, #tpu.memory_space<vmem>>, vector<1x2x32xf32>
    %656 = vector.shape_cast %655 : vector<1x2x32xf32> to vector<2x32xf32>
    %657 = vector.shape_cast %649 : vector<2x32xf32> to vector<1x2x32xf32>
    tpu.vector_store %arg10[%654, %c0_261, %c0_262], %657 {strides = array<i32>} : memref<8x2x32xf32, #tpu.memory_space<vmem>>, vector<1x2x32xf32>,
    %c6_i32_263 = arith.constant 6 : i32
    %658 = arith.index_cast %c6_i32_263 : i32 to index
    %c0_264 = arith.constant 0 : index
    %c0_265 = arith.constant 0 : index
    %659 = vector.load %arg13[%658, %c0_264, %c0_265] : memref<8x2x64xf32, #tpu.memory_space<vmem>>, vector<1x2x64xf32>
    %660 = vector.shape_cast %659 : vector<1x2x64xf32> to vector<2x64xf32>
    %cst_266 = arith.constant dense<0.000000e+00> : vector<2x64xf32>
    %661 = tpu.matmul %649, %518, %cst_266 {dimension_numbers = #tpu.dot_dimension_numbers<[1], [0], [0], [1], [0, 0, 1, 1], [], []>} : vector<2x32xf32>, vector<32x64xf32>, vector<2x64xf32> -> vector<2x64xf32>
    %662 = arith.addf %660, %661 : vector<2x64xf32>
    %663 = vector.extract_strided_slice %662 {offsets = [0, 0], sizes = [2, 32], strides = [1, 1]} : vector<2x64xf32> to vector<2x32xf32>
    %664 = vector.extract_strided_slice %662 {offsets = [0, 32], sizes = [2, 32], strides = [1, 1]} : vector<2x64xf32> to vector<2x32xf32>
    %665 = arith.index_cast %c6_i32_263 : i32 to index
    %c0_267 = arith.constant 0 : index
    %c0_268 = arith.constant 0 : index
    %666 = vector.load %arg8[%665, %c0_267, %c0_268] : memref<8x2x32xf32, #tpu.memory_space<vmem>>, vector<1x2x32xf32>
    %667 = vector.shape_cast %666 : vector<1x2x32xf32> to vector<2x32xf32>
    %cst_269 = arith.constant 5.000000e-01 : f32
    %668 = vector.broadcast %cst_269 : f32 to vector<2x32xf32>
    %669 = arith.mulf %668, %664 : vector<2x32xf32>
    %670 = math.exp %669 : vector<2x32xf32>
    %671 = arith.mulf %667, %670 : vector<2x32xf32>
    %672 = arith.addf %671, %663 : vector<2x32xf32>
    %673 = arith.index_cast %c6_i32_263 : i32 to index
    %c0_270 = arith.constant 0 : index
    %c0_271 = arith.constant 0 : index
    %674 = vector.load %arg9[%673, %c0_270, %c0_271] : memref<8x2x64xf32, #tpu.memory_space<vmem>>, vector<1x2x64xf32>
    %675 = vector.shape_cast %674 : vector<1x2x64xf32> to vector<2x64xf32>
    %676 = vector.shape_cast %662 : vector<2x64xf32> to vector<1x2x64xf32>
    tpu.vector_store %arg9[%673, %c0_270, %c0_271], %676 {strides = array<i32>} : memref<8x2x64xf32, #tpu.memory_space<vmem>>, vector<1x2x64xf32>,
    %677 = arith.index_cast %c6_i32_263 : i32 to index
    %c0_272 = arith.constant 0 : index
    %c0_273 = arith.constant 0 : index
    %678 = vector.load %arg10[%677, %c0_272, %c0_273] : memref<8x2x32xf32, #tpu.memory_space<vmem>>, vector<1x2x32xf32>
    %679 = vector.shape_cast %678 : vector<1x2x32xf32> to vector<2x32xf32>
    %680 = vector.shape_cast %672 : vector<2x32xf32> to vector<1x2x32xf32>
    tpu.vector_store %arg10[%677, %c0_272, %c0_273], %680 {strides = array<i32>} : memref<8x2x32xf32, #tpu.memory_space<vmem>>, vector<1x2x32xf32>,
    %c7_i32_274 = arith.constant 7 : i32
    %681 = arith.index_cast %c7_i32_274 : i32 to index
    %c0_275 = arith.constant 0 : index
    %c0_276 = arith.constant 0 : index
    %682 = vector.load %arg13[%681, %c0_275, %c0_276] : memref<8x2x64xf32, #tpu.memory_space<vmem>>, vector<1x2x64xf32>
    %683 = vector.shape_cast %682 : vector<1x2x64xf32> to vector<2x64xf32>
    %cst_277 = arith.constant dense<0.000000e+00> : vector<2x64xf32>
    %684 = tpu.matmul %672, %518, %cst_277 {dimension_numbers = #tpu.dot_dimension_numbers<[1], [0], [0], [1], [0, 0, 1, 1], [], []>} : vector<2x32xf32>, vector<32x64xf32>, vector<2x64xf32> -> vector<2x64xf32>
    %685 = arith.addf %683, %684 : vector<2x64xf32>
    %686 = vector.extract_strided_slice %685 {offsets = [0, 0], sizes = [2, 32], strides = [1, 1]} : vector<2x64xf32> to vector<2x32xf32>
    %687 = vector.extract_strided_slice %685 {offsets = [0, 32], sizes = [2, 32], strides = [1, 1]} : vector<2x64xf32> to vector<2x32xf32>
    %688 = arith.index_cast %c7_i32_274 : i32 to index
    %c0_278 = arith.constant 0 : index
    %c0_279 = arith.constant 0 : index
    %689 = vector.load %arg8[%688, %c0_278, %c0_279] : memref<8x2x32xf32, #tpu.memory_space<vmem>>, vector<1x2x32xf32>
    %690 = vector.shape_cast %689 : vector<1x2x32xf32> to vector<2x32xf32>
    %cst_280 = arith.constant 5.000000e-01 : f32
    %691 = vector.broadcast %cst_280 : f32 to vector<2x32xf32>
    %692 = arith.mulf %691, %687 : vector<2x32xf32>
    %693 = math.exp %692 : vector<2x32xf32>
    %694 = arith.mulf %690, %693 : vector<2x32xf32>
    %695 = arith.addf %694, %686 : vector<2x32xf32>
    %696 = arith.index_cast %c7_i32_274 : i32 to index
    %c0_281 = arith.constant 0 : index
    %c0_282 = arith.constant 0 : index
    %697 = vector.load %arg9[%696, %c0_281, %c0_282] : memref<8x2x64xf32, #tpu.memory_space<vmem>>, vector<1x2x64xf32>
    %698 = vector.shape_cast %697 : vector<1x2x64xf32> to vector<2x64xf32>
    %699 = vector.shape_cast %685 : vector<2x64xf32> to vector<1x2x64xf32>
    tpu.vector_store %arg9[%696, %c0_281, %c0_282], %699 {strides = array<i32>} : memref<8x2x64xf32, #tpu.memory_space<vmem>>, vector<1x2x64xf32>,
    %700 = arith.index_cast %c7_i32_274 : i32 to index
    %c0_283 = arith.constant 0 : index
    %c0_284 = arith.constant 0 : index
    %701 = vector.load %arg10[%700, %c0_283, %c0_284] : memref<8x2x32xf32, #tpu.memory_space<vmem>>, vector<1x2x32xf32>
    %702 = vector.shape_cast %701 : vector<1x2x32xf32> to vector<2x32xf32>
    %703 = vector.shape_cast %695 : vector<2x32xf32> to vector<1x2x32xf32>
    tpu.vector_store %arg10[%700, %c0_283, %c0_284], %703 {strides = array<i32>} : memref<8x2x32xf32, #tpu.memory_space<vmem>>, vector<1x2x32xf32>,
    %c8_i32_285 = arith.constant 8 : i32
    return
  }
}

</mosaic_0001>

<llo_original>
// kernel: tpu_custom_call.1
$region0: #{tpu_custom_call.1}
  #allocation0 [shape = 'u32[]', space=smem, size = 0x4, offset = 0x4, fixed_abs, tag = 'smem constant byte address 0x4 - core index']
  #allocation1 [shape = 'u32[144,128]{1,0:T(1,128)}', space=vmem, size = 0x12000, scoped, tag = 'internal scratch']
  #allocation2 [shape = 'f32[8,2,32]{2,1,0:T(2,128)}', space=vmem, size = 0x2000, scoped, tag = 'scratch operand']
  #allocation3 [shape = 'f32[8,2,32]{2,1,0:T(2,128)}', space=vmem, size = 0x2000, scoped, tag = 'scratch operand']
  #allocation4 [shape = 'f32[8,2,64]{2,1,0:T(2,128)}', space=vmem, size = 0x2000, scoped, tag = 'scratch operand']
  %s0 = inlined_call_operand.hbm [shape: f32[8,2,192], index: 0, kind: input, shape index: {}]
  %s1 = inlined_call_operand.hbm [shape: f32[8,2,64], index: 1, kind: input, shape index: {}]
  %s2 = inlined_call_operand.hbm [shape: f32[64,192], index: 2, kind: input, shape index: {}]
  %s3 = inlined_call_operand.vmem [shape: f32[2,192], index: 3, kind: input, shape index: {}]
  %s4 = inlined_call_operand.hbm [shape: f32[32,64], index: 4, kind: input, shape index: {}]
  %s5 = inlined_call_operand.hbm [shape: f32[32,64], index: 5, kind: input, shape index: {}]
  %s6 = inlined_call_operand.hbm [shape: f32[32,64], index: 6, kind: input, shape index: {}]
  %s7 = inlined_call_operand.vmem [shape: f32[2,64], index: 7, kind: input, shape index: {}]
  %s8 = inlined_call_operand.vmem [shape: f32[8,2,32], index: 8, kind: input, shape index: {}]
  %s9 = inlined_call_operand.hbm [shape: f32[8,2,64], index: 9, kind: output, shape index: {0}]
  %s10 = inlined_call_operand.hbm [shape: f32[8,2,32], index: 10, kind: output, shape index: {1}]
  %11 = xla_tuple %s9, %s10
  %s12 = sld [smem:[#allocation0]]
  $region78: #{tpu_custom_call.1} parent=0
    _
  %s14 = ssub.s32 1, %s12
  %s15 = scalar_select 0, %s14, %s12
  $region1: #{tpu_custom_call.1} parent=0
    #allocation5 [shape = 'u8[16384]{0}', space=vmem, size = 0x4000, scoped, tag = 'input window, operand 0, single buffered']
    #allocation6 [shape = 's32[1]{0}', space=sflag, size = 0x4, scoped, tag = 'scoped memory for tpu_custom_call.1']
    #allocation7 [shape = 's32[1]{0}', space=sflag, size = 0x4, scoped, tag = 'scoped memory for tpu_custom_call.1']
    #allocation8 [shape = 'u8[8192]{0}', space=vmem, size = 0x2000, scoped, tag = 'input window, operand 1, single buffered']
    #allocation9 [shape = 's32[1]{0}', space=sflag, size = 0x4, scoped, tag = 'scoped memory for tpu_custom_call.1']
    #allocation10 [shape = 'u8[65536]{0}', space=vmem, size = 0x10000, scoped, tag = 'input window, operand 2, single buffered']
    #allocation11 [shape = 'u8[16384]{0}', space=vmem, size = 0x4000, scoped, tag = 'input window, operand 4, single buffered']
    #allocation12 [shape = 's32[1]{0}', space=sflag, size = 0x4, scoped, tag = 'scoped memory for tpu_custom_call.1']
    #allocation13 [shape = 'u8[16384]{0}', space=vmem, size = 0x4000, scoped, tag = 'input window, operand 5, single buffered']
    #allocation14 [shape = 'u8[16384]{0}', space=vmem, size = 0x4000, scoped, tag = 'input window, operand 6, single buffered']
    #allocation15 [shape = 's32[1]{0}', space=sflag, size = 0x4, scoped, tag = 'scoped memory for tpu_custom_call.1']
    #allocation16 [shape = 'u8[8192]{0}', space=vmem, size = 0x2000, scoped, tag = 'output window, operand 0, single buffered']
    #allocation17 [shape = 'u8[8192]{0}', space=vmem, size = 0x2000, scoped, tag = 'output window, operand 1, single buffered']
    #allocation18 [shape = 's32[1]{0}', space=sflag, size = 0x4, scoped, tag = 'scoped memory for tpu_custom_call.1']
    %16 = vsyncpa [#allocation6], 0
    %17 = vsyncpa [#allocation9], 0
    %18 = vsyncpa [#allocation12], 0
    %19 = vsyncpa [#allocation15], 0
    %20 = vsyncpa [#allocation7], 0
    %21 = vsyncpa [#allocation18], 0
    // Predicated region
    $region2: #{tpu_custom_call.1} parent=1 // pred_check
      _
    $region3: #{tpu_custom_call.1} parent=1 // pred_check_branch
      %23 = sbr.rel (0) target = $region5
    $region4: #{tpu_custom_call.1} parent=1 // pred_region
      %s25 = ssub.s32 512, 512
      %26 = vsyncadd [#allocation6], %s25
      %s27 = sshll.u32 [#allocation5], 4
      %s28 = int_to_ptr.vmem [resolvable:$true] %s27
      %33 = dma.hbm_to_vmem [thread:$0]  %s0, 512, %s28, [#allocation6], 64, 64, 4
    $region5: #{tpu_custom_call.1} parent=1 // pred_fallthru
      _
    // Predicated region
    $region6: #{tpu_custom_call.1} parent=1 // pred_check
      _
    $region7: #{tpu_custom_call.1} parent=1 // pred_check_branch
      %35 = sbr.rel (0) target = $region9
    $region8: #{tpu_custom_call.1} parent=1 // pred_region
      %s37 = ssub.s32 256, 256
      %38 = vsyncadd [#allocation9], %s37
      %s39 = sshll.u32 [#allocation8], 4
      %s40 = int_to_ptr.vmem [resolvable:$true] %s39
      %45 = dma.hbm_to_vmem [thread:$0]  %s1, 256, %s40, [#allocation9], 32, 32, 2
    $region9: #{tpu_custom_call.1} parent=1 // pred_fallthru
      _
    // Predicated region
    $region10: #{tpu_custom_call.1} parent=1 // pred_check
      _
    $region11: #{tpu_custom_call.1} parent=1 // pred_check_branch
      %47 = sbr.rel (0) target = $region13
    $region12: #{tpu_custom_call.1} parent=1 // pred_region
      %s49 = ssub.s32 2048, 2048
      %50 = vsyncadd [#allocation9], %s49
      %s51 = sshll.u32 [#allocation10], 4
      %s52 = int_to_ptr.vmem [resolvable:$true] %s51
      %57 = dma.hbm_to_vmem [thread:$0]  %s2, 2048, %s52, [#allocation9], 256, 256, 16
    $region13: #{tpu_custom_call.1} parent=1 // pred_fallthru
      _
    // Predicated region
    $region14: #{tpu_custom_call.1} parent=1 // pred_check
      _
    $region15: #{tpu_custom_call.1} parent=1 // pred_check_branch
      %59 = sbr.rel (0) target = $region17
    $region16: #{tpu_custom_call.1} parent=1 // pred_region
      _
    $region17: #{tpu_custom_call.1} parent=1 // pred_fallthru
      _
    // Predicated region
    $region18: #{tpu_custom_call.1} parent=1 // pred_check
      _
    $region19: #{tpu_custom_call.1} parent=1 // pred_check_branch
      %61 = sbr.rel (0) target = $region21
    $region20: #{tpu_custom_call.1} parent=1 // pred_region
      %s63 = ssub.s32 512, 512
      %64 = vsyncadd [#allocation12], %s63
      %s65 = sshll.u32 [#allocation11], 4
      %s66 = int_to_ptr.vmem [resolvable:$true] %s65
      %71 = dma.hbm_to_vmem [thread:$0]  %s4, 512, %s66, [#allocation12], 128, 128, 8
    $region21: #{tpu_custom_call.1} parent=1 // pred_fallthru
      _
    // Predicated region
    $region22: #{tpu_custom_call.1} parent=1 // pred_check
      _
    $region23: #{tpu_custom_call.1} parent=1 // pred_check_branch
      %73 = sbr.rel (0) target = $region25
    $region24: #{tpu_custom_call.1} parent=1 // pred_region
      %s75 = ssub.s32 512, 512
      %76 = vsyncadd [#allocation12], %s75
      %s77 = sshll.u32 [#allocation13], 4
      %s78 = int_to_ptr.vmem [resolvable:$true] %s77
      %83 = dma.hbm_to_vmem [thread:$0]  %s5, 512, %s78, [#allocation12], 128, 128, 8
    $region25: #{tpu_custom_call.1} parent=1 // pred_fallthru
      _
    // Predicated region
    $region26: #{tpu_custom_call.1} parent=1 // pred_check
      _
    $region27: #{tpu_custom_call.1} parent=1 // pred_check_branch
      %85 = sbr.rel (0) target = $region29
    $region28: #{tpu_custom_call.1} parent=1 // pred_region
      %s87 = ssub.s32 512, 512
      %88 = vsyncadd [#allocation15], %s87
      %s89 = sshll.u32 [#allocation14], 4
      %s90 = int_to_ptr.vmem [resolvable:$true] %s89
      %95 = dma.hbm_to_vmem [thread:$0]  %s6, 512, %s90, [#allocation15], 128, 128, 8
    $region29: #{tpu_custom_call.1} parent=1 // pred_fallthru
      _
    // Predicated region
    $region30: #{tpu_custom_call.1} parent=1 // pred_check
      _
    $region31: #{tpu_custom_call.1} parent=1 // pred_check_branch
      %97 = sbr.rel (0) target = $region33
    $region32: #{tpu_custom_call.1} parent=1 // pred_region
      _
    $region33: #{tpu_custom_call.1} parent=1 // pred_fallthru
      _
    // Predicated region
    $region34: #{tpu_custom_call.1} parent=1 // pred_check
      _
    $region35: #{tpu_custom_call.1} parent=1 // pred_check_branch
      %99 = sbr.rel (0) target = $region37
    $region36: #{tpu_custom_call.1} parent=1 // pred_region
      _
    $region37: #{tpu_custom_call.1} parent=1 // pred_fallthru
      _
    // Predicated region
    $region38: #{tpu_custom_call.1} parent=1 // pred_check
      _
    $region39: #{tpu_custom_call.1} parent=1 // pred_check_branch
      %101 = sbr.rel (0) target = $region41
    $region40: #{tpu_custom_call.1} parent=1 // pred_region
      %102 = dma.done [#allocation6], 512
    $region41: #{tpu_custom_call.1} parent=1 // pred_fallthru
      _
    // Predicated region
    $region42: #{tpu_custom_call.1} parent=1 // pred_check
      _
    $region43: #{tpu_custom_call.1} parent=1 // pred_check_branch
      %104 = sbr.rel (0) target = $region45
    $region44: #{tpu_custom_call.1} parent=1 // pred_region
      %105 = dma.done [#allocation9], 256
    $region45: #{tpu_custom_call.1} parent=1 // pred_fallthru
      _
    // Predicated region
    $region46: #{tpu_custom_call.1} parent=1 // pred_check
      _
    $region47: #{tpu_custom_call.1} parent=1 // pred_check_branch
      %107 = sbr.rel (0) target = $region49
    $region48: #{tpu_custom_call.1} parent=1 // pred_region
      %108 = dma.done [#allocation9], 2048
    $region49: #{tpu_custom_call.1} parent=1 // pred_fallthru
      _
    // Predicated region
    $region50: #{tpu_custom_call.1} parent=1 // pred_check
      _
    $region51: #{tpu_custom_call.1} parent=1 // pred_check_branch
      %110 = sbr.rel (0) target = $region53
    $region52: #{tpu_custom_call.1} parent=1 // pred_region
      %111 = dma.done [#allocation12], 512
    $region53: #{tpu_custom_call.1} parent=1 // pred_fallthru
      _
    // Predicated region
    $region54: #{tpu_custom_call.1} parent=1 // pred_check
      _
    $region55: #{tpu_custom_call.1} parent=1 // pred_check_branch
      %113 = sbr.rel (0) target = $region57
    $region56: #{tpu_custom_call.1} parent=1 // pred_region
      %114 = dma.done [#allocation12], 512
    $region57: #{tpu_custom_call.1} parent=1 // pred_fallthru
      _
    // Predicated region
    $region58: #{tpu_custom_call.1} parent=1 // pred_check
      _
    $region59: #{tpu_custom_call.1} parent=1 // pred_check_branch
      %116 = sbr.rel (0) target = $region61
    $region60: #{tpu_custom_call.1} parent=1 // pred_region
      %117 = dma.done [#allocation15], 512
    $region61: #{tpu_custom_call.1} parent=1 // pred_fallthru
      _
    %v118 = vld [vmem:[#allocation10] sm:$0xff]
    %v119 = vld [vmem:[#allocation10 + $0x8] sm:$0xff]
    %v120 = vld [vmem:[#allocation10 + $0x10] sm:$0xff]
    %v121 = vld [vmem:[#allocation10 + $0x18] sm:$0xff]
    %v122 = vld [vmem:[#allocation10 + $0x20] sm:$0xff]
    %v123 = vld [vmem:[#allocation10 + $0x28] sm:$0xff]
    %v124 = vld [vmem:[#allocation10 + $0x30] sm:$0xff]
    %v125 = vld [vmem:[#allocation10 + $0x38] sm:$0xff]
    %v126 = vld [vmem:[#allocation10 + $0x40] sm:$0xff]
    %v127 = vld [vmem:[#allocation10 + $0x48] sm:$0xff]
    %v128 = vld [vmem:[#allocation10 + $0x50] sm:$0xff]
    %v129 = vld [vmem:[#allocation10 + $0x58] sm:$0xff]
    %v130 = vld [vmem:[#allocation10 + $0x60] sm:$0xff]
    %v131 = vld [vmem:[#allocation10 + $0x68] sm:$0xff]
    %v132 = vld [vmem:[#allocation10 + $0x70] sm:$0xff]
    %v133 = vld [vmem:[#allocation10 + $0x78] sm:$0xff]
    %v134 = vld [vmem:[%s3] sm:$0xf]
    %v137 = vunpack.c.l.s4 1983009808
    %v138 = vunpack.c.0.s8 %v137
    %v139 = vlaneseq
    %v140 = vshrl.u32 %v139, 7
    %v141 = vsub.s32 %v138, %v140
    %v142 = vrot.slane %v134, %v141
    %v143 = vcombine.high %v142, %v142
    %vm146 = vcmask 523264
    %v148 = vsel %vm146, 0.0, 0
    %150 = vmatprep.subr.mxu0 %v119
    %151 = vmatpush1.msra.mxu0 %v118
    %152 = vmatprep.subr.mxu0 %v121
    %153 = vmatpush1.msra.mxu0 %v120
    %154 = vmatprep.subr.mxu0 %v123
    %155 = vmatpush1.msra.mxu0 %v122
    %156 = vmatprep.subr.mxu0 %v125
    %157 = vmatpush1.msra.mxu0 %v124
    %158 = vmatprep.subr.mxu0 %v127
    %159 = vmatpush1.msra.mxu0 %v126
    %160 = vmatprep.subr.mxu0 %v129
    %161 = vmatpush1.msra.mxu0 %v128
    %162 = vmatprep.subr.mxu0 %v131
    %163 = vmatpush1.msra.mxu0 %v130
    %164 = vmatprep.subr.mxu0 %v133
    %165 = vmatpush1.msra.mxu0 %v132
    %166 = vmatprep.subr.mxu0 0.0
    %167 = vmatpush1.msra.mxu0 0.0
    %168 = vmatprep.subr.mxu0 0.0
    %169 = vmatpush1.msra.mxu0 0.0
    %170 = vmatprep.subr.mxu0 0.0
    %171 = vmatpush1.msra.mxu0 0.0
    %172 = vmatprep.subr.mxu0 0.0
    %173 = vmatpush1.msra.mxu0 0.0
    %174 = vmatprep.subr.mxu0 0.0
    %175 = vmatpush1.msra.mxu0 0.0
    %176 = vmatprep.subr.mxu0 0.0
    %177 = vmatpush1.msra.mxu0 0.0
    %178 = vmatprep.subr.mxu0 0.0
    %179 = vmatpush1.msra.mxu0 0.0
    %180 = vmatprep.subr.mxu0 0.0
    %181 = vmatpush1.msra.mxu0 0.0
    %182 = vmatprep.subr.mxu0 0.0
    %183 = vmatpush1.msra.mxu0 0.0
    %184 = vmatprep.subr.mxu0 0.0
    %185 = vmatpush1.msra.mxu0 0.0
    %186 = vmatprep.subr.mxu0 0.0
    %187 = vmatpush1.msra.mxu0 0.0
    %188 = vmatprep.subr.mxu0 0.0
    %189 = vmatpush1.msra.mxu0 0.0
    %190 = vmatprep.subr.mxu0 0.0
    %191 = vmatpush1.msra.mxu0 0.0
    %192 = vmatprep.subr.mxu0 0.0
    %193 = vmatpush1.msra.mxu0 0.0
    %194 = vmatprep.subr.mxu0 0.0
    %195 = vmatpush1.msra.mxu0 0.0
    %196 = vmatprep.subr.mxu0 0.0
    %197 = vmatpush1.msra.mxu0 0.0
    %198 = vmatprep.subr.mxu0 0.0
    %199 = vmatpush1.msra.mxu0 0.0
    %200 = vmatprep.subr.mxu0 0.0
    %201 = vmatpush1.msra.mxu0 0.0
    %202 = vmatprep.subr.mxu0 0.0
    %203 = vmatpush1.msra.mxu0 0.0
    %204 = vmatprep.subr.mxu0 0.0
    %205 = vmatpush1.msra.mxu0 0.0
    %206 = vmatprep.subr.mxu0 0.0
    %207 = vmatpush1.msra.mxu0 0.0
    %208 = vmatprep.subr.mxu0 0.0
    %209 = vmatpush1.msra.mxu0 0.0
    %210 = vmatprep.subr.mxu0 0.0
    %211 = vmatpush1.msra.mxu0 0.0
    %212 = vmatprep.subr.mxu0 0.0
    %213 = vmatpush1.msra.mxu0 0.0
    %214 = vmatprep.mubr.f32.mxu0 0.0
    %215 = vmatmul.mubr.f32.gmra.mrb[0].mxu0 %v148
    %v216 = vpop.f32.mrb[0].mxu0
    %v217 = vadd.f32 %v142, %v216
    %v218 = vpop.f32.mrb[0].mxu0
    %v219 = vadd.f32 %v143, %v218
    %220 = vdwg.mxu0
    %v221 = vld [vmem:[#allocation5] sm:$0xf]
    %v222 = vadd.f32 %v221, %v217
    %v223 = vxor.u32 %v222, 2147483648
    %v224 = vmul.f32 %v223, 1.442695
    %v225 = vpow.pop %v224
    %v226 = vadd.f32 %v225, 1.0
    %v227 = vrcp.pop %v226
    %v228 = vmul.f32 1.0, %v227
    %v229 = vmul.f32 %v228, %v219
    %v231 = vrot.slane %v221, 2
    %v233 = vadd.f32 %v231, %v229
    %v234 = vtanh.pop %v233
    %v235 = vsub.f32 1.0, %v228
    %237 = vrot.lane.b32.xlu0 %v234, 64
    %v238 = vpop.permute.xlu0 %237
    %v240 = vmul.f32 %v235, %v238
    %v241 = vmul.f32 %v228, 0.0
    %v242 = vadd.f32 %v240, %v241
    %v243 = vld [vmem:[#allocation8] sm:$0x3]
    %v246 = vunpack.c.l.s4 1983009808
    %v247 = vunpack.c.0.s8 %v246
    %v248 = vlaneseq
    %v249 = vshrl.u32 %v248, 7
    %v250 = vsub.s32 %v247, %v249
    %v251 = vrot.slane %v242, %v250
    %252 = vrot.lane.b32.xlu0 %v251, 64
    %v253 = vpop.permute.xlu0 %252
    %v255 = vmul.f32 %v243, %v253
    %vm256 = vcmask 254976
    %257 = vst.msk [vmem:[#allocation2] sm:$0x3] %vm256, %v255
    %259 = vrot.lane.b32.xlu0 %v255, 96
    %v260 = vpop.permute.xlu0 %259
    %s262 = scalar_lea.vmem [#allocation3], 14
    %263 = vst.msk [vmem:[%s262] sm:$0x3] %vm256, %v260
    %v264 = vsub.f32 1.0, %v243
    %v265 = vmul.f32 %v264, 0.0
    %v266 = vadd.f32 %v255, %v265
    %v268 = vsel %vm146, %v266, 0
    %270 = vmatprep.subr.mxu0 %v119
    %271 = vmatpush1.msra.mxu0 %v118
    %272 = vmatprep.subr.mxu0 %v121
    %273 = vmatpush1.msra.mxu0 %v120
    %274 = vmatprep.subr.mxu0 %v123
    %275 = vmatpush1.msra.mxu0 %v122
    %276 = vmatprep.subr.mxu0 %v125
    %277 = vmatpush1.msra.mxu0 %v124
    %278 = vmatprep.subr.mxu0 %v127
    %279 = vmatpush1.msra.mxu0 %v126
    %280 = vmatprep.subr.mxu0 %v129
    %281 = vmatpush1.msra.mxu0 %v128
    %282 = vmatprep.subr.mxu0 %v131
    %283 = vmatpush1.msra.mxu0 %v130
    %284 = vmatprep.subr.mxu0 %v133
    %285 = vmatpush1.msra.mxu0 %v132
    %286 = vmatprep.subr.mxu0 0.0
    %287 = vmatpush1.msra.mxu0 0.0
    %288 = vmatprep.subr.mxu0 0.0
    %289 = vmatpush1.msra.mxu0 0.0
    %290 = vmatprep.subr.mxu0 0.0
    %291 = vmatpush1.msra.mxu0 0.0
    %292 = vmatprep.subr.mxu0 0.0
    %293 = vmatpush1.msra.mxu0 0.0
    %294 = vmatprep.subr.mxu0 0.0
    %295 = vmatpush1.msra.mxu0 0.0
    %296 = vmatprep.subr.mxu0 0.0
    %297 = vmatpush1.msra.mxu0 0.0
    %298 = vmatprep.subr.mxu0 0.0
    %299 = vmatpush1.msra.mxu0 0.0
    %300 = vmatprep.subr.mxu0 0.0
    %301 = vmatpush1.msra.mxu0 0.0
    %302 = vmatprep.subr.mxu0 0.0
    %303 = vmatpush1.msra.mxu0 0.0
    %304 = vmatprep.subr.mxu0 0.0
    %305 = vmatpush1.msra.mxu0 0.0
    %306 = vmatprep.subr.mxu0 0.0
    %307 = vmatpush1.msra.mxu0 0.0
    %308 = vmatprep.subr.mxu0 0.0
    %309 = vmatpush1.msra.mxu0 0.0
    %310 = vmatprep.subr.mxu0 0.0
    %311 = vmatpush1.msra.mxu0 0.0
    %312 = vmatprep.subr.mxu0 0.0
    %313 = vmatpush1.msra.mxu0 0.0
    %314 = vmatprep.subr.mxu0 0.0
    %315 = vmatpush1.msra.mxu0 0.0
    %316 = vmatprep.subr.mxu0 0.0
    %317 = vmatpush1.msra.mxu0 0.0
    %318 = vmatprep.subr.mxu0 0.0
    %319 = vmatpush1.msra.mxu0 0.0
    %320 = vmatprep.subr.mxu0 0.0
    %321 = vmatpush1.msra.mxu0 0.0
    %322 = vmatprep.subr.mxu0 0.0
    %323 = vmatpush1.msra.mxu0 0.0
    %324 = vmatprep.subr.mxu0 0.0
    %325 = vmatpush1.msra.mxu0 0.0
    %326 = vmatprep.subr.mxu0 0.0
    %327 = vmatpush1.msra.mxu0 0.0
    %328 = vmatprep.subr.mxu0 0.0
    %329 = vmatpush1.msra.mxu0 0.0
    %330 = vmatprep.subr.mxu0 0.0
    %331 = vmatpush1.msra.mxu0 0.0
    %332 = vmatprep.subr.mxu0 0.0
    %333 = vmatpush1.msra.mxu0 0.0
    %334 = vmatprep.mubr.f32.mxu0 0.0
    %335 = vmatmul.mubr.f32.gmra.mrb[0].mxu0 %v268
    %v336 = vpop.f32.mrb[0].mxu0
    %v337 = vadd.f32 %v142, %v336
    %v338 = vpop.f32.mrb[0].mxu0
    %v339 = vadd.f32 %v143, %v338
    %340 = vdwg.mxu0
    %s341 = scalar_lea.vmem [#allocation5], 4
    %v342 = vld [vmem:[%s341] sm:$0xf]
    %v343 = vadd.f32 %v342, %v337
    %v344 = vxor.u32 %v343, 2147483648
    %v345 = vmul.f32 %v344, 1.442695
    %v346 = vpow.pop %v345
    %v347 = vadd.f32 %v346, 1.0
    %v348 = vrcp.pop %v347
    %v349 = vmul.f32 1.0, %v348
    %v350 = vmul.f32 %v349, %v339
    %v352 = vrot.slane %v342, 2
    %v354 = vadd.f32 %v352, %v350
    %v355 = vtanh.pop %v354
    %v356 = vsub.f32 1.0, %v349
    %358 = vrot.lane.b32.xlu0 %v355, 64
    %v359 = vpop.permute.xlu0 %358
    %v361 = vmul.f32 %v356, %v359
    %v363 = vunpack.c.l.s4 1983009808
    %v364 = vunpack.c.0.s8 %v363
    %v365 = vlaneseq
    %v366 = vshrl.u32 %v365, 7
    %v367 = vsub.s32 %v364, %v366
    %v368 = vrot.slane %v266, %v367
    %369 = vrot.lane.b32.xlu0 %v368, 64
    %v370 = vpop.permute.xlu0 %369
    %v372 = vmul.f32 %v349, %v370
    %v373 = vadd.f32 %v361, %v372
    %s374 = scalar_lea.vmem [#allocation8], 2
    %v375 = vld [vmem:[%s374] sm:$0x3]
    %v378 = vunpack.c.l.s4 1983009808
    %v379 = vunpack.c.0.s8 %v378
    %v380 = vlaneseq
    %v381 = vshrl.u32 %v380, 7
    %v382 = vsub.s32 %v379, %v381
    %v383 = vrot.slane %v373, %v382
    %384 = vrot.lane.b32.xlu0 %v383, 64
    %v385 = vpop.permute.xlu0 %384
    %v387 = vmul.f32 %v375, %v385
    %s388 = scalar_lea.vmem [#allocation2], 2
    %389 = vst.msk [vmem:[%s388] sm:$0x3] %vm256, %v387
    %391 = vrot.lane.b32.xlu0 %v387, 96
    %v392 = vpop.permute.xlu0 %391
    %s394 = scalar_lea.vmem [#allocation3], 12
    %395 = vst.msk [vmem:[%s394] sm:$0x3] %vm256, %v392
    %v396 = vsub.f32 1.0, %v375
    %v397 = vmul.f32 %v396, %v266
    %v398 = vadd.f32 %v387, %v397
    %v400 = vsel %vm146, %v398, 0
    %402 = vmatprep.subr.mxu0 %v119
    %403 = vmatpush1.msra.mxu0 %v118
    %404 = vmatprep.subr.mxu0 %v121
    %405 = vmatpush1.msra.mxu0 %v120
    %406 = vmatprep.subr.mxu0 %v123
    %407 = vmatpush1.msra.mxu0 %v122
    %408 = vmatprep.subr.mxu0 %v125
    %409 = vmatpush1.msra.mxu0 %v124
    %410 = vmatprep.subr.mxu0 %v127
    %411 = vmatpush1.msra.mxu0 %v126
    %412 = vmatprep.subr.mxu0 %v129
    %413 = vmatpush1.msra.mxu0 %v128
    %414 = vmatprep.subr.mxu0 %v131
    %415 = vmatpush1.msra.mxu0 %v130
    %416 = vmatprep.subr.mxu0 %v133
    %417 = vmatpush1.msra.mxu0 %v132
    %418 = vmatprep.subr.mxu0 0.0
    %419 = vmatpush1.msra.mxu0 0.0
    %420 = vmatprep.subr.mxu0 0.0
    %421 = vmatpush1.msra.mxu0 0.0
    %422 = vmatprep.subr.mxu0 0.0
    %423 = vmatpush1.msra.mxu0 0.0
    %424 = vmatprep.subr.mxu0 0.0
    %425 = vmatpush1.msra.mxu0 0.0
    %426 = vmatprep.subr.mxu0 0.0
    %427 = vmatpush1.msra.mxu0 0.0
    %428 = vmatprep.subr.mxu0 0.0
    %429 = vmatpush1.msra.mxu0 0.0
    %430 = vmatprep.subr.mxu0 0.0
    %431 = vmatpush1.msra.mxu0 0.0
    %432 = vmatprep.subr.mxu0 0.0
    %433 = vmatpush1.msra.mxu0 0.0
    %434 = vmatprep.subr.mxu0 0.0
    %435 = vmatpush1.msra.mxu0 0.0
    %436 = vmatprep.subr.mxu0 0.0
    %437 = vmatpush1.msra.mxu0 0.0
    %438 = vmatprep.subr.mxu0 0.0
    %439 = vmatpush1.msra.mxu0 0.0
    %440 = vmatprep.subr.mxu0 0.0
    %441 = vmatpush1.msra.mxu0 0.0
    %442 = vmatprep.subr.mxu0 0.0
    %443 = vmatpush1.msra.mxu0 0.0
    %444 = vmatprep.subr.mxu0 0.0
    %445 = vmatpush1.msra.mxu0 0.0
    %446 = vmatprep.subr.mxu0 0.0
    %447 = vmatpush1.msra.mxu0 0.0
    %448 = vmatprep.subr.mxu0 0.0
    %449 = vmatpush1.msra.mxu0 0.0
    %450 = vmatprep.subr.mxu0 0.0
    %451 = vmatpush1.msra.mxu0 0.0
    %452 = vmatprep.subr.mxu0 0.0
    %453 = vmatpush1.msra.mxu0 0.0
    %454 = vmatprep.subr.mxu0 0.0
    %455 = vmatpush1.msra.mxu0 0.0
    %456 = vmatprep.subr.mxu0 0.0
    %457 = vmatpush1.msra.mxu0 0.0
    %458 = vmatprep.subr.mxu0 0.0
    %459 = vmatpush1.msra.mxu0 0.0
    %460 = vmatprep.subr.mxu0 0.0
    %461 = vmatpush1.msra.mxu0 0.0
    %462 = vmatprep.subr.mxu0 0.0
    %463 = vmatpush1.msra.mxu0 0.0
    %464 = vmatprep.subr.mxu0 0.0
    %465 = vmatpush1.msra.mxu0 0.0
    %466 = vmatprep.mubr.f32.mxu0 0.0
    %467 = vmatmul.mubr.f32.gmra.mrb[0].mxu0 %v400
    %v468 = vpop.f32.mrb[0].mxu0
    %v469 = vadd.f32 %v142, %v468
    %v470 = vpop.f32.mrb[0].mxu0
    %v471 = vadd.f32 %v143, %v470
    %472 = vdwg.mxu0
    %s473 = scalar_lea.vmem [#allocation5], 8
    %v474 = vld [vmem:[%s473] sm:$0xf]
    %v475 = vadd.f32 %v474, %v469
    %v476 = vxor.u32 %v475, 2147483648
    %v477 = vmul.f32 %v476, 1.442695
    %v478 = vpow.pop %v477
    %v479 = vadd.f32 %v478, 1.0
    %v480 = vrcp.pop %v479
    %v481 = vmul.f32 1.0, %v480
    %v482 = vmul.f32 %v481, %v471
    %v484 = vrot.slane %v474, 2
    %v486 = vadd.f32 %v484, %v482
    %v487 = vtanh.pop %v486
    %v488 = vsub.f32 1.0, %v481
    %490 = vrot.lane.b32.xlu0 %v487, 64
    %v491 = vpop.permute.xlu0 %490
    %v493 = vmul.f32 %v488, %v491
    %v495 = vunpack.c.l.s4 1983009808
    %v496 = vunpack.c.0.s8 %v495
    %v497 = vlaneseq
    %v498 = vshrl.u32 %v497, 7
    %v499 = vsub.s32 %v496, %v498
    %v500 = vrot.slane %v398, %v499
    %501 = vrot.lane.b32.xlu0 %v500, 64
    %v502 = vpop.permute.xlu0 %501
    %v504 = vmul.f32 %v481, %v502
    %v505 = vadd.f32 %v493, %v504
    %s506 = scalar_lea.vmem [#allocation8], 4
    %v507 = vld [vmem:[%s506] sm:$0x3]
    %v510 = vunpack.c.l.s4 1983009808
    %v511 = vunpack.c.0.s8 %v510
    %v512 = vlaneseq
    %v513 = vshrl.u32 %v512, 7
    %v514 = vsub.s32 %v511, %v513
    %v515 = vrot.slane %v505, %v514
    %516 = vrot.lane.b32.xlu0 %v515, 64
    %v517 = vpop.permute.xlu0 %516
    %v519 = vmul.f32 %v507, %v517
    %s520 = scalar_lea.vmem [#allocation2], 4
    %521 = vst.msk [vmem:[%s520] sm:$0x3] %vm256, %v519
    %523 = vrot.lane.b32.xlu0 %v519, 96
    %v524 = vpop.permute.xlu0 %523
    %s526 = scalar_lea.vmem [#allocation3], 10
    %527 = vst.msk [vmem:[%s526] sm:$0x3] %vm256, %v524
    %v528 = vsub.f32 1.0, %v507
    %v529 = vmul.f32 %v528, %v398
    %v530 = vadd.f32 %v519, %v529
    %v532 = vsel %vm146, %v530, 0
    %534 = vmatprep.subr.mxu0 %v119
    %535 = vmatpush1.msra.mxu0 %v118
    %536 = vmatprep.subr.mxu0 %v121
    %537 = vmatpush1.msra.mxu0 %v120
    %538 = vmatprep.subr.mxu0 %v123
    %539 = vmatpush1.msra.mxu0 %v122
    %540 = vmatprep.subr.mxu0 %v125
    %541 = vmatpush1.msra.mxu0 %v124
    %542 = vmatprep.subr.mxu0 %v127
    %543 = vmatpush1.msra.mxu0 %v126
    %544 = vmatprep.subr.mxu0 %v129
    %545 = vmatpush1.msra.mxu0 %v128
    %546 = vmatprep.subr.mxu0 %v131
    %547 = vmatpush1.msra.mxu0 %v130
    %548 = vmatprep.subr.mxu0 %v133
    %549 = vmatpush1.msra.mxu0 %v132
    %550 = vmatprep.subr.mxu0 0.0
    %551 = vmatpush1.msra.mxu0 0.0
    %552 = vmatprep.subr.mxu0 0.0
    %553 = vmatpush1.msra.mxu0 0.0
    %554 = vmatprep.subr.mxu0 0.0
    %555 = vmatpush1.msra.mxu0 0.0
    %556 = vmatprep.subr.mxu0 0.0
    %557 = vmatpush1.msra.mxu0 0.0
    %558 = vmatprep.subr.mxu0 0.0
    %559 = vmatpush1.msra.mxu0 0.0
    %560 = vmatprep.subr.mxu0 0.0
    %561 = vmatpush1.msra.mxu0 0.0
    %562 = vmatprep.subr.mxu0 0.0
    %563 = vmatpush1.msra.mxu0 0.0
    %564 = vmatprep.subr.mxu0 0.0
    %565 = vmatpush1.msra.mxu0 0.0
    %566 = vmatprep.subr.mxu0 0.0
    %567 = vmatpush1.msra.mxu0 0.0
    %568 = vmatprep.subr.mxu0 0.0
    %569 = vmatpush1.msra.mxu0 0.0
    %570 = vmatprep.subr.mxu0 0.0
    %571 = vmatpush1.msra.mxu0 0.0
    %572 = vmatprep.subr.mxu0 0.0
    %573 = vmatpush1.msra.mxu0 0.0
    %574 = vmatprep.subr.mxu0 0.0
    %575 = vmatpush1.msra.mxu0 0.0
    %576 = vmatprep.subr.mxu0 0.0
    %577 = vmatpush1.msra.mxu0 0.0
    %578 = vmatprep.subr.mxu0 0.0
    %579 = vmatpush1.msra.mxu0 0.0
    %580 = vmatprep.subr.mxu0 0.0
    %581 = vmatpush1.msra.mxu0 0.0
    %582 = vmatprep.subr.mxu0 0.0
    %583 = vmatpush1.msra.mxu0 0.0
    %584 = vmatprep.subr.mxu0 0.0
    %585 = vmatpush1.msra.mxu0 0.0
    %586 = vmatprep.subr.mxu0 0.0
    %587 = vmatpush1.msra.mxu0 0.0
    %588 = vmatprep.subr.mxu0 0.0
    %589 = vmatpush1.msra.mxu0 0.0
    %590 = vmatprep.subr.mxu0 0.0
    %591 = vmatpush1.msra.mxu0 0.0
    %592 = vmatprep.subr.mxu0 0.0
    %593 = vmatpush1.msra.mxu0 0.0
    %594 = vmatprep.subr.mxu0 0.0
    %595 = vmatpush1.msra.mxu0 0.0
    %596 = vmatprep.subr.mxu0 0.0
    %597 = vmatpush1.msra.mxu0 0.0
    %598 = vmatprep.mubr.f32.mxu0 0.0
    %599 = vmatmul.mubr.f32.gmra.mrb[0].mxu0 %v532
    %v600 = vpop.f32.mrb[0].mxu0
    %v601 = vadd.f32 %v142, %v600
    %v602 = vpop.f32.mrb[0].mxu0
    %v603 = vadd.f32 %v143, %v602
    %604 = vdwg.mxu0
    %s605 = scalar_lea.vmem [#allocation5], 12
    %v606 = vld [vmem:[%s605] sm:$0xf]
    %v607 = vadd.f32 %v606, %v601
    %v608 = vxor.u32 %v607, 2147483648
    %v609 = vmul.f32 %v608, 1.442695
    %v610 = vpow.pop %v609
    %v611 = vadd.f32 %v610, 1.0
    %v612 = vrcp.pop %v611
    %v613 = vmul.f32 1.0, %v612
    %v614 = vmul.f32 %v613, %v603
    %v616 = vrot.slane %v606, 2
    %v618 = vadd.f32 %v616, %v614
    %v619 = vtanh.pop %v618
    %v620 = vsub.f32 1.0, %v613
    %622 = vrot.lane.b32.xlu0 %v619, 64
    %v623 = vpop.permute.xlu0 %622
    %v625 = vmul.f32 %v620, %v623
    %v627 = vunpack.c.l.s4 1983009808
    %v628 = vunpack.c.0.s8 %v627
    %v629 = vlaneseq
    %v630 = vshrl.u32 %v629, 7
    %v631 = vsub.s32 %v628, %v630
    %v632 = vrot.slane %v530, %v631
    %633 = vrot.lane.b32.xlu0 %v632, 64
    %v634 = vpop.permute.xlu0 %633
    %v636 = vmul.f32 %v613, %v634
    %v637 = vadd.f32 %v625, %v636
    %s638 = scalar_lea.vmem [#allocation8], 6
    %v639 = vld [vmem:[%s638] sm:$0x3]
    %v642 = vunpack.c.l.s4 1983009808
    %v643 = vunpack.c.0.s8 %v642
    %v644 = vlaneseq
    %v645 = vshrl.u32 %v644, 7
    %v646 = vsub.s32 %v643, %v645
    %v647 = vrot.slane %v637, %v646
    %648 = vrot.lane.b32.xlu0 %v647, 64
    %v649 = vpop.permute.xlu0 %648
    %v651 = vmul.f32 %v639, %v649
    %s652 = scalar_lea.vmem [#allocation2], 6
    %653 = vst.msk [vmem:[%s652] sm:$0x3] %vm256, %v651
    %655 = vrot.lane.b32.xlu0 %v651, 96
    %v656 = vpop.permute.xlu0 %655
    %s658 = scalar_lea.vmem [#allocation3], 8
    %659 = vst.msk [vmem:[%s658] sm:$0x3] %vm256, %v656
    %v660 = vsub.f32 1.0, %v639
    %v661 = vmul.f32 %v660, %v530
    %v662 = vadd.f32 %v651, %v661
    %v664 = vsel %vm146, %v662, 0
    %666 = vmatprep.subr.mxu0 %v119
    %667 = vmatpush1.msra.mxu0 %v118
    %668 = vmatprep.subr.mxu0 %v121
    %669 = vmatpush1.msra.mxu0 %v120
    %670 = vmatprep.subr.mxu0 %v123
    %671 = vmatpush1.msra.mxu0 %v122
    %672 = vmatprep.subr.mxu0 %v125
    %673 = vmatpush1.msra.mxu0 %v124
    %674 = vmatprep.subr.mxu0 %v127
    %675 = vmatpush1.msra.mxu0 %v126
    %676 = vmatprep.subr.mxu0 %v129
    %677 = vmatpush1.msra.mxu0 %v128
    %678 = vmatprep.subr.mxu0 %v131
    %679 = vmatpush1.msra.mxu0 %v130
    %680 = vmatprep.subr.mxu0 %v133
    %681 = vmatpush1.msra.mxu0 %v132
    %682 = vmatprep.subr.mxu0 0.0
    %683 = vmatpush1.msra.mxu0 0.0
    %684 = vmatprep.subr.mxu0 0.0
    %685 = vmatpush1.msra.mxu0 0.0
    %686 = vmatprep.subr.mxu0 0.0
    %687 = vmatpush1.msra.mxu0 0.0
    %688 = vmatprep.subr.mxu0 0.0
    %689 = vmatpush1.msra.mxu0 0.0
    %690 = vmatprep.subr.mxu0 0.0
    %691 = vmatpush1.msra.mxu0 0.0
    %692 = vmatprep.subr.mxu0 0.0
    %693 = vmatpush1.msra.mxu0 0.0
    %694 = vmatprep.subr.mxu0 0.0
    %695 = vmatpush1.msra.mxu0 0.0
    %696 = vmatprep.subr.mxu0 0.0
    %697 = vmatpush1.msra.mxu0 0.0
    %698 = vmatprep.subr.mxu0 0.0
    %699 = vmatpush1.msra.mxu0 0.0
    %700 = vmatprep.subr.mxu0 0.0
    %701 = vmatpush1.msra.mxu0 0.0
    %702 = vmatprep.subr.mxu0 0.0
    %703 = vmatpush1.msra.mxu0 0.0
    %704 = vmatprep.subr.mxu0 0.0
    %705 = vmatpush1.msra.mxu0 0.0
    %706 = vmatprep.subr.mxu0 0.0
    %707 = vmatpush1.msra.mxu0 0.0
    %708 = vmatprep.subr.mxu0 0.0
    %709 = vmatpush1.msra.mxu0 0.0
    %710 = vmatprep.subr.mxu0 0.0
    %711 = vmatpush1.msra.mxu0 0.0
    %712 = vmatprep.subr.mxu0 0.0
    %713 = vmatpush1.msra.mxu0 0.0
    %714 = vmatprep.subr.mxu0 0.0
    %715 = vmatpush1.msra.mxu0 0.0
    %716 = vmatprep.subr.mxu0 0.0
    %717 = vmatpush1.msra.mxu0 0.0
    %718 = vmatprep.subr.mxu0 0.0
    %719 = vmatpush1.msra.mxu0 0.0
    %720 = vmatprep.subr.mxu0 0.0
    %721 = vmatpush1.msra.mxu0 0.0
    %722 = vmatprep.subr.mxu0 0.0
    %723 = vmatpush1.msra.mxu0 0.0
    %724 = vmatprep.subr.mxu0 0.0
    %725 = vmatpush1.msra.mxu0 0.0
    %726 = vmatprep.subr.mxu0 0.0
    %727 = vmatpush1.msra.mxu0 0.0
    %728 = vmatprep.subr.mxu0 0.0
    %729 = vmatpush1.msra.mxu0 0.0
    %730 = vmatprep.mubr.f32.mxu0 0.0
    %731 = vmatmul.mubr.f32.gmra.mrb[0].mxu0 %v664
    %v732 = vpop.f32.mrb[0].mxu0
    %v733 = vadd.f32 %v142, %v732
    %v734 = vpop.f32.mrb[0].mxu0
    %v735 = vadd.f32 %v143, %v734
    %736 = vdwg.mxu0
    %s737 = scalar_lea.vmem [#allocation5], 16
    %v738 = vld [vmem:[%s737] sm:$0xf]
    %v739 = vadd.f32 %v738, %v733
    %v740 = vxor.u32 %v739, 2147483648
    %v741 = vmul.f32 %v740, 1.442695
    %v742 = vpow.pop %v741
    %v743 = vadd.f32 %v742, 1.0
    %v744 = vrcp.pop %v743
    %v745 = vmul.f32 1.0, %v744
    %v746 = vmul.f32 %v745, %v735
    %v748 = vrot.slane %v738, 2
    %v750 = vadd.f32 %v748, %v746
    %v751 = vtanh.pop %v750
    %v752 = vsub.f32 1.0, %v745
    %754 = vrot.lane.b32.xlu0 %v751, 64
    %v755 = vpop.permute.xlu0 %754
    %v757 = vmul.f32 %v752, %v755
    %v759 = vunpack.c.l.s4 1983009808
    %v760 = vunpack.c.0.s8 %v759
    %v761 = vlaneseq
    %v762 = vshrl.u32 %v761, 7
    %v763 = vsub.s32 %v760, %v762
    %v764 = vrot.slane %v662, %v763
    %765 = vrot.lane.b32.xlu0 %v764, 64
    %v766 = vpop.permute.xlu0 %765
    %v768 = vmul.f32 %v745, %v766
    %v769 = vadd.f32 %v757, %v768
    %s770 = scalar_lea.vmem [#allocation8], 8
    %v771 = vld [vmem:[%s770] sm:$0x3]
    %v774 = vunpack.c.l.s4 1983009808
    %v775 = vunpack.c.0.s8 %v774
    %v776 = vlaneseq
    %v777 = vshrl.u32 %v776, 7
    %v778 = vsub.s32 %v775, %v777
    %v779 = vrot.slane %v769, %v778
    %780 = vrot.lane.b32.xlu0 %v779, 64
    %v781 = vpop.permute.xlu0 %780
    %v783 = vmul.f32 %v771, %v781
    %s784 = scalar_lea.vmem [#allocation2], 8
    %785 = vst.msk [vmem:[%s784] sm:$0x3] %vm256, %v783
    %787 = vrot.lane.b32.xlu0 %v783, 96
    %v788 = vpop.permute.xlu0 %787
    %s790 = scalar_lea.vmem [#allocation3], 6
    %791 = vst.msk [vmem:[%s790] sm:$0x3] %vm256, %v788
    %v792 = vsub.f32 1.0, %v771
    %v793 = vmul.f32 %v792, %v662
    %v794 = vadd.f32 %v783, %v793
    %v796 = vsel %vm146, %v794, 0
    %798 = vmatprep.subr.mxu0 %v119
    %799 = vmatpush1.msra.mxu0 %v118
    %800 = vmatprep.subr.mxu0 %v121
    %801 = vmatpush1.msra.mxu0 %v120
    %802 = vmatprep.subr.mxu0 %v123
    %803 = vmatpush1.msra.mxu0 %v122
    %804 = vmatprep.subr.mxu0 %v125
    %805 = vmatpush1.msra.mxu0 %v124
    %806 = vmatprep.subr.mxu0 %v127
    %807 = vmatpush1.msra.mxu0 %v126
    %808 = vmatprep.subr.mxu0 %v129
    %809 = vmatpush1.msra.mxu0 %v128
    %810 = vmatprep.subr.mxu0 %v131
    %811 = vmatpush1.msra.mxu0 %v130
    %812 = vmatprep.subr.mxu0 %v133
    %813 = vmatpush1.msra.mxu0 %v132
    %814 = vmatprep.subr.mxu0 0.0
    %815 = vmatpush1.msra.mxu0 0.0
    %816 = vmatprep.subr.mxu0 0.0
    %817 = vmatpush1.msra.mxu0 0.0
    %818 = vmatprep.subr.mxu0 0.0
    %819 = vmatpush1.msra.mxu0 0.0
    %820 = vmatprep.subr.mxu0 0.0
    %821 = vmatpush1.msra.mxu0 0.0
    %822 = vmatprep.subr.mxu0 0.0
    %823 = vmatpush1.msra.mxu0 0.0
    %824 = vmatprep.subr.mxu0 0.0
    %825 = vmatpush1.msra.mxu0 0.0
    %826 = vmatprep.subr.mxu0 0.0
    %827 = vmatpush1.msra.mxu0 0.0
    %828 = vmatprep.subr.mxu0 0.0
    %829 = vmatpush1.msra.mxu0 0.0
    %830 = vmatprep.subr.mxu0 0.0
    %831 = vmatpush1.msra.mxu0 0.0
    %832 = vmatprep.subr.mxu0 0.0
    %833 = vmatpush1.msra.mxu0 0.0
    %834 = vmatprep.subr.mxu0 0.0
    %835 = vmatpush1.msra.mxu0 0.0
    %836 = vmatprep.subr.mxu0 0.0
    %837 = vmatpush1.msra.mxu0 0.0
    %838 = vmatprep.subr.mxu0 0.0
    %839 = vmatpush1.msra.mxu0 0.0
    %840 = vmatprep.subr.mxu0 0.0
    %841 = vmatpush1.msra.mxu0 0.0
    %842 = vmatprep.subr.mxu0 0.0
    %843 = vmatpush1.msra.mxu0 0.0
    %844 = vmatprep.subr.mxu0 0.0
    %845 = vmatpush1.msra.mxu0 0.0
    %846 = vmatprep.subr.mxu0 0.0
    %847 = vmatpush1.msra.mxu0 0.0
    %848 = vmatprep.subr.mxu0 0.0
    %849 = vmatpush1.msra.mxu0 0.0
    %850 = vmatprep.subr.mxu0 0.0
    %851 = vmatpush1.msra.mxu0 0.0
    %852 = vmatprep.subr.mxu0 0.0
    %853 = vmatpush1.msra.mxu0 0.0
    %854 = vmatprep.subr.mxu0 0.0
    %855 = vmatpush1.msra.mxu0 0.0
    %856 = vmatprep.subr.mxu0 0.0
    %857 = vmatpush1.msra.mxu0 0.0
    %858 = vmatprep.subr.mxu0 0.0
    %859 = vmatpush1.msra.mxu0 0.0
    %860 = vmatprep.subr.mxu0 0.0
    %861 = vmatpush1.msra.mxu0 0.0
    %862 = vmatprep.mubr.f32.mxu0 0.0
    %863 = vmatmul.mubr.f32.gmra.mrb[0].mxu0 %v796
    %v864 = vpop.f32.mrb[0].mxu0
    %v865 = vadd.f32 %v142, %v864
    %v866 = vpop.f32.mrb[0].mxu0
    %v867 = vadd.f32 %v143, %v866
    %868 = vdwg.mxu0
    %s869 = scalar_lea.vmem [#allocation5], 20
    %v870 = vld [vmem:[%s869] sm:$0xf]
    %v871 = vadd.f32 %v870, %v865
    %v872 = vxor.u32 %v871, 2147483648
    %v873 = vmul.f32 %v872, 1.442695
    %v874 = vpow.pop %v873
    %v875 = vadd.f32 %v874, 1.0
    %v876 = vrcp.pop %v875
    %v877 = vmul.f32 1.0, %v876
    %v878 = vmul.f32 %v877, %v867
    %v880 = vrot.slane %v870, 2
    %v882 = vadd.f32 %v880, %v878
    %v883 = vtanh.pop %v882
    %v884 = vsub.f32 1.0, %v877
    %886 = vrot.lane.b32.xlu0 %v883, 64
    %v887 = vpop.permute.xlu0 %886
    %v889 = vmul.f32 %v884, %v887
    %v891 = vunpack.c.l.s4 1983009808
    %v892 = vunpack.c.0.s8 %v891
    %v893 = vlaneseq
    %v894 = vshrl.u32 %v893, 7
    %v895 = vsub.s32 %v892, %v894
    %v896 = vrot.slane %v794, %v895
    %897 = vrot.lane.b32.xlu0 %v896, 64
    %v898 = vpop.permute.xlu0 %897
    %v900 = vmul.f32 %v877, %v898
    %v901 = vadd.f32 %v889, %v900
    %s902 = scalar_lea.vmem [#allocation8], 10
    %v903 = vld [vmem:[%s902] sm:$0x3]
    %v906 = vunpack.c.l.s4 1983009808
    %v907 = vunpack.c.0.s8 %v906
    %v908 = vlaneseq
    %v909 = vshrl.u32 %v908, 7
    %v910 = vsub.s32 %v907, %v909
    %v911 = vrot.slane %v901, %v910
    %912 = vrot.lane.b32.xlu0 %v911, 64
    %v913 = vpop.permute.xlu0 %912
    %v915 = vmul.f32 %v903, %v913
    %s916 = scalar_lea.vmem [#allocation2], 10
    %917 = vst.msk [vmem:[%s916] sm:$0x3] %vm256, %v915
    %919 = vrot.lane.b32.xlu0 %v915, 96
    %v920 = vpop.permute.xlu0 %919
    %s922 = scalar_lea.vmem [#allocation3], 4
    %923 = vst.msk [vmem:[%s922] sm:$0x3] %vm256, %v920
    %v924 = vsub.f32 1.0, %v903
    %v925 = vmul.f32 %v924, %v794
    %v926 = vadd.f32 %v915, %v925
    %v928 = vsel %vm146, %v926, 0
    %930 = vmatprep.subr.mxu0 %v119
    %931 = vmatpush1.msra.mxu0 %v118
    %932 = vmatprep.subr.mxu0 %v121
    %933 = vmatpush1.msra.mxu0 %v120
    %934 = vmatprep.subr.mxu0 %v123
    %935 = vmatpush1.msra.mxu0 %v122
    %936 = vmatprep.subr.mxu0 %v125
    %937 = vmatpush1.msra.mxu0 %v124
    %938 = vmatprep.subr.mxu0 %v127
    %939 = vmatpush1.msra.mxu0 %v126
    %940 = vmatprep.subr.mxu0 %v129
    %941 = vmatpush1.msra.mxu0 %v128
    %942 = vmatprep.subr.mxu0 %v131
    %943 = vmatpush1.msra.mxu0 %v130
    %944 = vmatprep.subr.mxu0 %v133
    %945 = vmatpush1.msra.mxu0 %v132
    %946 = vmatprep.subr.mxu0 0.0
    %947 = vmatpush1.msra.mxu0 0.0
    %948 = vmatprep.subr.mxu0 0.0
    %949 = vmatpush1.msra.mxu0 0.0
    %950 = vmatprep.subr.mxu0 0.0
    %951 = vmatpush1.msra.mxu0 0.0
    %952 = vmatprep.subr.mxu0 0.0
    %953 = vmatpush1.msra.mxu0 0.0
    %954 = vmatprep.subr.mxu0 0.0
    %955 = vmatpush1.msra.mxu0 0.0
    %956 = vmatprep.subr.mxu0 0.0
    %957 = vmatpush1.msra.mxu0 0.0
    %958 = vmatprep.subr.mxu0 0.0
    %959 = vmatpush1.msra.mxu0 0.0
    %960 = vmatprep.subr.mxu0 0.0
    %961 = vmatpush1.msra.mxu0 0.0
    %962 = vmatprep.subr.mxu0 0.0
    %963 = vmatpush1.msra.mxu0 0.0
    %964 = vmatprep.subr.mxu0 0.0
    %965 = vmatpush1.msra.mxu0 0.0
    %966 = vmatprep.subr.mxu0 0.0
    %967 = vmatpush1.msra.mxu0 0.0
    %968 = vmatprep.subr.mxu0 0.0
    %969 = vmatpush1.msra.mxu0 0.0
    %970 = vmatprep.subr.mxu0 0.0
    %971 = vmatpush1.msra.mxu0 0.0
    %972 = vmatprep.subr.mxu0 0.0
    %973 = vmatpush1.msra.mxu0 0.0
    %974 = vmatprep.subr.mxu0 0.0
    %975 = vmatpush1.msra.mxu0 0.0
    %976 = vmatprep.subr.mxu0 0.0
    %977 = vmatpush1.msra.mxu0 0.0
    %978 = vmatprep.subr.mxu0 0.0
    %979 = vmatpush1.msra.mxu0 0.0
    %980 = vmatprep.subr.mxu0 0.0
    %981 = vmatpush1.msra.mxu0 0.0
    %982 = vmatprep.subr.mxu0 0.0
    %983 = vmatpush1.msra.mxu0 0.0
    %984 = vmatprep.subr.mxu0 0.0
    %985 = vmatpush1.msra.mxu0 0.0
    %986 = vmatprep.subr.mxu0 0.0
    %987 = vmatpush1.msra.mxu0 0.0
    %988 = vmatprep.subr.mxu0 0.0
    %989 = vmatpush1.msra.mxu0 0.0
    %990 = vmatprep.subr.mxu0 0.0
    %991 = vmatpush1.msra.mxu0 0.0
    %992 = vmatprep.subr.mxu0 0.0
    %993 = vmatpush1.msra.mxu0 0.0
    %994 = vmatprep.mubr.f32.mxu0 0.0
    %995 = vmatmul.mubr.f32.gmra.mrb[0].mxu0 %v928
    %v996 = vpop.f32.mrb[0].mxu0
    %v997 = vadd.f32 %v142, %v996
    %v998 = vpop.f32.mrb[0].mxu0
    %v999 = vadd.f32 %v143, %v998
    %1000 = vdwg.mxu0
    %s1001 = scalar_lea.vmem [#allocation5], 24
    %v1002 = vld [vmem:[%s1001] sm:$0xf]
    %v1003 = vadd.f32 %v1002, %v997
    %v1004 = vxor.u32 %v1003, 2147483648
    %v1005 = vmul.f32 %v1004, 1.442695
    %v1006 = vpow.pop %v1005
    %v1007 = vadd.f32 %v1006, 1.0
    %v1008 = vrcp.pop %v1007
    %v1009 = vmul.f32 1.0, %v1008
    %v1010 = vmul.f32 %v1009, %v999
    %v1012 = vrot.slane %v1002, 2
    %v1014 = vadd.f32 %v1012, %v1010
    %v1015 = vtanh.pop %v1014
    %v1016 = vsub.f32 1.0, %v1009
    %1018 = vrot.lane.b32.xlu0 %v1015, 64
    %v1019 = vpop.permute.xlu0 %1018
    %v1021 = vmul.f32 %v1016, %v1019
    %v1023 = vunpack.c.l.s4 1983009808
    %v1024 = vunpack.c.0.s8 %v1023
    %v1025 = vlaneseq
    %v1026 = vshrl.u32 %v1025, 7
    %v1027 = vsub.s32 %v1024, %v1026
    %v1028 = vrot.slane %v926, %v1027
    %1029 = vrot.lane.b32.xlu0 %v1028, 64
    %v1030 = vpop.permute.xlu0 %1029
    %v1032 = vmul.f32 %v1009, %v1030
    %v1033 = vadd.f32 %v1021, %v1032
    %s1034 = scalar_lea.vmem [#allocation8], 12
    %v1035 = vld [vmem:[%s1034] sm:$0x3]
    %v1038 = vunpack.c.l.s4 1983009808
    %v1039 = vunpack.c.0.s8 %v1038
    %v1040 = vlaneseq
    %v1041 = vshrl.u32 %v1040, 7
    %v1042 = vsub.s32 %v1039, %v1041
    %v1043 = vrot.slane %v1033, %v1042
    %1044 = vrot.lane.b32.xlu0 %v1043, 64
    %v1045 = vpop.permute.xlu0 %1044
    %v1047 = vmul.f32 %v1035, %v1045
    %s1048 = scalar_lea.vmem [#allocation2], 12
    %1049 = vst.msk [vmem:[%s1048] sm:$0x3] %vm256, %v1047
    %1051 = vrot.lane.b32.xlu0 %v1047, 96
    %v1052 = vpop.permute.xlu0 %1051
    %s1054 = scalar_lea.vmem [#allocation3], 2
    %1055 = vst.msk [vmem:[%s1054] sm:$0x3] %vm256, %v1052
    %v1056 = vsub.f32 1.0, %v1035
    %v1057 = vmul.f32 %v1056, %v926
    %v1058 = vadd.f32 %v1047, %v1057
    %v1060 = vsel %vm146, %v1058, 0
    %1062 = vmatprep.subr.mxu0 %v119
    %1063 = vmatpush1.msra.mxu0 %v118
    %1064 = vmatprep.subr.mxu0 %v121
    %1065 = vmatpush1.msra.mxu0 %v120
    %1066 = vmatprep.subr.mxu0 %v123
    %1067 = vmatpush1.msra.mxu0 %v122
    %1068 = vmatprep.subr.mxu0 %v125
    %1069 = vmatpush1.msra.mxu0 %v124
    %1070 = vmatprep.subr.mxu0 %v127
    %1071 = vmatpush1.msra.mxu0 %v126
    %1072 = vmatprep.subr.mxu0 %v129
    %1073 = vmatpush1.msra.mxu0 %v128
    %1074 = vmatprep.subr.mxu0 %v131
    %1075 = vmatpush1.msra.mxu0 %v130
    %1076 = vmatprep.subr.mxu0 %v133
    %1077 = vmatpush1.msra.mxu0 %v132
    %1078 = vmatprep.subr.mxu0 0.0
    %1079 = vmatpush1.msra.mxu0 0.0
    %1080 = vmatprep.subr.mxu0 0.0
    %1081 = vmatpush1.msra.mxu0 0.0
    %1082 = vmatprep.subr.mxu0 0.0
    %1083 = vmatpush1.msra.mxu0 0.0
    %1084 = vmatprep.subr.mxu0 0.0
    %1085 = vmatpush1.msra.mxu0 0.0
    %1086 = vmatprep.subr.mxu0 0.0
    %1087 = vmatpush1.msra.mxu0 0.0
    %1088 = vmatprep.subr.mxu0 0.0
    %1089 = vmatpush1.msra.mxu0 0.0
    %1090 = vmatprep.subr.mxu0 0.0
    %1091 = vmatpush1.msra.mxu0 0.0
    %1092 = vmatprep.subr.mxu0 0.0
    %1093 = vmatpush1.msra.mxu0 0.0
    %1094 = vmatprep.subr.mxu0 0.0
    %1095 = vmatpush1.msra.mxu0 0.0
    %1096 = vmatprep.subr.mxu0 0.0
    %1097 = vmatpush1.msra.mxu0 0.0
    %1098 = vmatprep.subr.mxu0 0.0
    %1099 = vmatpush1.msra.mxu0 0.0
    %1100 = vmatprep.subr.mxu0 0.0
    %1101 = vmatpush1.msra.mxu0 0.0
    %1102 = vmatprep.subr.mxu0 0.0
    %1103 = vmatpush1.msra.mxu0 0.0
    %1104 = vmatprep.subr.mxu0 0.0
    %1105 = vmatpush1.msra.mxu0 0.0
    %1106 = vmatprep.subr.mxu0 0.0
    %1107 = vmatpush1.msra.mxu0 0.0
    %1108 = vmatprep.subr.mxu0 0.0
    %1109 = vmatpush1.msra.mxu0 0.0
    %1110 = vmatprep.subr.mxu0 0.0
    %1111 = vmatpush1.msra.mxu0 0.0
    %1112 = vmatprep.subr.mxu0 0.0
    %1113 = vmatpush1.msra.mxu0 0.0
    %1114 = vmatprep.subr.mxu0 0.0
    %1115 = vmatpush1.msra.mxu0 0.0
    %1116 = vmatprep.subr.mxu0 0.0
    %1117 = vmatpush1.msra.mxu0 0.0
    %1118 = vmatprep.subr.mxu0 0.0
    %1119 = vmatpush1.msra.mxu0 0.0
    %1120 = vmatprep.subr.mxu0 0.0
    %1121 = vmatpush1.msra.mxu0 0.0
    %1122 = vmatprep.subr.mxu0 0.0
    %1123 = vmatpush1.msra.mxu0 0.0
    %1124 = vmatprep.subr.mxu0 0.0
    %1125 = vmatpush1.msra.mxu0 0.0
    %1126 = vmatprep.mubr.f32.mxu0 0.0
    %1127 = vmatmul.mubr.f32.gmra.mrb[0].mxu0 %v1060
    %v1128 = vpop.f32.mrb[0].mxu0
    %v1129 = vadd.f32 %v142, %v1128
    %v1130 = vpop.f32.mrb[0].mxu0
    %v1131 = vadd.f32 %v143, %v1130
    %1132 = vdwg.mxu0
    %s1133 = scalar_lea.vmem [#allocation5], 28
    %v1134 = vld [vmem:[%s1133] sm:$0xf]
    %v1135 = vadd.f32 %v1134, %v1129
    %v1136 = vxor.u32 %v1135, 2147483648
    %v1137 = vmul.f32 %v1136, 1.442695
    %v1138 = vpow.pop %v1137
    %v1139 = vadd.f32 %v1138, 1.0
    %v1140 = vrcp.pop %v1139
    %v1141 = vmul.f32 1.0, %v1140
    %v1142 = vmul.f32 %v1141, %v1131
    %v1144 = vrot.slane %v1134, 2
    %v1146 = vadd.f32 %v1144, %v1142
    %v1147 = vtanh.pop %v1146
    %v1148 = vsub.f32 1.0, %v1141
    %1150 = vrot.lane.b32.xlu0 %v1147, 64
    %v1151 = vpop.permute.xlu0 %1150
    %v1153 = vmul.f32 %v1148, %v1151
    %v1155 = vunpack.c.l.s4 1983009808
    %v1156 = vunpack.c.0.s8 %v1155
    %v1157 = vlaneseq
    %v1158 = vshrl.u32 %v1157, 7
    %v1159 = vsub.s32 %v1156, %v1158
    %v1160 = vrot.slane %v1058, %v1159
    %1161 = vrot.lane.b32.xlu0 %v1160, 64
    %v1162 = vpop.permute.xlu0 %1161
    %v1164 = vmul.f32 %v1141, %v1162
    %v1165 = vadd.f32 %v1153, %v1164
    %s1166 = scalar_lea.vmem [#allocation8], 14
    %v1167 = vld [vmem:[%s1166] sm:$0x3]
    %v1170 = vunpack.c.l.s4 1983009808
    %v1171 = vunpack.c.0.s8 %v1170
    %v1172 = vlaneseq
    %v1173 = vshrl.u32 %v1172, 7
    %v1174 = vsub.s32 %v1171, %v1173
    %v1175 = vrot.slane %v1165, %v1174
    %1176 = vrot.lane.b32.xlu0 %v1175, 64
    %v1177 = vpop.permute.xlu0 %1176
    %v1179 = vmul.f32 %v1167, %v1177
    %s1180 = scalar_lea.vmem [#allocation2], 14
    %1181 = vst.msk [vmem:[%s1180] sm:$0x3] %vm256, %v1179
    %1183 = vrot.lane.b32.xlu0 %v1179, 96
    %v1184 = vpop.permute.xlu0 %1183
    %1186 = vst.msk [vmem:[#allocation3] sm:$0x3] %vm256, %v1184
    %v1187 = vld [vmem:[#allocation11] sm:$0xff]
    %v1188 = vld [vmem:[#allocation11 + $0x8] sm:$0xff]
    %v1189 = vld [vmem:[#allocation11 + $0x10] sm:$0xff]
    %v1190 = vld [vmem:[#allocation11 + $0x18] sm:$0xff]
    %v1191 = vld [vmem:[#allocation13] sm:$0xff]
    %v1192 = vld [vmem:[#allocation13 + $0x8] sm:$0xff]
    %v1193 = vld [vmem:[#allocation13 + $0x10] sm:$0xff]
    %v1194 = vld [vmem:[#allocation13 + $0x18] sm:$0xff]
    %v1195 = vld [vmem:[%s7] sm:$0x3]
    %v1196 = vld [vmem:[#allocation2] sm:$0x3]
    %v1197 = vld [vmem:[#allocation3] sm:$0x3]
    %vm1198 = vcmask 261120
    %v1200 = vsel %vm1198, %v1197, 0
    %1202 = vmatprep.subr.mxu0 0.0
    %1203 = vmatpush1.msra.mxu0 %v1191
    %1204 = vmatprep.subr.mxu0 0.0
    %1205 = vmatpush1.msra.mxu0 %v1192
    %1206 = vmatprep.subr.mxu0 0.0
    %1207 = vmatpush1.msra.mxu0 %v1193
    %1208 = vmatprep.subr.mxu0 0.0
    %1209 = vmatpush1.msra.mxu0 %v1194
    %1210 = vmatprep.subr.mxu0 0.0
    %1211 = vmatpush1.msra.mxu0 0.0
    %1212 = vmatprep.subr.mxu0 0.0
    %1213 = vmatpush1.msra.mxu0 0.0
    %1214 = vmatprep.subr.mxu0 0.0
    %1215 = vmatpush1.msra.mxu0 0.0
    %1216 = vmatprep.subr.mxu0 0.0
    %1217 = vmatpush1.msra.mxu0 0.0
    %1218 = vmatprep.subr.mxu0 0.0
    %1219 = vmatpush1.msra.mxu0 0.0
    %1220 = vmatprep.subr.mxu0 0.0
    %1221 = vmatpush1.msra.mxu0 0.0
    %1222 = vmatprep.subr.mxu0 0.0
    %1223 = vmatpush1.msra.mxu0 0.0
    %1224 = vmatprep.subr.mxu0 0.0
    %1225 = vmatpush1.msra.mxu0 0.0
    %1226 = vmatprep.subr.mxu0 0.0
    %1227 = vmatpush1.msra.mxu0 0.0
    %1228 = vmatprep.subr.mxu0 0.0
    %1229 = vmatpush1.msra.mxu0 0.0
    %1230 = vmatprep.subr.mxu0 0.0
    %1231 = vmatpush1.msra.mxu0 0.0
    %1232 = vmatprep.subr.mxu0 0.0
    %1233 = vmatpush1.msra.mxu0 0.0
    %1234 = vmatprep.subr.mxu0 0.0
    %1235 = vmatpush1.msra.mxu0 0.0
    %1236 = vmatprep.subr.mxu0 0.0
    %1237 = vmatpush1.msra.mxu0 0.0
    %1238 = vmatprep.subr.mxu0 0.0
    %1239 = vmatpush1.msra.mxu0 0.0
    %1240 = vmatprep.subr.mxu0 0.0
    %1241 = vmatpush1.msra.mxu0 0.0
    %1242 = vmatprep.subr.mxu0 0.0
    %1243 = vmatpush1.msra.mxu0 0.0
    %1244 = vmatprep.subr.mxu0 0.0
    %1245 = vmatpush1.msra.mxu0 0.0
    %1246 = vmatprep.subr.mxu0 0.0
    %1247 = vmatpush1.msra.mxu0 0.0
    %1248 = vmatprep.subr.mxu0 0.0
    %1249 = vmatpush1.msra.mxu0 0.0
    %1250 = vmatprep.subr.mxu0 0.0
    %1251 = vmatpush1.msra.mxu0 0.0
    %1252 = vmatprep.subr.mxu0 0.0
    %1253 = vmatpush1.msra.mxu0 0.0
    %1254 = vmatprep.subr.mxu0 0.0
    %1255 = vmatpush1.msra.mxu0 0.0
    %1256 = vmatprep.subr.mxu0 0.0
    %1257 = vmatpush1.msra.mxu0 0.0
    %1258 = vmatprep.subr.mxu0 0.0
    %1259 = vmatpush1.msra.mxu0 0.0
    %1260 = vmatprep.subr.mxu0 0.0
    %1261 = vmatpush1.msra.mxu0 0.0
    %1262 = vmatprep.subr.mxu0 0.0
    %1263 = vmatpush1.msra.mxu0 0.0
    %1264 = vmatprep.subr.mxu0 0.0
    %1265 = vmatpush1.msra.mxu0 0.0
    %1266 = vmatprep.mubr.f32.mxu0 0.0
    %1267 = vmatmul.mubr.f32.gmra.mrb[0].mxu0 %v1200
    %v1268 = vpop.f32.mrb[0].mxu0
    %v1269 = vadd.f32 0.0, %v1268
    %v1270 = vpop.f32.mrb[0].mxu0
    %1271 = vdwg.mxu0
    %v1273 = vsel %vm1198, %v1196, 0
    %1275 = vmatprep.subr.mxu0 0.0
    %1276 = vmatpush1.msra.mxu0 %v1187
    %1277 = vmatprep.subr.mxu0 0.0
    %1278 = vmatpush1.msra.mxu0 %v1188
    %1279 = vmatprep.subr.mxu0 0.0
    %1280 = vmatpush1.msra.mxu0 %v1189
    %1281 = vmatprep.subr.mxu0 0.0
    %1282 = vmatpush1.msra.mxu0 %v1190
    %1283 = vmatprep.subr.mxu0 0.0
    %1284 = vmatpush1.msra.mxu0 0.0
    %1285 = vmatprep.subr.mxu0 0.0
    %1286 = vmatpush1.msra.mxu0 0.0
    %1287 = vmatprep.subr.mxu0 0.0
    %1288 = vmatpush1.msra.mxu0 0.0
    %1289 = vmatprep.subr.mxu0 0.0
    %1290 = vmatpush1.msra.mxu0 0.0
    %1291 = vmatprep.subr.mxu0 0.0
    %1292 = vmatpush1.msra.mxu0 0.0
    %1293 = vmatprep.subr.mxu0 0.0
    %1294 = vmatpush1.msra.mxu0 0.0
    %1295 = vmatprep.subr.mxu0 0.0
    %1296 = vmatpush1.msra.mxu0 0.0
    %1297 = vmatprep.subr.mxu0 0.0
    %1298 = vmatpush1.msra.mxu0 0.0
    %1299 = vmatprep.subr.mxu0 0.0
    %1300 = vmatpush1.msra.mxu0 0.0
    %1301 = vmatprep.subr.mxu0 0.0
    %1302 = vmatpush1.msra.mxu0 0.0
    %1303 = vmatprep.subr.mxu0 0.0
    %1304 = vmatpush1.msra.mxu0 0.0
    %1305 = vmatprep.subr.mxu0 0.0
    %1306 = vmatpush1.msra.mxu0 0.0
    %1307 = vmatprep.subr.mxu0 0.0
    %1308 = vmatpush1.msra.mxu0 0.0
    %1309 = vmatprep.subr.mxu0 0.0
    %1310 = vmatpush1.msra.mxu0 0.0
    %1311 = vmatprep.subr.mxu0 0.0
    %1312 = vmatpush1.msra.mxu0 0.0
    %1313 = vmatprep.subr.mxu0 0.0
    %1314 = vmatpush1.msra.mxu0 0.0
    %1315 = vmatprep.subr.mxu0 0.0
    %1316 = vmatpush1.msra.mxu0 0.0
    %1317 = vmatprep.subr.mxu0 0.0
    %1318 = vmatpush1.msra.mxu0 0.0
    %1319 = vmatprep.subr.mxu0 0.0
    %1320 = vmatpush1.msra.mxu0 0.0
    %1321 = vmatprep.subr.mxu0 0.0
    %1322 = vmatpush1.msra.mxu0 0.0
    %1323 = vmatprep.subr.mxu0 0.0
    %1324 = vmatpush1.msra.mxu0 0.0
    %1325 = vmatprep.subr.mxu0 0.0
    %1326 = vmatpush1.msra.mxu0 0.0
    %1327 = vmatprep.subr.mxu0 0.0
    %1328 = vmatpush1.msra.mxu0 0.0
    %1329 = vmatprep.subr.mxu0 0.0
    %1330 = vmatpush1.msra.mxu0 0.0
    %1331 = vmatprep.subr.mxu0 0.0
    %1332 = vmatpush1.msra.mxu0 0.0
    %1333 = vmatprep.subr.mxu0 0.0
    %1334 = vmatpush1.msra.mxu0 0.0
    %1335 = vmatprep.subr.mxu0 0.0
    %1336 = vmatpush1.msra.mxu0 0.0
    %1337 = vmatprep.subr.mxu0 0.0
    %1338 = vmatpush1.msra.mxu0 0.0
    %1339 = vmatprep.mubr.f32.mxu0 0.0
    %1340 = vmatmul.mubr.f32.gmra.mrb[0].mxu0 %v1273
    %v1341 = vpop.f32.mrb[0].mxu0
    %v1342 = vadd.f32 %v1269, %v1341
    %v1343 = vpop.f32.mrb[0].mxu0
    %1344 = vdwg.mxu0
    %v1345 = vadd.f32 %v1342, %v1195
    %vm1346 = vcmask 517120
    %1347 = vst.msk [vmem:[#allocation4] sm:$0x3] %vm1346, %v1345
    %v1348 = vld [vmem:[%s388] sm:$0x3]
    %v1349 = vld [vmem:[%s1054] sm:$0x3]
    %v1351 = vsel %vm1198, %v1349, 0
    %1353 = vmatprep.subr.mxu0 0.0
    %1354 = vmatpush1.msra.mxu0 %v1191
    %1355 = vmatprep.subr.mxu0 0.0
    %1356 = vmatpush1.msra.mxu0 %v1192
    %1357 = vmatprep.subr.mxu0 0.0
    %1358 = vmatpush1.msra.mxu0 %v1193
    %1359 = vmatprep.subr.mxu0 0.0
    %1360 = vmatpush1.msra.mxu0 %v1194
    %1361 = vmatprep.subr.mxu0 0.0
    %1362 = vmatpush1.msra.mxu0 0.0
    %1363 = vmatprep.subr.mxu0 0.0
    %1364 = vmatpush1.msra.mxu0 0.0
    %1365 = vmatprep.subr.mxu0 0.0
    %1366 = vmatpush1.msra.mxu0 0.0
    %1367 = vmatprep.subr.mxu0 0.0
    %1368 = vmatpush1.msra.mxu0 0.0
    %1369 = vmatprep.subr.mxu0 0.0
    %1370 = vmatpush1.msra.mxu0 0.0
    %1371 = vmatprep.subr.mxu0 0.0
    %1372 = vmatpush1.msra.mxu0 0.0
    %1373 = vmatprep.subr.mxu0 0.0
    %1374 = vmatpush1.msra.mxu0 0.0
    %1375 = vmatprep.subr.mxu0 0.0
    %1376 = vmatpush1.msra.mxu0 0.0
    %1377 = vmatprep.subr.mxu0 0.0
    %1378 = vmatpush1.msra.mxu0 0.0
    %1379 = vmatprep.subr.mxu0 0.0
    %1380 = vmatpush1.msra.mxu0 0.0
    %1381 = vmatprep.subr.mxu0 0.0
    %1382 = vmatpush1.msra.mxu0 0.0
    %1383 = vmatprep.subr.mxu0 0.0
    %1384 = vmatpush1.msra.mxu0 0.0
    %1385 = vmatprep.subr.mxu0 0.0
    %1386 = vmatpush1.msra.mxu0 0.0
    %1387 = vmatprep.subr.mxu0 0.0
    %1388 = vmatpush1.msra.mxu0 0.0
    %1389 = vmatprep.subr.mxu0 0.0
    %1390 = vmatpush1.msra.mxu0 0.0
    %1391 = vmatprep.subr.mxu0 0.0
    %1392 = vmatpush1.msra.mxu0 0.0
    %1393 = vmatprep.subr.mxu0 0.0
    %1394 = vmatpush1.msra.mxu0 0.0
    %1395 = vmatprep.subr.mxu0 0.0
    %1396 = vmatpush1.msra.mxu0 0.0
    %1397 = vmatprep.subr.mxu0 0.0
    %1398 = vmatpush1.msra.mxu0 0.0
    %1399 = vmatprep.subr.mxu0 0.0
    %1400 = vmatpush1.msra.mxu0 0.0
    %1401 = vmatprep.subr.mxu0 0.0
    %1402 = vmatpush1.msra.mxu0 0.0
    %1403 = vmatprep.subr.mxu0 0.0
    %1404 = vmatpush1.msra.mxu0 0.0
    %1405 = vmatprep.subr.mxu0 0.0
    %1406 = vmatpush1.msra.mxu0 0.0
    %1407 = vmatprep.subr.mxu0 0.0
    %1408 = vmatpush1.msra.mxu0 0.0
    %1409 = vmatprep.subr.mxu0 0.0
    %1410 = vmatpush1.msra.mxu0 0.0
    %1411 = vmatprep.subr.mxu0 0.0
    %1412 = vmatpush1.msra.mxu0 0.0
    %1413 = vmatprep.subr.mxu0 0.0
    %1414 = vmatpush1.msra.mxu0 0.0
    %1415 = vmatprep.subr.mxu0 0.0
    %1416 = vmatpush1.msra.mxu0 0.0
    %1417 = vmatprep.mubr.f32.mxu0 0.0
    %1418 = vmatmul.mubr.f32.gmra.mrb[0].mxu0 %v1351
    %v1419 = vpop.f32.mrb[0].mxu0
    %v1420 = vadd.f32 0.0, %v1419
    %v1421 = vpop.f32.mrb[0].mxu0
    %1422 = vdwg.mxu0
    %v1424 = vsel %vm1198, %v1348, 0
    %1426 = vmatprep.subr.mxu0 0.0
    %1427 = vmatpush1.msra.mxu0 %v1187
    %1428 = vmatprep.subr.mxu0 0.0
    %1429 = vmatpush1.msra.mxu0 %v1188
    %1430 = vmatprep.subr.mxu0 0.0
    %1431 = vmatpush1.msra.mxu0 %v1189
    %1432 = vmatprep.subr.mxu0 0.0
    %1433 = vmatpush1.msra.mxu0 %v1190
    %1434 = vmatprep.subr.mxu0 0.0
    %1435 = vmatpush1.msra.mxu0 0.0
    %1436 = vmatprep.subr.mxu0 0.0
    %1437 = vmatpush1.msra.mxu0 0.0
    %1438 = vmatprep.subr.mxu0 0.0
    %1439 = vmatpush1.msra.mxu0 0.0
    %1440 = vmatprep.subr.mxu0 0.0
    %1441 = vmatpush1.msra.mxu0 0.0
    %1442 = vmatprep.subr.mxu0 0.0
    %1443 = vmatpush1.msra.mxu0 0.0
    %1444 = vmatprep.subr.mxu0 0.0
    %1445 = vmatpush1.msra.mxu0 0.0
    %1446 = vmatprep.subr.mxu0 0.0
    %1447 = vmatpush1.msra.mxu0 0.0
    %1448 = vmatprep.subr.mxu0 0.0
    %1449 = vmatpush1.msra.mxu0 0.0
    %1450 = vmatprep.subr.mxu0 0.0
    %1451 = vmatpush1.msra.mxu0 0.0
    %1452 = vmatprep.subr.mxu0 0.0
    %1453 = vmatpush1.msra.mxu0 0.0
    %1454 = vmatprep.subr.mxu0 0.0
    %1455 = vmatpush1.msra.mxu0 0.0
    %1456 = vmatprep.subr.mxu0 0.0
    %1457 = vmatpush1.msra.mxu0 0.0
    %1458 = vmatprep.subr.mxu0 0.0
    %1459 = vmatpush1.msra.mxu0 0.0
    %1460 = vmatprep.subr.mxu0 0.0
    %1461 = vmatpush1.msra.mxu0 0.0
    %1462 = vmatprep.subr.mxu0 0.0
    %1463 = vmatpush1.msra.mxu0 0.0
    %1464 = vmatprep.subr.mxu0 0.0
    %1465 = vmatpush1.msra.mxu0 0.0
    %1466 = vmatprep.subr.mxu0 0.0
    %1467 = vmatpush1.msra.mxu0 0.0
    %1468 = vmatprep.subr.mxu0 0.0
    %1469 = vmatpush1.msra.mxu0 0.0
    %1470 = vmatprep.subr.mxu0 0.0
    %1471 = vmatpush1.msra.mxu0 0.0
    %1472 = vmatprep.subr.mxu0 0.0
    %1473 = vmatpush1.msra.mxu0 0.0
    %1474 = vmatprep.subr.mxu0 0.0
    %1475 = vmatpush1.msra.mxu0 0.0
    %1476 = vmatprep.subr.mxu0 0.0
    %1477 = vmatpush1.msra.mxu0 0.0
    %1478 = vmatprep.subr.mxu0 0.0
    %1479 = vmatpush1.msra.mxu0 0.0
    %1480 = vmatprep.subr.mxu0 0.0
    %1481 = vmatpush1.msra.mxu0 0.0
    %1482 = vmatprep.subr.mxu0 0.0
    %1483 = vmatpush1.msra.mxu0 0.0
    %1484 = vmatprep.subr.mxu0 0.0
    %1485 = vmatpush1.msra.mxu0 0.0
    %1486 = vmatprep.subr.mxu0 0.0
    %1487 = vmatpush1.msra.mxu0 0.0
    %1488 = vmatprep.subr.mxu0 0.0
    %1489 = vmatpush1.msra.mxu0 0.0
    %1490 = vmatprep.mubr.f32.mxu0 0.0
    %1491 = vmatmul.mubr.f32.gmra.mrb[0].mxu0 %v1424
    %v1492 = vpop.f32.mrb[0].mxu0
    %v1493 = vadd.f32 %v1420, %v1492
    %v1494 = vpop.f32.mrb[0].mxu0
    %1495 = vdwg.mxu0
    %v1496 = vadd.f32 %v1493, %v1195
    %s1497 = scalar_lea.vmem [#allocation4], 2
    %1498 = vst.msk [vmem:[%s1497] sm:$0x3] %vm1346, %v1496
    %v1499 = vld [vmem:[%s520] sm:$0x3]
    %v1500 = vld [vmem:[%s922] sm:$0x3]
    %v1502 = vsel %vm1198, %v1500, 0
    %1504 = vmatprep.subr.mxu0 0.0
    %1505 = vmatpush1.msra.mxu0 %v1191
    %1506 = vmatprep.subr.mxu0 0.0
    %1507 = vmatpush1.msra.mxu0 %v1192
    %1508 = vmatprep.subr.mxu0 0.0
    %1509 = vmatpush1.msra.mxu0 %v1193
    %1510 = vmatprep.subr.mxu0 0.0
    %1511 = vmatpush1.msra.mxu0 %v1194
    %1512 = vmatprep.subr.mxu0 0.0
    %1513 = vmatpush1.msra.mxu0 0.0
    %1514 = vmatprep.subr.mxu0 0.0
    %1515 = vmatpush1.msra.mxu0 0.0
    %1516 = vmatprep.subr.mxu0 0.0
    %1517 = vmatpush1.msra.mxu0 0.0
    %1518 = vmatprep.subr.mxu0 0.0
    %1519 = vmatpush1.msra.mxu0 0.0
    %1520 = vmatprep.subr.mxu0 0.0
    %1521 = vmatpush1.msra.mxu0 0.0
    %1522 = vmatprep.subr.mxu0 0.0
    %1523 = vmatpush1.msra.mxu0 0.0
    %1524 = vmatprep.subr.mxu0 0.0
    %1525 = vmatpush1.msra.mxu0 0.0
    %1526 = vmatprep.subr.mxu0 0.0
    %1527 = vmatpush1.msra.mxu0 0.0
    %1528 = vmatprep.subr.mxu0 0.0
    %1529 = vmatpush1.msra.mxu0 0.0
    %1530 = vmatprep.subr.mxu0 0.0
    %1531 = vmatpush1.msra.mxu0 0.0
    %1532 = vmatprep.subr.mxu0 0.0
    %1533 = vmatpush1.msra.mxu0 0.0
    %1534 = vmatprep.subr.mxu0 0.0
    %1535 = vmatpush1.msra.mxu0 0.0
    %1536 = vmatprep.subr.mxu0 0.0
    %1537 = vmatpush1.msra.mxu0 0.0
    %1538 = vmatprep.subr.mxu0 0.0
    %1539 = vmatpush1.msra.mxu0 0.0
    %1540 = vmatprep.subr.mxu0 0.0
    %1541 = vmatpush1.msra.mxu0 0.0
    %1542 = vmatprep.subr.mxu0 0.0
    %1543 = vmatpush1.msra.mxu0 0.0
    %1544 = vmatprep.subr.mxu0 0.0
    %1545 = vmatpush1.msra.mxu0 0.0
    %1546 = vmatprep.subr.mxu0 0.0
    %1547 = vmatpush1.msra.mxu0 0.0
    %1548 = vmatprep.subr.mxu0 0.0
    %1549 = vmatpush1.msra.mxu0 0.0
    %1550 = vmatprep.subr.mxu0 0.0
    %1551 = vmatpush1.msra.mxu0 0.0
    %1552 = vmatprep.subr.mxu0 0.0
    %1553 = vmatpush1.msra.mxu0 0.0
    %1554 = vmatprep.subr.mxu0 0.0
    %1555 = vmatpush1.msra.mxu0 0.0
    %1556 = vmatprep.subr.mxu0 0.0
    %1557 = vmatpush1.msra.mxu0 0.0
    %1558 = vmatprep.subr.mxu0 0.0
    %1559 = vmatpush1.msra.mxu0 0.0
    %1560 = vmatprep.subr.mxu0 0.0
    %1561 = vmatpush1.msra.mxu0 0.0
    %1562 = vmatprep.subr.mxu0 0.0
    %1563 = vmatpush1.msra.mxu0 0.0
    %1564 = vmatprep.subr.mxu0 0.0
    %1565 = vmatpush1.msra.mxu0 0.0
    %1566 = vmatprep.subr.mxu0 0.0
    %1567 = vmatpush1.msra.mxu0 0.0
    %1568 = vmatprep.mubr.f32.mxu0 0.0
    %1569 = vmatmul.mubr.f32.gmra.mrb[0].mxu0 %v1502
    %v1570 = vpop.f32.mrb[0].mxu0
    %v1571 = vadd.f32 0.0, %v1570
    %v1572 = vpop.f32.mrb[0].mxu0
    %1573 = vdwg.mxu0
    %v1575 = vsel %vm1198, %v1499, 0
    %1577 = vmatprep.subr.mxu0 0.0
    %1578 = vmatpush1.msra.mxu0 %v1187
    %1579 = vmatprep.subr.mxu0 0.0
    %1580 = vmatpush1.msra.mxu0 %v1188
    %1581 = vmatprep.subr.mxu0 0.0
    %1582 = vmatpush1.msra.mxu0 %v1189
    %1583 = vmatprep.subr.mxu0 0.0
    %1584 = vmatpush1.msra.mxu0 %v1190
    %1585 = vmatprep.subr.mxu0 0.0
    %1586 = vmatpush1.msra.mxu0 0.0
    %1587 = vmatprep.subr.mxu0 0.0
    %1588 = vmatpush1.msra.mxu0 0.0
    %1589 = vmatprep.subr.mxu0 0.0
    %1590 = vmatpush1.msra.mxu0 0.0
    %1591 = vmatprep.subr.mxu0 0.0
    %1592 = vmatpush1.msra.mxu0 0.0
    %1593 = vmatprep.subr.mxu0 0.0
    %1594 = vmatpush1.msra.mxu0 0.0
    %1595 = vmatprep.subr.mxu0 0.0
    %1596 = vmatpush1.msra.mxu0 0.0
    %1597 = vmatprep.subr.mxu0 0.0
    %1598 = vmatpush1.msra.mxu0 0.0
    %1599 = vmatprep.subr.mxu0 0.0
    %1600 = vmatpush1.msra.mxu0 0.0
    %1601 = vmatprep.subr.mxu0 0.0
    %1602 = vmatpush1.msra.mxu0 0.0
    %1603 = vmatprep.subr.mxu0 0.0
    %1604 = vmatpush1.msra.mxu0 0.0
    %1605 = vmatprep.subr.mxu0 0.0
    %1606 = vmatpush1.msra.mxu0 0.0
    %1607 = vmatprep.subr.mxu0 0.0
    %1608 = vmatpush1.msra.mxu0 0.0
    %1609 = vmatprep.subr.mxu0 0.0
    %1610 = vmatpush1.msra.mxu0 0.0
    %1611 = vmatprep.subr.mxu0 0.0
    %1612 = vmatpush1.msra.mxu0 0.0
    %1613 = vmatprep.subr.mxu0 0.0
    %1614 = vmatpush1.msra.mxu0 0.0
    %1615 = vmatprep.subr.mxu0 0.0
    %1616 = vmatpush1.msra.mxu0 0.0
    %1617 = vmatprep.subr.mxu0 0.0
    %1618 = vmatpush1.msra.mxu0 0.0
    %1619 = vmatprep.subr.mxu0 0.0
    %1620 = vmatpush1.msra.mxu0 0.0
    %1621 = vmatprep.subr.mxu0 0.0
    %1622 = vmatpush1.msra.mxu0 0.0
    %1623 = vmatprep.subr.mxu0 0.0
    %1624 = vmatpush1.msra.mxu0 0.0
    %1625 = vmatprep.subr.mxu0 0.0
    %1626 = vmatpush1.msra.mxu0 0.0
    %1627 = vmatprep.subr.mxu0 0.0
    %1628 = vmatpush1.msra.mxu0 0.0
    %1629 = vmatprep.subr.mxu0 0.0
    %1630 = vmatpush1.msra.mxu0 0.0
    %1631 = vmatprep.subr.mxu0 0.0
    %1632 = vmatpush1.msra.mxu0 0.0
    %1633 = vmatprep.subr.mxu0 0.0
    %1634 = vmatpush1.msra.mxu0 0.0
    %1635 = vmatprep.subr.mxu0 0.0
    %1636 = vmatpush1.msra.mxu0 0.0
    %1637 = vmatprep.subr.mxu0 0.0
    %1638 = vmatpush1.msra.mxu0 0.0
    %1639 = vmatprep.subr.mxu0 0.0
    %1640 = vmatpush1.msra.mxu0 0.0
    %1641 = vmatprep.mubr.f32.mxu0 0.0
    %1642 = vmatmul.mubr.f32.gmra.mrb[0].mxu0 %v1575
    %v1643 = vpop.f32.mrb[0].mxu0
    %v1644 = vadd.f32 %v1571, %v1643
    %v1645 = vpop.f32.mrb[0].mxu0
    %1646 = vdwg.mxu0
    %v1647 = vadd.f32 %v1644, %v1195
    %s1648 = scalar_lea.vmem [#allocation4], 4
    %1649 = vst.msk [vmem:[%s1648] sm:$0x3] %vm1346, %v1647
    %v1650 = vld [vmem:[%s652] sm:$0x3]
    %v1651 = vld [vmem:[%s790] sm:$0x3]
    %v1653 = vsel %vm1198, %v1651, 0
    %1655 = vmatprep.subr.mxu0 0.0
    %1656 = vmatpush1.msra.mxu0 %v1191
    %1657 = vmatprep.subr.mxu0 0.0
    %1658 = vmatpush1.msra.mxu0 %v1192
    %1659 = vmatprep.subr.mxu0 0.0
    %1660 = vmatpush1.msra.mxu0 %v1193
    %1661 = vmatprep.subr.mxu0 0.0
    %1662 = vmatpush1.msra.mxu0 %v1194
    %1663 = vmatprep.subr.mxu0 0.0
    %1664 = vmatpush1.msra.mxu0 0.0
    %1665 = vmatprep.subr.mxu0 0.0
    %1666 = vmatpush1.msra.mxu0 0.0
    %1667 = vmatprep.subr.mxu0 0.0
    %1668 = vmatpush1.msra.mxu0 0.0
    %1669 = vmatprep.subr.mxu0 0.0
    %1670 = vmatpush1.msra.mxu0 0.0
    %1671 = vmatprep.subr.mxu0 0.0
    %1672 = vmatpush1.msra.mxu0 0.0
    %1673 = vmatprep.subr.mxu0 0.0
    %1674 = vmatpush1.msra.mxu0 0.0
    %1675 = vmatprep.subr.mxu0 0.0
    %1676 = vmatpush1.msra.mxu0 0.0
    %1677 = vmatprep.subr.mxu0 0.0
    %1678 = vmatpush1.msra.mxu0 0.0
    %1679 = vmatprep.subr.mxu0 0.0
    %1680 = vmatpush1.msra.mxu0 0.0
    %1681 = vmatprep.subr.mxu0 0.0
    %1682 = vmatpush1.msra.mxu0 0.0
    %1683 = vmatprep.subr.mxu0 0.0
    %1684 = vmatpush1.msra.mxu0 0.0
    %1685 = vmatprep.subr.mxu0 0.0
    %1686 = vmatpush1.msra.mxu0 0.0
    %1687 = vmatprep.subr.mxu0 0.0
    %1688 = vmatpush1.msra.mxu0 0.0
    %1689 = vmatprep.subr.mxu0 0.0
    %1690 = vmatpush1.msra.mxu0 0.0
    %1691 = vmatprep.subr.mxu0 0.0
    %1692 = vmatpush1.msra.mxu0 0.0
    %1693 = vmatprep.subr.mxu0 0.0
    %1694 = vmatpush1.msra.mxu0 0.0
    %1695 = vmatprep.subr.mxu0 0.0
    %1696 = vmatpush1.msra.mxu0 0.0
    %1697 = vmatprep.subr.mxu0 0.0
    %1698 = vmatpush1.msra.mxu0 0.0
    %1699 = vmatprep.subr.mxu0 0.0
    %1700 = vmatpush1.msra.mxu0 0.0
    %1701 = vmatprep.subr.mxu0 0.0
    %1702 = vmatpush1.msra.mxu0 0.0
    %1703 = vmatprep.subr.mxu0 0.0
    %1704 = vmatpush1.msra.mxu0 0.0
    %1705 = vmatprep.subr.mxu0 0.0
    %1706 = vmatpush1.msra.mxu0 0.0
    %1707 = vmatprep.subr.mxu0 0.0
    %1708 = vmatpush1.msra.mxu0 0.0
    %1709 = vmatprep.subr.mxu0 0.0
    %1710 = vmatpush1.msra.mxu0 0.0
    %1711 = vmatprep.subr.mxu0 0.0
    %1712 = vmatpush1.msra.mxu0 0.0
    %1713 = vmatprep.subr.mxu0 0.0
    %1714 = vmatpush1.msra.mxu0 0.0
    %1715 = vmatprep.subr.mxu0 0.0
    %1716 = vmatpush1.msra.mxu0 0.0
    %1717 = vmatprep.subr.mxu0 0.0
    %1718 = vmatpush1.msra.mxu0 0.0
    %1719 = vmatprep.mubr.f32.mxu0 0.0
    %1720 = vmatmul.mubr.f32.gmra.mrb[0].mxu0 %v1653
    %v1721 = vpop.f32.mrb[0].mxu0
    %v1722 = vadd.f32 0.0, %v1721
    %v1723 = vpop.f32.mrb[0].mxu0
    %1724 = vdwg.mxu0
    %v1726 = vsel %vm1198, %v1650, 0
    %1728 = vmatprep.subr.mxu0 0.0
    %1729 = vmatpush1.msra.mxu0 %v1187
    %1730 = vmatprep.subr.mxu0 0.0
    %1731 = vmatpush1.msra.mxu0 %v1188
    %1732 = vmatprep.subr.mxu0 0.0
    %1733 = vmatpush1.msra.mxu0 %v1189
    %1734 = vmatprep.subr.mxu0 0.0
    %1735 = vmatpush1.msra.mxu0 %v1190
    %1736 = vmatprep.subr.mxu0 0.0
    %1737 = vmatpush1.msra.mxu0 0.0
    %1738 = vmatprep.subr.mxu0 0.0
    %1739 = vmatpush1.msra.mxu0 0.0
    %1740 = vmatprep.subr.mxu0 0.0
    %1741 = vmatpush1.msra.mxu0 0.0
    %1742 = vmatprep.subr.mxu0 0.0
    %1743 = vmatpush1.msra.mxu0 0.0
    %1744 = vmatprep.subr.mxu0 0.0
    %1745 = vmatpush1.msra.mxu0 0.0
    %1746 = vmatprep.subr.mxu0 0.0
    %1747 = vmatpush1.msra.mxu0 0.0
    %1748 = vmatprep.subr.mxu0 0.0
    %1749 = vmatpush1.msra.mxu0 0.0
    %1750 = vmatprep.subr.mxu0 0.0
    %1751 = vmatpush1.msra.mxu0 0.0
    %1752 = vmatprep.subr.mxu0 0.0
    %1753 = vmatpush1.msra.mxu0 0.0
    %1754 = vmatprep.subr.mxu0 0.0
    %1755 = vmatpush1.msra.mxu0 0.0
    %1756 = vmatprep.subr.mxu0 0.0
    %1757 = vmatpush1.msra.mxu0 0.0
    %1758 = vmatprep.subr.mxu0 0.0
    %1759 = vmatpush1.msra.mxu0 0.0
    %1760 = vmatprep.subr.mxu0 0.0
    %1761 = vmatpush1.msra.mxu0 0.0
    %1762 = vmatprep.subr.mxu0 0.0
    %1763 = vmatpush1.msra.mxu0 0.0
    %1764 = vmatprep.subr.mxu0 0.0
    %1765 = vmatpush1.msra.mxu0 0.0
    %1766 = vmatprep.subr.mxu0 0.0
    %1767 = vmatpush1.msra.mxu0 0.0
    %1768 = vmatprep.subr.mxu0 0.0
    %1769 = vmatpush1.msra.mxu0 0.0
    %1770 = vmatprep.subr.mxu0 0.0
    %1771 = vmatpush1.msra.mxu0 0.0
    %1772 = vmatprep.subr.mxu0 0.0
    %1773 = vmatpush1.msra.mxu0 0.0
    %1774 = vmatprep.subr.mxu0 0.0
    %1775 = vmatpush1.msra.mxu0 0.0
    %1776 = vmatprep.subr.mxu0 0.0
    %1777 = vmatpush1.msra.mxu0 0.0
    %1778 = vmatprep.subr.mxu0 0.0
    %1779 = vmatpush1.msra.mxu0 0.0
    %1780 = vmatprep.subr.mxu0 0.0
    %1781 = vmatpush1.msra.mxu0 0.0
    %1782 = vmatprep.subr.mxu0 0.0
    %1783 = vmatpush1.msra.mxu0 0.0
    %1784 = vmatprep.subr.mxu0 0.0
    %1785 = vmatpush1.msra.mxu0 0.0
    %1786 = vmatprep.subr.mxu0 0.0
    %1787 = vmatpush1.msra.mxu0 0.0
    %1788 = vmatprep.subr.mxu0 0.0
    %1789 = vmatpush1.msra.mxu0 0.0
    %1790 = vmatprep.subr.mxu0 0.0
    %1791 = vmatpush1.msra.mxu0 0.0
    %1792 = vmatprep.mubr.f32.mxu0 0.0
    %1793 = vmatmul.mubr.f32.gmra.mrb[0].mxu0 %v1726
    %v1794 = vpop.f32.mrb[0].mxu0
    %v1795 = vadd.f32 %v1722, %v1794
    %v1796 = vpop.f32.mrb[0].mxu0
    %1797 = vdwg.mxu0
    %v1798 = vadd.f32 %v1795, %v1195
    %s1799 = scalar_lea.vmem [#allocation4], 6
    %1800 = vst.msk [vmem:[%s1799] sm:$0x3] %vm1346, %v1798
    %v1801 = vld [vmem:[%s784] sm:$0x3]
    %v1802 = vld [vmem:[%s658] sm:$0x3]
    %v1804 = vsel %vm1198, %v1802, 0
    %1806 = vmatprep.subr.mxu0 0.0
    %1807 = vmatpush1.msra.mxu0 %v1191
    %1808 = vmatprep.subr.mxu0 0.0
    %1809 = vmatpush1.msra.mxu0 %v1192
    %1810 = vmatprep.subr.mxu0 0.0
    %1811 = vmatpush1.msra.mxu0 %v1193
    %1812 = vmatprep.subr.mxu0 0.0
    %1813 = vmatpush1.msra.mxu0 %v1194
    %1814 = vmatprep.subr.mxu0 0.0
    %1815 = vmatpush1.msra.mxu0 0.0
    %1816 = vmatprep.subr.mxu0 0.0
    %1817 = vmatpush1.msra.mxu0 0.0
    %1818 = vmatprep.subr.mxu0 0.0
    %1819 = vmatpush1.msra.mxu0 0.0
    %1820 = vmatprep.subr.mxu0 0.0
    %1821 = vmatpush1.msra.mxu0 0.0
    %1822 = vmatprep.subr.mxu0 0.0
    %1823 = vmatpush1.msra.mxu0 0.0
    %1824 = vmatprep.subr.mxu0 0.0
    %1825 = vmatpush1.msra.mxu0 0.0
    %1826 = vmatprep.subr.mxu0 0.0
    %1827 = vmatpush1.msra.mxu0 0.0
    %1828 = vmatprep.subr.mxu0 0.0
    %1829 = vmatpush1.msra.mxu0 0.0
    %1830 = vmatprep.subr.mxu0 0.0
    %1831 = vmatpush1.msra.mxu0 0.0
    %1832 = vmatprep.subr.mxu0 0.0
    %1833 = vmatpush1.msra.mxu0 0.0
    %1834 = vmatprep.subr.mxu0 0.0
    %1835 = vmatpush1.msra.mxu0 0.0
    %1836 = vmatprep.subr.mxu0 0.0
    %1837 = vmatpush1.msra.mxu0 0.0
    %1838 = vmatprep.subr.mxu0 0.0
    %1839 = vmatpush1.msra.mxu0 0.0
    %1840 = vmatprep.subr.mxu0 0.0
    %1841 = vmatpush1.msra.mxu0 0.0
    %1842 = vmatprep.subr.mxu0 0.0
    %1843 = vmatpush1.msra.mxu0 0.0
    %1844 = vmatprep.subr.mxu0 0.0
    %1845 = vmatpush1.msra.mxu0 0.0
    %1846 = vmatprep.subr.mxu0 0.0
    %1847 = vmatpush1.msra.mxu0 0.0
    %1848 = vmatprep.subr.mxu0 0.0
    %1849 = vmatpush1.msra.mxu0 0.0
    %1850 = vmatprep.subr.mxu0 0.0
    %1851 = vmatpush1.msra.mxu0 0.0
    %1852 = vmatprep.subr.mxu0 0.0
    %1853 = vmatpush1.msra.mxu0 0.0
    %1854 = vmatprep.subr.mxu0 0.0
    %1855 = vmatpush1.msra.mxu0 0.0
    %1856 = vmatprep.subr.mxu0 0.0
    %1857 = vmatpush1.msra.mxu0 0.0
    %1858 = vmatprep.subr.mxu0 0.0
    %1859 = vmatpush1.msra.mxu0 0.0
    %1860 = vmatprep.subr.mxu0 0.0
    %1861 = vmatpush1.msra.mxu0 0.0
    %1862 = vmatprep.subr.mxu0 0.0
    %1863 = vmatpush1.msra.mxu0 0.0
    %1864 = vmatprep.subr.mxu0 0.0
    %1865 = vmatpush1.msra.mxu0 0.0
    %1866 = vmatprep.subr.mxu0 0.0
    %1867 = vmatpush1.msra.mxu0 0.0
    %1868 = vmatprep.subr.mxu0 0.0
    %1869 = vmatpush1.msra.mxu0 0.0
    %1870 = vmatprep.mubr.f32.mxu0 0.0
    %1871 = vmatmul.mubr.f32.gmra.mrb[0].mxu0 %v1804
    %v1872 = vpop.f32.mrb[0].mxu0
    %v1873 = vadd.f32 0.0, %v1872
    %v1874 = vpop.f32.mrb[0].mxu0
    %1875 = vdwg.mxu0
    %v1877 = vsel %vm1198, %v1801, 0
    %1879 = vmatprep.subr.mxu0 0.0
    %1880 = vmatpush1.msra.mxu0 %v1187
    %1881 = vmatprep.subr.mxu0 0.0
    %1882 = vmatpush1.msra.mxu0 %v1188
    %1883 = vmatprep.subr.mxu0 0.0
    %1884 = vmatpush1.msra.mxu0 %v1189
    %1885 = vmatprep.subr.mxu0 0.0
    %1886 = vmatpush1.msra.mxu0 %v1190
    %1887 = vmatprep.subr.mxu0 0.0
    %1888 = vmatpush1.msra.mxu0 0.0
    %1889 = vmatprep.subr.mxu0 0.0
    %1890 = vmatpush1.msra.mxu0 0.0
    %1891 = vmatprep.subr.mxu0 0.0
    %1892 = vmatpush1.msra.mxu0 0.0
    %1893 = vmatprep.subr.mxu0 0.0
    %1894 = vmatpush1.msra.mxu0 0.0
    %1895 = vmatprep.subr.mxu0 0.0
    %1896 = vmatpush1.msra.mxu0 0.0
    %1897 = vmatprep.subr.mxu0 0.0
    %1898 = vmatpush1.msra.mxu0 0.0
    %1899 = vmatprep.subr.mxu0 0.0
    %1900 = vmatpush1.msra.mxu0 0.0
    %1901 = vmatprep.subr.mxu0 0.0
    %1902 = vmatpush1.msra.mxu0 0.0
    %1903 = vmatprep.subr.mxu0 0.0
    %1904 = vmatpush1.msra.mxu0 0.0
    %1905 = vmatprep.subr.mxu0 0.0
    %1906 = vmatpush1.msra.mxu0 0.0
    %1907 = vmatprep.subr.mxu0 0.0
    %1908 = vmatpush1.msra.mxu0 0.0
    %1909 = vmatprep.subr.mxu0 0.0
    %1910 = vmatpush1.msra.mxu0 0.0
    %1911 = vmatprep.subr.mxu0 0.0
    %1912 = vmatpush1.msra.mxu0 0.0
    %1913 = vmatprep.subr.mxu0 0.0
    %1914 = vmatpush1.msra.mxu0 0.0
    %1915 = vmatprep.subr.mxu0 0.0
    %1916 = vmatpush1.msra.mxu0 0.0
    %1917 = vmatprep.subr.mxu0 0.0
    %1918 = vmatpush1.msra.mxu0 0.0
    %1919 = vmatprep.subr.mxu0 0.0
    %1920 = vmatpush1.msra.mxu0 0.0
    %1921 = vmatprep.subr.mxu0 0.0
    %1922 = vmatpush1.msra.mxu0 0.0
    %1923 = vmatprep.subr.mxu0 0.0
    %1924 = vmatpush1.msra.mxu0 0.0
    %1925 = vmatprep.subr.mxu0 0.0
    %1926 = vmatpush1.msra.mxu0 0.0
    %1927 = vmatprep.subr.mxu0 0.0
    %1928 = vmatpush1.msra.mxu0 0.0
    %1929 = vmatprep.subr.mxu0 0.0
    %1930 = vmatpush1.msra.mxu0 0.0
    %1931 = vmatprep.subr.mxu0 0.0
    %1932 = vmatpush1.msra.mxu0 0.0
    %1933 = vmatprep.subr.mxu0 0.0
    %1934 = vmatpush1.msra.mxu0 0.0
    %1935 = vmatprep.subr.mxu0 0.0
    %1936 = vmatpush1.msra.mxu0 0.0
    %1937 = vmatprep.subr.mxu0 0.0
    %1938 = vmatpush1.msra.mxu0 0.0
    %1939 = vmatprep.subr.mxu0 0.0
    %1940 = vmatpush1.msra.mxu0 0.0
    %1941 = vmatprep.subr.mxu0 0.0
    %1942 = vmatpush1.msra.mxu0 0.0
    %1943 = vmatprep.mubr.f32.mxu0 0.0
    %1944 = vmatmul.mubr.f32.gmra.mrb[0].mxu0 %v1877
    %v1945 = vpop.f32.mrb[0].mxu0
    %v1946 = vadd.f32 %v1873, %v1945
    %v1947 = vpop.f32.mrb[0].mxu0
    %1948 = vdwg.mxu0
    %v1949 = vadd.f32 %v1946, %v1195
    %s1950 = scalar_lea.vmem [#allocation4], 8
    %1951 = vst.msk [vmem:[%s1950] sm:$0x3] %vm1346, %v1949
    %v1952 = vld [vmem:[%s916] sm:$0x3]
    %v1953 = vld [vmem:[%s526] sm:$0x3]
    %v1955 = vsel %vm1198, %v1953, 0
    %1957 = vmatprep.subr.mxu0 0.0
    %1958 = vmatpush1.msra.mxu0 %v1191
    %1959 = vmatprep.subr.mxu0 0.0
    %1960 = vmatpush1.msra.mxu0 %v1192
    %1961 = vmatprep.subr.mxu0 0.0
    %1962 = vmatpush1.msra.mxu0 %v1193
    %1963 = vmatprep.subr.mxu0 0.0
    %1964 = vmatpush1.msra.mxu0 %v1194
    %1965 = vmatprep.subr.mxu0 0.0
    %1966 = vmatpush1.msra.mxu0 0.0
    %1967 = vmatprep.subr.mxu0 0.0
    %1968 = vmatpush1.msra.mxu0 0.0
    %1969 = vmatprep.subr.mxu0 0.0
    %1970 = vmatpush1.msra.mxu0 0.0
    %1971 = vmatprep.subr.mxu0 0.0
    %1972 = vmatpush1.msra.mxu0 0.0
    %1973 = vmatprep.subr.mxu0 0.0
    %1974 = vmatpush1.msra.mxu0 0.0
    %1975 = vmatprep.subr.mxu0 0.0
    %1976 = vmatpush1.msra.mxu0 0.0
    %1977 = vmatprep.subr.mxu0 0.0
    %1978 = vmatpush1.msra.mxu0 0.0
    %1979 = vmatprep.subr.mxu0 0.0
    %1980 = vmatpush1.msra.mxu0 0.0
    %1981 = vmatprep.subr.mxu0 0.0
    %1982 = vmatpush1.msra.mxu0 0.0
    %1983 = vmatprep.subr.mxu0 0.0
    %1984 = vmatpush1.msra.mxu0 0.0
    %1985 = vmatprep.subr.mxu0 0.0
    %1986 = vmatpush1.msra.mxu0 0.0
    %1987 = vmatprep.subr.mxu0 0.0
    %1988 = vmatpush1.msra.mxu0 0.0
    %1989 = vmatprep.subr.mxu0 0.0
    %1990 = vmatpush1.msra.mxu0 0.0
    %1991 = vmatprep.subr.mxu0 0.0
    %1992 = vmatpush1.msra.mxu0 0.0
    %1993 = vmatprep.subr.mxu0 0.0
    %1994 = vmatpush1.msra.mxu0 0.0
    %1995 = vmatprep.subr.mxu0 0.0
    %1996 = vmatpush1.msra.mxu0 0.0
    %1997 = vmatprep.subr.mxu0 0.0
    %1998 = vmatpush1.msra.mxu0 0.0
    %1999 = vmatprep.subr.mxu0 0.0
    %2000 = vmatpush1.msra.mxu0 0.0
    %2001 = vmatprep.subr.mxu0 0.0
    %2002 = vmatpush1.msra.mxu0 0.0
    %2003 = vmatprep.subr.mxu0 0.0
    %2004 = vmatpush1.msra.mxu0 0.0
    %2005 = vmatprep.subr.mxu0 0.0
    %2006 = vmatpush1.msra.mxu0 0.0
    %2007 = vmatprep.subr.mxu0 0.0
    %2008 = vmatpush1.msra.mxu0 0.0
    %2009 = vmatprep.subr.mxu0 0.0
    %2010 = vmatpush1.msra.mxu0 0.0
    %2011 = vmatprep.subr.mxu0 0.0
    %2012 = vmatpush1.msra.mxu0 0.0
    %2013 = vmatprep.subr.mxu0 0.0
    %2014 = vmatpush1.msra.mxu0 0.0
    %2015 = vmatprep.subr.mxu0 0.0
    %2016 = vmatpush1.msra.mxu0 0.0
    %2017 = vmatprep.subr.mxu0 0.0
    %2018 = vmatpush1.msra.mxu0 0.0
    %2019 = vmatprep.subr.mxu0 0.0
    %2020 = vmatpush1.msra.mxu0 0.0
    %2021 = vmatprep.mubr.f32.mxu0 0.0
    %2022 = vmatmul.mubr.f32.gmra.mrb[0].mxu0 %v1955
    %v2023 = vpop.f32.mrb[0].mxu0
    %v2024 = vadd.f32 0.0, %v2023
    %v2025 = vpop.f32.mrb[0].mxu0
    %2026 = vdwg.mxu0
    %v2028 = vsel %vm1198, %v1952, 0
    %2030 = vmatprep.subr.mxu0 0.0
    %2031 = vmatpush1.msra.mxu0 %v1187
    %2032 = vmatprep.subr.mxu0 0.0
    %2033 = vmatpush1.msra.mxu0 %v1188
    %2034 = vmatprep.subr.mxu0 0.0
    %2035 = vmatpush1.msra.mxu0 %v1189
    %2036 = vmatprep.subr.mxu0 0.0
    %2037 = vmatpush1.msra.mxu0 %v1190
    %2038 = vmatprep.subr.mxu0 0.0
    %2039 = vmatpush1.msra.mxu0 0.0
    %2040 = vmatprep.subr.mxu0 0.0
    %2041 = vmatpush1.msra.mxu0 0.0
    %2042 = vmatprep.subr.mxu0 0.0
    %2043 = vmatpush1.msra.mxu0 0.0
    %2044 = vmatprep.subr.mxu0 0.0
    %2045 = vmatpush1.msra.mxu0 0.0
    %2046 = vmatprep.subr.mxu0 0.0
    %2047 = vmatpush1.msra.mxu0 0.0
    %2048 = vmatprep.subr.mxu0 0.0
    %2049 = vmatpush1.msra.mxu0 0.0
    %2050 = vmatprep.subr.mxu0 0.0
    %2051 = vmatpush1.msra.mxu0 0.0
    %2052 = vmatprep.subr.mxu0 0.0
    %2053 = vmatpush1.msra.mxu0 0.0
    %2054 = vmatprep.subr.mxu0 0.0
    %2055 = vmatpush1.msra.mxu0 0.0
    %2056 = vmatprep.subr.mxu0 0.0
    %2057 = vmatpush1.msra.mxu0 0.0
    %2058 = vmatprep.subr.mxu0 0.0
    %2059 = vmatpush1.msra.mxu0 0.0
    %2060 = vmatprep.subr.mxu0 0.0
    %2061 = vmatpush1.msra.mxu0 0.0
    %2062 = vmatprep.subr.mxu0 0.0
    %2063 = vmatpush1.msra.mxu0 0.0
    %2064 = vmatprep.subr.mxu0 0.0
    %2065 = vmatpush1.msra.mxu0 0.0
    %2066 = vmatprep.subr.mxu0 0.0
    %2067 = vmatpush1.msra.mxu0 0.0
    %2068 = vmatprep.subr.mxu0 0.0
    %2069 = vmatpush1.msra.mxu0 0.0
    %2070 = vmatprep.subr.mxu0 0.0
    %2071 = vmatpush1.msra.mxu0 0.0
    %2072 = vmatprep.subr.mxu0 0.0
    %2073 = vmatpush1.msra.mxu0 0.0
    %2074 = vmatprep.subr.mxu0 0.0
    %2075 = vmatpush1.msra.mxu0 0.0
    %2076 = vmatprep.subr.mxu0 0.0
    %2077 = vmatpush1.msra.mxu0 0.0
    %2078 = vmatprep.subr.mxu0 0.0
    %2079 = vmatpush1.msra.mxu0 0.0
    %2080 = vmatprep.subr.mxu0 0.0
    %2081 = vmatpush1.msra.mxu0 0.0
    %2082 = vmatprep.subr.mxu0 0.0
    %2083 = vmatpush1.msra.mxu0 0.0
    %2084 = vmatprep.subr.mxu0 0.0
    %2085 = vmatpush1.msra.mxu0 0.0
    %2086 = vmatprep.subr.mxu0 0.0
    %2087 = vmatpush1.msra.mxu0 0.0
    %2088 = vmatprep.subr.mxu0 0.0
    %2089 = vmatpush1.msra.mxu0 0.0
    %2090 = vmatprep.subr.mxu0 0.0
    %2091 = vmatpush1.msra.mxu0 0.0
    %2092 = vmatprep.subr.mxu0 0.0
    %2093 = vmatpush1.msra.mxu0 0.0
    %2094 = vmatprep.mubr.f32.mxu0 0.0
    %2095 = vmatmul.mubr.f32.gmra.mrb[0].mxu0 %v2028
    %v2096 = vpop.f32.mrb[0].mxu0
    %v2097 = vadd.f32 %v2024, %v2096
    %v2098 = vpop.f32.mrb[0].mxu0
    %2099 = vdwg.mxu0
    %v2100 = vadd.f32 %v2097, %v1195
    %s2101 = scalar_lea.vmem [#allocation4], 10
    %2102 = vst.msk [vmem:[%s2101] sm:$0x3] %vm1346, %v2100
    %v2103 = vld [vmem:[%s1048] sm:$0x3]
    %v2104 = vld [vmem:[%s394] sm:$0x3]
    %v2106 = vsel %vm1198, %v2104, 0
    %2108 = vmatprep.subr.mxu0 0.0
    %2109 = vmatpush1.msra.mxu0 %v1191
    %2110 = vmatprep.subr.mxu0 0.0
    %2111 = vmatpush1.msra.mxu0 %v1192
    %2112 = vmatprep.subr.mxu0 0.0
    %2113 = vmatpush1.msra.mxu0 %v1193
    %2114 = vmatprep.subr.mxu0 0.0
    %2115 = vmatpush1.msra.mxu0 %v1194
    %2116 = vmatprep.subr.mxu0 0.0
    %2117 = vmatpush1.msra.mxu0 0.0
    %2118 = vmatprep.subr.mxu0 0.0
    %2119 = vmatpush1.msra.mxu0 0.0
    %2120 = vmatprep.subr.mxu0 0.0
    %2121 = vmatpush1.msra.mxu0 0.0
    %2122 = vmatprep.subr.mxu0 0.0
    %2123 = vmatpush1.msra.mxu0 0.0
    %2124 = vmatprep.subr.mxu0 0.0
    %2125 = vmatpush1.msra.mxu0 0.0
    %2126 = vmatprep.subr.mxu0 0.0
    %2127 = vmatpush1.msra.mxu0 0.0
    %2128 = vmatprep.subr.mxu0 0.0
    %2129 = vmatpush1.msra.mxu0 0.0
    %2130 = vmatprep.subr.mxu0 0.0
    %2131 = vmatpush1.msra.mxu0 0.0
    %2132 = vmatprep.subr.mxu0 0.0
    %2133 = vmatpush1.msra.mxu0 0.0
    %2134 = vmatprep.subr.mxu0 0.0
    %2135 = vmatpush1.msra.mxu0 0.0
    %2136 = vmatprep.subr.mxu0 0.0
    %2137 = vmatpush1.msra.mxu0 0.0
    %2138 = vmatprep.subr.mxu0 0.0
    %2139 = vmatpush1.msra.mxu0 0.0
    %2140 = vmatprep.subr.mxu0 0.0
    %2141 = vmatpush1.msra.mxu0 0.0
    %2142 = vmatprep.subr.mxu0 0.0
    %2143 = vmatpush1.msra.mxu0 0.0
    %2144 = vmatprep.subr.mxu0 0.0
    %2145 = vmatpush1.msra.mxu0 0.0
    %2146 = vmatprep.subr.mxu0 0.0
    %2147 = vmatpush1.msra.mxu0 0.0
    %2148 = vmatprep.subr.mxu0 0.0
    %2149 = vmatpush1.msra.mxu0 0.0
    %2150 = vmatprep.subr.mxu0 0.0
    %2151 = vmatpush1.msra.mxu0 0.0
    %2152 = vmatprep.subr.mxu0 0.0
    %2153 = vmatpush1.msra.mxu0 0.0
    %2154 = vmatprep.subr.mxu0 0.0
    %2155 = vmatpush1.msra.mxu0 0.0
    %2156 = vmatprep.subr.mxu0 0.0
    %2157 = vmatpush1.msra.mxu0 0.0
    %2158 = vmatprep.subr.mxu0 0.0
    %2159 = vmatpush1.msra.mxu0 0.0
    %2160 = vmatprep.subr.mxu0 0.0
    %2161 = vmatpush1.msra.mxu0 0.0
    %2162 = vmatprep.subr.mxu0 0.0
    %2163 = vmatpush1.msra.mxu0 0.0
    %2164 = vmatprep.subr.mxu0 0.0
    %2165 = vmatpush1.msra.mxu0 0.0
    %2166 = vmatprep.subr.mxu0 0.0
    %2167 = vmatpush1.msra.mxu0 0.0
    %2168 = vmatprep.subr.mxu0 0.0
    %2169 = vmatpush1.msra.mxu0 0.0
    %2170 = vmatprep.subr.mxu0 0.0
    %2171 = vmatpush1.msra.mxu0 0.0
    %2172 = vmatprep.mubr.f32.mxu0 0.0
    %2173 = vmatmul.mubr.f32.gmra.mrb[0].mxu0 %v2106
    %v2174 = vpop.f32.mrb[0].mxu0
    %v2175 = vadd.f32 0.0, %v2174
    %v2176 = vpop.f32.mrb[0].mxu0
    %2177 = vdwg.mxu0
    %v2179 = vsel %vm1198, %v2103, 0
    %2181 = vmatprep.subr.mxu0 0.0
    %2182 = vmatpush1.msra.mxu0 %v1187
    %2183 = vmatprep.subr.mxu0 0.0
    %2184 = vmatpush1.msra.mxu0 %v1188
    %2185 = vmatprep.subr.mxu0 0.0
    %2186 = vmatpush1.msra.mxu0 %v1189
    %2187 = vmatprep.subr.mxu0 0.0
    %2188 = vmatpush1.msra.mxu0 %v1190
    %2189 = vmatprep.subr.mxu0 0.0
    %2190 = vmatpush1.msra.mxu0 0.0
    %2191 = vmatprep.subr.mxu0 0.0
    %2192 = vmatpush1.msra.mxu0 0.0
    %2193 = vmatprep.subr.mxu0 0.0
    %2194 = vmatpush1.msra.mxu0 0.0
    %2195 = vmatprep.subr.mxu0 0.0
    %2196 = vmatpush1.msra.mxu0 0.0
    %2197 = vmatprep.subr.mxu0 0.0
    %2198 = vmatpush1.msra.mxu0 0.0
    %2199 = vmatprep.subr.mxu0 0.0
    %2200 = vmatpush1.msra.mxu0 0.0
    %2201 = vmatprep.subr.mxu0 0.0
    %2202 = vmatpush1.msra.mxu0 0.0
    %2203 = vmatprep.subr.mxu0 0.0
    %2204 = vmatpush1.msra.mxu0 0.0
    %2205 = vmatprep.subr.mxu0 0.0
    %2206 = vmatpush1.msra.mxu0 0.0
    %2207 = vmatprep.subr.mxu0 0.0
    %2208 = vmatpush1.msra.mxu0 0.0
    %2209 = vmatprep.subr.mxu0 0.0
    %2210 = vmatpush1.msra.mxu0 0.0
    %2211 = vmatprep.subr.mxu0 0.0
    %2212 = vmatpush1.msra.mxu0 0.0
    %2213 = vmatprep.subr.mxu0 0.0
    %2214 = vmatpush1.msra.mxu0 0.0
    %2215 = vmatprep.subr.mxu0 0.0
    %2216 = vmatpush1.msra.mxu0 0.0
    %2217 = vmatprep.subr.mxu0 0.0
    %2218 = vmatpush1.msra.mxu0 0.0
    %2219 = vmatprep.subr.mxu0 0.0
    %2220 = vmatpush1.msra.mxu0 0.0
    %2221 = vmatprep.subr.mxu0 0.0
    %2222 = vmatpush1.msra.mxu0 0.0
    %2223 = vmatprep.subr.mxu0 0.0
    %2224 = vmatpush1.msra.mxu0 0.0
    %2225 = vmatprep.subr.mxu0 0.0
    %2226 = vmatpush1.msra.mxu0 0.0
    %2227 = vmatprep.subr.mxu0 0.0
    %2228 = vmatpush1.msra.mxu0 0.0
    %2229 = vmatprep.subr.mxu0 0.0
    %2230 = vmatpush1.msra.mxu0 0.0
    %2231 = vmatprep.subr.mxu0 0.0
    %2232 = vmatpush1.msra.mxu0 0.0
    %2233 = vmatprep.subr.mxu0 0.0
    %2234 = vmatpush1.msra.mxu0 0.0
    %2235 = vmatprep.subr.mxu0 0.0
    %2236 = vmatpush1.msra.mxu0 0.0
    %2237 = vmatprep.subr.mxu0 0.0
    %2238 = vmatpush1.msra.mxu0 0.0
    %2239 = vmatprep.subr.mxu0 0.0
    %2240 = vmatpush1.msra.mxu0 0.0
    %2241 = vmatprep.subr.mxu0 0.0
    %2242 = vmatpush1.msra.mxu0 0.0
    %2243 = vmatprep.subr.mxu0 0.0
    %2244 = vmatpush1.msra.mxu0 0.0
    %2245 = vmatprep.mubr.f32.mxu0 0.0
    %2246 = vmatmul.mubr.f32.gmra.mrb[0].mxu0 %v2179
    %v2247 = vpop.f32.mrb[0].mxu0
    %v2248 = vadd.f32 %v2175, %v2247
    %v2249 = vpop.f32.mrb[0].mxu0
    %2250 = vdwg.mxu0
    %v2251 = vadd.f32 %v2248, %v1195
    %s2252 = scalar_lea.vmem [#allocation4], 12
    %2253 = vst.msk [vmem:[%s2252] sm:$0x3] %vm1346, %v2251
    %v2254 = vld [vmem:[%s1180] sm:$0x3]
    %v2255 = vld [vmem:[%s262] sm:$0x3]
    %v2257 = vsel %vm1198, %v2255, 0
    %2259 = vmatprep.subr.mxu0 0.0
    %2260 = vmatpush1.msra.mxu0 %v1191
    %2261 = vmatprep.subr.mxu0 0.0
    %2262 = vmatpush1.msra.mxu0 %v1192
    %2263 = vmatprep.subr.mxu0 0.0
    %2264 = vmatpush1.msra.mxu0 %v1193
    %2265 = vmatprep.subr.mxu0 0.0
    %2266 = vmatpush1.msra.mxu0 %v1194
    %2267 = vmatprep.subr.mxu0 0.0
    %2268 = vmatpush1.msra.mxu0 0.0
    %2269 = vmatprep.subr.mxu0 0.0
    %2270 = vmatpush1.msra.mxu0 0.0
    %2271 = vmatprep.subr.mxu0 0.0
    %2272 = vmatpush1.msra.mxu0 0.0
    %2273 = vmatprep.subr.mxu0 0.0
    %2274 = vmatpush1.msra.mxu0 0.0
    %2275 = vmatprep.subr.mxu0 0.0
    %2276 = vmatpush1.msra.mxu0 0.0
    %2277 = vmatprep.subr.mxu0 0.0
    %2278 = vmatpush1.msra.mxu0 0.0
    %2279 = vmatprep.subr.mxu0 0.0
    %2280 = vmatpush1.msra.mxu0 0.0
    %2281 = vmatprep.subr.mxu0 0.0
    %2282 = vmatpush1.msra.mxu0 0.0
    %2283 = vmatprep.subr.mxu0 0.0
    %2284 = vmatpush1.msra.mxu0 0.0
    %2285 = vmatprep.subr.mxu0 0.0
    %2286 = vmatpush1.msra.mxu0 0.0
    %2287 = vmatprep.subr.mxu0 0.0
    %2288 = vmatpush1.msra.mxu0 0.0
    %2289 = vmatprep.subr.mxu0 0.0
    %2290 = vmatpush1.msra.mxu0 0.0
    %2291 = vmatprep.subr.mxu0 0.0
    %2292 = vmatpush1.msra.mxu0 0.0
    %2293 = vmatprep.subr.mxu0 0.0
    %2294 = vmatpush1.msra.mxu0 0.0
    %2295 = vmatprep.subr.mxu0 0.0
    %2296 = vmatpush1.msra.mxu0 0.0
    %2297 = vmatprep.subr.mxu0 0.0
    %2298 = vmatpush1.msra.mxu0 0.0
    %2299 = vmatprep.subr.mxu0 0.0
    %2300 = vmatpush1.msra.mxu0 0.0
    %2301 = vmatprep.subr.mxu0 0.0
    %2302 = vmatpush1.msra.mxu0 0.0
    %2303 = vmatprep.subr.mxu0 0.0
    %2304 = vmatpush1.msra.mxu0 0.0
    %2305 = vmatprep.subr.mxu0 0.0
    %2306 = vmatpush1.msra.mxu0 0.0
    %2307 = vmatprep.subr.mxu0 0.0
    %2308 = vmatpush1.msra.mxu0 0.0
    %2309 = vmatprep.subr.mxu0 0.0
    %2310 = vmatpush1.msra.mxu0 0.0
    %2311 = vmatprep.subr.mxu0 0.0
    %2312 = vmatpush1.msra.mxu0 0.0
    %2313 = vmatprep.subr.mxu0 0.0
    %2314 = vmatpush1.msra.mxu0 0.0
    %2315 = vmatprep.subr.mxu0 0.0
    %2316 = vmatpush1.msra.mxu0 0.0
    %2317 = vmatprep.subr.mxu0 0.0
    %2318 = vmatpush1.msra.mxu0 0.0
    %2319 = vmatprep.subr.mxu0 0.0
    %2320 = vmatpush1.msra.mxu0 0.0
    %2321 = vmatprep.subr.mxu0 0.0
    %2322 = vmatpush1.msra.mxu0 0.0
    %2323 = vmatprep.mubr.f32.mxu0 0.0
    %2324 = vmatmul.mubr.f32.gmra.mrb[0].mxu0 %v2257
    %v2325 = vpop.f32.mrb[0].mxu0
    %v2326 = vadd.f32 0.0, %v2325
    %v2327 = vpop.f32.mrb[0].mxu0
    %2328 = vdwg.mxu0
    %v2330 = vsel %vm1198, %v2254, 0
    %2332 = vmatprep.subr.mxu0 0.0
    %2333 = vmatpush1.msra.mxu0 %v1187
    %2334 = vmatprep.subr.mxu0 0.0
    %2335 = vmatpush1.msra.mxu0 %v1188
    %2336 = vmatprep.subr.mxu0 0.0
    %2337 = vmatpush1.msra.mxu0 %v1189
    %2338 = vmatprep.subr.mxu0 0.0
    %2339 = vmatpush1.msra.mxu0 %v1190
    %2340 = vmatprep.subr.mxu0 0.0
    %2341 = vmatpush1.msra.mxu0 0.0
    %2342 = vmatprep.subr.mxu0 0.0
    %2343 = vmatpush1.msra.mxu0 0.0
    %2344 = vmatprep.subr.mxu0 0.0
    %2345 = vmatpush1.msra.mxu0 0.0
    %2346 = vmatprep.subr.mxu0 0.0
    %2347 = vmatpush1.msra.mxu0 0.0
    %2348 = vmatprep.subr.mxu0 0.0
    %2349 = vmatpush1.msra.mxu0 0.0
    %2350 = vmatprep.subr.mxu0 0.0
    %2351 = vmatpush1.msra.mxu0 0.0
    %2352 = vmatprep.subr.mxu0 0.0
    %2353 = vmatpush1.msra.mxu0 0.0
    %2354 = vmatprep.subr.mxu0 0.0
    %2355 = vmatpush1.msra.mxu0 0.0
    %2356 = vmatprep.subr.mxu0 0.0
    %2357 = vmatpush1.msra.mxu0 0.0
    %2358 = vmatprep.subr.mxu0 0.0
    %2359 = vmatpush1.msra.mxu0 0.0
    %2360 = vmatprep.subr.mxu0 0.0
    %2361 = vmatpush1.msra.mxu0 0.0
    %2362 = vmatprep.subr.mxu0 0.0
    %2363 = vmatpush1.msra.mxu0 0.0
    %2364 = vmatprep.subr.mxu0 0.0
    %2365 = vmatpush1.msra.mxu0 0.0
    %2366 = vmatprep.subr.mxu0 0.0
    %2367 = vmatpush1.msra.mxu0 0.0
    %2368 = vmatprep.subr.mxu0 0.0
    %2369 = vmatpush1.msra.mxu0 0.0
    %2370 = vmatprep.subr.mxu0 0.0
    %2371 = vmatpush1.msra.mxu0 0.0
    %2372 = vmatprep.subr.mxu0 0.0
    %2373 = vmatpush1.msra.mxu0 0.0
    %2374 = vmatprep.subr.mxu0 0.0
    %2375 = vmatpush1.msra.mxu0 0.0
    %2376 = vmatprep.subr.mxu0 0.0
    %2377 = vmatpush1.msra.mxu0 0.0
    %2378 = vmatprep.subr.mxu0 0.0
    %2379 = vmatpush1.msra.mxu0 0.0
    %2380 = vmatprep.subr.mxu0 0.0
    %2381 = vmatpush1.msra.mxu0 0.0
    %2382 = vmatprep.subr.mxu0 0.0
    %2383 = vmatpush1.msra.mxu0 0.0
    %2384 = vmatprep.subr.mxu0 0.0
    %2385 = vmatpush1.msra.mxu0 0.0
    %2386 = vmatprep.subr.mxu0 0.0
    %2387 = vmatpush1.msra.mxu0 0.0
    %2388 = vmatprep.subr.mxu0 0.0
    %2389 = vmatpush1.msra.mxu0 0.0
    %2390 = vmatprep.subr.mxu0 0.0
    %2391 = vmatpush1.msra.mxu0 0.0
    %2392 = vmatprep.subr.mxu0 0.0
    %2393 = vmatpush1.msra.mxu0 0.0
    %2394 = vmatprep.subr.mxu0 0.0
    %2395 = vmatpush1.msra.mxu0 0.0
    %2396 = vmatprep.mubr.f32.mxu0 0.0
    %2397 = vmatmul.mubr.f32.gmra.mrb[0].mxu0 %v2330
    %v2398 = vpop.f32.mrb[0].mxu0
    %v2399 = vadd.f32 %v2326, %v2398
    %v2400 = vpop.f32.mrb[0].mxu0
    %2401 = vdwg.mxu0
    %v2402 = vadd.f32 %v2399, %v1195
    %s2403 = scalar_lea.vmem [#allocation4], 14
    %2404 = vst.msk [vmem:[%s2403] sm:$0x3] %vm1346, %v2402
    %v2405 = vld [vmem:[#allocation14] sm:$0xff]
    %v2406 = vld [vmem:[#allocation14 + $0x8] sm:$0xff]
    %v2407 = vld [vmem:[#allocation14 + $0x10] sm:$0xff]
    %v2408 = vld [vmem:[#allocation14 + $0x18] sm:$0xff]
    %v2409 = vld [vmem:[#allocation4] sm:$0x3]
    %v2410 = vsel %vm1198, 0.0, 0
    %2412 = vmatprep.subr.mxu0 0.0
    %2413 = vmatpush1.msra.mxu0 %v2405
    %2414 = vmatprep.subr.mxu0 0.0
    %2415 = vmatpush1.msra.mxu0 %v2406
    %2416 = vmatprep.subr.mxu0 0.0
    %2417 = vmatpush1.msra.mxu0 %v2407
    %2418 = vmatprep.subr.mxu0 0.0
    %2419 = vmatpush1.msra.mxu0 %v2408
    %2420 = vmatprep.subr.mxu0 0.0
    %2421 = vmatpush1.msra.mxu0 0.0
    %2422 = vmatprep.subr.mxu0 0.0
    %2423 = vmatpush1.msra.mxu0 0.0
    %2424 = vmatprep.subr.mxu0 0.0
    %2425 = vmatpush1.msra.mxu0 0.0
    %2426 = vmatprep.subr.mxu0 0.0
    %2427 = vmatpush1.msra.mxu0 0.0
    %2428 = vmatprep.subr.mxu0 0.0
    %2429 = vmatpush1.msra.mxu0 0.0
    %2430 = vmatprep.subr.mxu0 0.0
    %2431 = vmatpush1.msra.mxu0 0.0
    %2432 = vmatprep.subr.mxu0 0.0
    %2433 = vmatpush1.msra.mxu0 0.0
    %2434 = vmatprep.subr.mxu0 0.0
    %2435 = vmatpush1.msra.mxu0 0.0
    %2436 = vmatprep.subr.mxu0 0.0
    %2437 = vmatpush1.msra.mxu0 0.0
    %2438 = vmatprep.subr.mxu0 0.0
    %2439 = vmatpush1.msra.mxu0 0.0
    %2440 = vmatprep.subr.mxu0 0.0
    %2441 = vmatpush1.msra.mxu0 0.0
    %2442 = vmatprep.subr.mxu0 0.0
    %2443 = vmatpush1.msra.mxu0 0.0
    %2444 = vmatprep.subr.mxu0 0.0
    %2445 = vmatpush1.msra.mxu0 0.0
    %2446 = vmatprep.subr.mxu0 0.0
    %2447 = vmatpush1.msra.mxu0 0.0
    %2448 = vmatprep.subr.mxu0 0.0
    %2449 = vmatpush1.msra.mxu0 0.0
    %2450 = vmatprep.subr.mxu0 0.0
    %2451 = vmatpush1.msra.mxu0 0.0
    %2452 = vmatprep.subr.mxu0 0.0
    %2453 = vmatpush1.msra.mxu0 0.0
    %2454 = vmatprep.subr.mxu0 0.0
    %2455 = vmatpush1.msra.mxu0 0.0
    %2456 = vmatprep.subr.mxu0 0.0
    %2457 = vmatpush1.msra.mxu0 0.0
    %2458 = vmatprep.subr.mxu0 0.0
    %2459 = vmatpush1.msra.mxu0 0.0
    %2460 = vmatprep.subr.mxu0 0.0
    %2461 = vmatpush1.msra.mxu0 0.0
    %2462 = vmatprep.subr.mxu0 0.0
    %2463 = vmatpush1.msra.mxu0 0.0
    %2464 = vmatprep.subr.mxu0 0.0
    %2465 = vmatpush1.msra.mxu0 0.0
    %2466 = vmatprep.subr.mxu0 0.0
    %2467 = vmatpush1.msra.mxu0 0.0
    %2468 = vmatprep.subr.mxu0 0.0
    %2469 = vmatpush1.msra.mxu0 0.0
    %2470 = vmatprep.subr.mxu0 0.0
    %2471 = vmatpush1.msra.mxu0 0.0
    %2472 = vmatprep.subr.mxu0 0.0
    %2473 = vmatpush1.msra.mxu0 0.0
    %2474 = vmatprep.subr.mxu0 0.0
    %2475 = vmatpush1.msra.mxu0 0.0
    %2476 = vmatprep.mubr.f32.mxu0 0.0
    %2477 = vmatmul.mubr.f32.gmra.mrb[0].mxu0 %v2410
    %v2478 = vpop.f32.mrb[0].mxu0
    %v2479 = vadd.f32 0.0, %v2478
    %v2480 = vpop.f32.mrb[0].mxu0
    %2481 = vdwg.mxu0
    %v2482 = vadd.f32 %v2409, %v2479
    %v2483 = vld [vmem:[%s8] sm:$0x3]
    %v2484 = vmul.f32 %v2482, 0.5
    %v2485 = vmul.f32 %v2484, 1.442695
    %v2486 = vpow.pop %v2485
    %2488 = vrot.lane.b32.xlu0 %v2486, 96
    %v2489 = vpop.permute.xlu0 %2488
    %v2491 = vmul.f32 %v2483, %v2489
    %v2492 = vadd.f32 %v2491, %v2482
    %2493 = vst.msk [vmem:[#allocation16] sm:$0x3] %vm1346, %v2482
    %2494 = vst.msk [vmem:[#allocation17] sm:$0x3] %vm256, %v2492
    %v2495 = vld [vmem:[%s1497] sm:$0x3]
    %v2497 = vsel %vm1198, %v2492, 0
    %2499 = vmatprep.subr.mxu0 0.0
    %2500 = vmatpush1.msra.mxu0 %v2405
    %2501 = vmatprep.subr.mxu0 0.0
    %2502 = vmatpush1.msra.mxu0 %v2406
    %2503 = vmatprep.subr.mxu0 0.0
    %2504 = vmatpush1.msra.mxu0 %v2407
    %2505 = vmatprep.subr.mxu0 0.0
    %2506 = vmatpush1.msra.mxu0 %v2408
    %2507 = vmatprep.subr.mxu0 0.0
    %2508 = vmatpush1.msra.mxu0 0.0
    %2509 = vmatprep.subr.mxu0 0.0
    %2510 = vmatpush1.msra.mxu0 0.0
    %2511 = vmatprep.subr.mxu0 0.0
    %2512 = vmatpush1.msra.mxu0 0.0
    %2513 = vmatprep.subr.mxu0 0.0
    %2514 = vmatpush1.msra.mxu0 0.0
    %2515 = vmatprep.subr.mxu0 0.0
    %2516 = vmatpush1.msra.mxu0 0.0
    %2517 = vmatprep.subr.mxu0 0.0
    %2518 = vmatpush1.msra.mxu0 0.0
    %2519 = vmatprep.subr.mxu0 0.0
    %2520 = vmatpush1.msra.mxu0 0.0
    %2521 = vmatprep.subr.mxu0 0.0
    %2522 = vmatpush1.msra.mxu0 0.0
    %2523 = vmatprep.subr.mxu0 0.0
    %2524 = vmatpush1.msra.mxu0 0.0
    %2525 = vmatprep.subr.mxu0 0.0
    %2526 = vmatpush1.msra.mxu0 0.0
    %2527 = vmatprep.subr.mxu0 0.0
    %2528 = vmatpush1.msra.mxu0 0.0
    %2529 = vmatprep.subr.mxu0 0.0
    %2530 = vmatpush1.msra.mxu0 0.0
    %2531 = vmatprep.subr.mxu0 0.0
    %2532 = vmatpush1.msra.mxu0 0.0
    %2533 = vmatprep.subr.mxu0 0.0
    %2534 = vmatpush1.msra.mxu0 0.0
    %2535 = vmatprep.subr.mxu0 0.0
    %2536 = vmatpush1.msra.mxu0 0.0
    %2537 = vmatprep.subr.mxu0 0.0
    %2538 = vmatpush1.msra.mxu0 0.0
    %2539 = vmatprep.subr.mxu0 0.0
    %2540 = vmatpush1.msra.mxu0 0.0
    %2541 = vmatprep.subr.mxu0 0.0
    %2542 = vmatpush1.msra.mxu0 0.0
    %2543 = vmatprep.subr.mxu0 0.0
    %2544 = vmatpush1.msra.mxu0 0.0
    %2545 = vmatprep.subr.mxu0 0.0
    %2546 = vmatpush1.msra.mxu0 0.0
    %2547 = vmatprep.subr.mxu0 0.0
    %2548 = vmatpush1.msra.mxu0 0.0
    %2549 = vmatprep.subr.mxu0 0.0
    %2550 = vmatpush1.msra.mxu0 0.0
    %2551 = vmatprep.subr.mxu0 0.0
    %2552 = vmatpush1.msra.mxu0 0.0
    %2553 = vmatprep.subr.mxu0 0.0
    %2554 = vmatpush1.msra.mxu0 0.0
    %2555 = vmatprep.subr.mxu0 0.0
    %2556 = vmatpush1.msra.mxu0 0.0
    %2557 = vmatprep.subr.mxu0 0.0
    %2558 = vmatpush1.msra.mxu0 0.0
    %2559 = vmatprep.subr.mxu0 0.0
    %2560 = vmatpush1.msra.mxu0 0.0
    %2561 = vmatprep.subr.mxu0 0.0
    %2562 = vmatpush1.msra.mxu0 0.0
    %2563 = vmatprep.mubr.f32.mxu0 0.0
    %2564 = vmatmul.mubr.f32.gmra.mrb[0].mxu0 %v2497
    %v2565 = vpop.f32.mrb[0].mxu0
    %v2566 = vadd.f32 0.0, %v2565
    %v2567 = vpop.f32.mrb[0].mxu0
    %2568 = vdwg.mxu0
    %v2569 = vadd.f32 %v2495, %v2566
    %s2570 = scalar_lea.vmem %s8, 2
    %v2571 = vld [vmem:[%s2570] sm:$0x3]
    %v2572 = vmul.f32 %v2569, 0.5
    %v2573 = vmul.f32 %v2572, 1.442695
    %v2574 = vpow.pop %v2573
    %2576 = vrot.lane.b32.xlu0 %v2574, 96
    %v2577 = vpop.permute.xlu0 %2576
    %v2579 = vmul.f32 %v2571, %v2577
    %v2580 = vadd.f32 %v2579, %v2569
    %s2581 = scalar_lea.vmem [#allocation16], 2
    %2582 = vst.msk [vmem:[%s2581] sm:$0x3] %vm1346, %v2569
    %s2583 = scalar_lea.vmem [#allocation17], 2
    %2584 = vst.msk [vmem:[%s2583] sm:$0x3] %vm256, %v2580
    %v2585 = vld [vmem:[%s1648] sm:$0x3]
    %v2587 = vsel %vm1198, %v2580, 0
    %2589 = vmatprep.subr.mxu0 0.0
    %2590 = vmatpush1.msra.mxu0 %v2405
    %2591 = vmatprep.subr.mxu0 0.0
    %2592 = vmatpush1.msra.mxu0 %v2406
    %2593 = vmatprep.subr.mxu0 0.0
    %2594 = vmatpush1.msra.mxu0 %v2407
    %2595 = vmatprep.subr.mxu0 0.0
    %2596 = vmatpush1.msra.mxu0 %v2408
    %2597 = vmatprep.subr.mxu0 0.0
    %2598 = vmatpush1.msra.mxu0 0.0
    %2599 = vmatprep.subr.mxu0 0.0
    %2600 = vmatpush1.msra.mxu0 0.0
    %2601 = vmatprep.subr.mxu0 0.0
    %2602 = vmatpush1.msra.mxu0 0.0
    %2603 = vmatprep.subr.mxu0 0.0
    %2604 = vmatpush1.msra.mxu0 0.0
    %2605 = vmatprep.subr.mxu0 0.0
    %2606 = vmatpush1.msra.mxu0 0.0
    %2607 = vmatprep.subr.mxu0 0.0
    %2608 = vmatpush1.msra.mxu0 0.0
    %2609 = vmatprep.subr.mxu0 0.0
    %2610 = vmatpush1.msra.mxu0 0.0
    %2611 = vmatprep.subr.mxu0 0.0
    %2612 = vmatpush1.msra.mxu0 0.0
    %2613 = vmatprep.subr.mxu0 0.0
    %2614 = vmatpush1.msra.mxu0 0.0
    %2615 = vmatprep.subr.mxu0 0.0
    %2616 = vmatpush1.msra.mxu0 0.0
    %2617 = vmatprep.subr.mxu0 0.0
    %2618 = vmatpush1.msra.mxu0 0.0
    %2619 = vmatprep.subr.mxu0 0.0
    %2620 = vmatpush1.msra.mxu0 0.0
    %2621 = vmatprep.subr.mxu0 0.0
    %2622 = vmatpush1.msra.mxu0 0.0
    %2623 = vmatprep.subr.mxu0 0.0
    %2624 = vmatpush1.msra.mxu0 0.0
    %2625 = vmatprep.subr.mxu0 0.0
    %2626 = vmatpush1.msra.mxu0 0.0
    %2627 = vmatprep.subr.mxu0 0.0
    %2628 = vmatpush1.msra.mxu0 0.0
    %2629 = vmatprep.subr.mxu0 0.0
    %2630 = vmatpush1.msra.mxu0 0.0
    %2631 = vmatprep.subr.mxu0 0.0
    %2632 = vmatpush1.msra.mxu0 0.0
    %2633 = vmatprep.subr.mxu0 0.0
    %2634 = vmatpush1.msra.mxu0 0.0
    %2635 = vmatprep.subr.mxu0 0.0
    %2636 = vmatpush1.msra.mxu0 0.0
    %2637 = vmatprep.subr.mxu0 0.0
    %2638 = vmatpush1.msra.mxu0 0.0
    %2639 = vmatprep.subr.mxu0 0.0
    %2640 = vmatpush1.msra.mxu0 0.0
    %2641 = vmatprep.subr.mxu0 0.0
    %2642 = vmatpush1.msra.mxu0 0.0
    %2643 = vmatprep.subr.mxu0 0.0
    %2644 = vmatpush1.msra.mxu0 0.0
    %2645 = vmatprep.subr.mxu0 0.0
    %2646 = vmatpush1.msra.mxu0 0.0
    %2647 = vmatprep.subr.mxu0 0.0
    %2648 = vmatpush1.msra.mxu0 0.0
    %2649 = vmatprep.subr.mxu0 0.0
    %2650 = vmatpush1.msra.mxu0 0.0
    %2651 = vmatprep.subr.mxu0 0.0
    %2652 = vmatpush1.msra.mxu0 0.0
    %2653 = vmatprep.mubr.f32.mxu0 0.0
    %2654 = vmatmul.mubr.f32.gmra.mrb[0].mxu0 %v2587
    %v2655 = vpop.f32.mrb[0].mxu0
    %v2656 = vadd.f32 0.0, %v2655
    %v2657 = vpop.f32.mrb[0].mxu0
    %2658 = vdwg.mxu0
    %v2659 = vadd.f32 %v2585, %v2656
    %s2660 = scalar_lea.vmem %s8, 4
    %v2661 = vld [vmem:[%s2660] sm:$0x3]
    %v2662 = vmul.f32 %v2659, 0.5
    %v2663 = vmul.f32 %v2662, 1.442695
    %v2664 = vpow.pop %v2663
    %2666 = vrot.lane.b32.xlu0 %v2664, 96
    %v2667 = vpop.permute.xlu0 %2666
    %v2669 = vmul.f32 %v2661, %v2667
    %v2670 = vadd.f32 %v2669, %v2659
    %s2671 = scalar_lea.vmem [#allocation16], 4
    %2672 = vst.msk [vmem:[%s2671] sm:$0x3] %vm1346, %v2659
    %s2673 = scalar_lea.vmem [#allocation17], 4
    %2674 = vst.msk [vmem:[%s2673] sm:$0x3] %vm256, %v2670
    %v2675 = vld [vmem:[%s1799] sm:$0x3]
    %v2677 = vsel %vm1198, %v2670, 0
    %2679 = vmatprep.subr.mxu0 0.0
    %2680 = vmatpush1.msra.mxu0 %v2405
    %2681 = vmatprep.subr.mxu0 0.0
    %2682 = vmatpush1.msra.mxu0 %v2406
    %2683 = vmatprep.subr.mxu0 0.0
    %2684 = vmatpush1.msra.mxu0 %v2407
    %2685 = vmatprep.subr.mxu0 0.0
    %2686 = vmatpush1.msra.mxu0 %v2408
    %2687 = vmatprep.subr.mxu0 0.0
    %2688 = vmatpush1.msra.mxu0 0.0
    %2689 = vmatprep.subr.mxu0 0.0
    %2690 = vmatpush1.msra.mxu0 0.0
    %2691 = vmatprep.subr.mxu0 0.0
    %2692 = vmatpush1.msra.mxu0 0.0
    %2693 = vmatprep.subr.mxu0 0.0
    %2694 = vmatpush1.msra.mxu0 0.0
    %2695 = vmatprep.subr.mxu0 0.0
    %2696 = vmatpush1.msra.mxu0 0.0
    %2697 = vmatprep.subr.mxu0 0.0
    %2698 = vmatpush1.msra.mxu0 0.0
    %2699 = vmatprep.subr.mxu0 0.0
    %2700 = vmatpush1.msra.mxu0 0.0
    %2701 = vmatprep.subr.mxu0 0.0
    %2702 = vmatpush1.msra.mxu0 0.0
    %2703 = vmatprep.subr.mxu0 0.0
    %2704 = vmatpush1.msra.mxu0 0.0
    %2705 = vmatprep.subr.mxu0 0.0
    %2706 = vmatpush1.msra.mxu0 0.0
    %2707 = vmatprep.subr.mxu0 0.0
    %2708 = vmatpush1.msra.mxu0 0.0
    %2709 = vmatprep.subr.mxu0 0.0
    %2710 = vmatpush1.msra.mxu0 0.0
    %2711 = vmatprep.subr.mxu0 0.0
    %2712 = vmatpush1.msra.mxu0 0.0
    %2713 = vmatprep.subr.mxu0 0.0
    %2714 = vmatpush1.msra.mxu0 0.0
    %2715 = vmatprep.subr.mxu0 0.0
    %2716 = vmatpush1.msra.mxu0 0.0
    %2717 = vmatprep.subr.mxu0 0.0
    %2718 = vmatpush1.msra.mxu0 0.0
    %2719 = vmatprep.subr.mxu0 0.0
    %2720 = vmatpush1.msra.mxu0 0.0
    %2721 = vmatprep.subr.mxu0 0.0
    %2722 = vmatpush1.msra.mxu0 0.0
    %2723 = vmatprep.subr.mxu0 0.0
    %2724 = vmatpush1.msra.mxu0 0.0
    %2725 = vmatprep.subr.mxu0 0.0
    %2726 = vmatpush1.msra.mxu0 0.0
    %2727 = vmatprep.subr.mxu0 0.0
    %2728 = vmatpush1.msra.mxu0 0.0
    %2729 = vmatprep.subr.mxu0 0.0
    %2730 = vmatpush1.msra.mxu0 0.0
    %2731 = vmatprep.subr.mxu0 0.0
    %2732 = vmatpush1.msra.mxu0 0.0
    %2733 = vmatprep.subr.mxu0 0.0
    %2734 = vmatpush1.msra.mxu0 0.0
    %2735 = vmatprep.subr.mxu0 0.0
    %2736 = vmatpush1.msra.mxu0 0.0
    %2737 = vmatprep.subr.mxu0 0.0
    %2738 = vmatpush1.msra.mxu0 0.0
    %2739 = vmatprep.subr.mxu0 0.0
    %2740 = vmatpush1.msra.mxu0 0.0
    %2741 = vmatprep.subr.mxu0 0.0
    %2742 = vmatpush1.msra.mxu0 0.0
    %2743 = vmatprep.mubr.f32.mxu0 0.0
    %2744 = vmatmul.mubr.f32.gmra.mrb[0].mxu0 %v2677
    %v2745 = vpop.f32.mrb[0].mxu0
    %v2746 = vadd.f32 0.0, %v2745
    %v2747 = vpop.f32.mrb[0].mxu0
    %2748 = vdwg.mxu0
    %v2749 = vadd.f32 %v2675, %v2746
    %s2750 = scalar_lea.vmem %s8, 6
    %v2751 = vld [vmem:[%s2750] sm:$0x3]
    %v2752 = vmul.f32 %v2749, 0.5
    %v2753 = vmul.f32 %v2752, 1.442695
    %v2754 = vpow.pop %v2753
    %2756 = vrot.lane.b32.xlu0 %v2754, 96
    %v2757 = vpop.permute.xlu0 %2756
    %v2759 = vmul.f32 %v2751, %v2757
    %v2760 = vadd.f32 %v2759, %v2749
    %s2761 = scalar_lea.vmem [#allocation16], 6
    %2762 = vst.msk [vmem:[%s2761] sm:$0x3] %vm1346, %v2749
    %s2763 = scalar_lea.vmem [#allocation17], 6
    %2764 = vst.msk [vmem:[%s2763] sm:$0x3] %vm256, %v2760
    %v2765 = vld [vmem:[%s1950] sm:$0x3]
    %v2767 = vsel %vm1198, %v2760, 0
    %2769 = vmatprep.subr.mxu0 0.0
    %2770 = vmatpush1.msra.mxu0 %v2405
    %2771 = vmatprep.subr.mxu0 0.0
    %2772 = vmatpush1.msra.mxu0 %v2406
    %2773 = vmatprep.subr.mxu0 0.0
    %2774 = vmatpush1.msra.mxu0 %v2407
    %2775 = vmatprep.subr.mxu0 0.0
    %2776 = vmatpush1.msra.mxu0 %v2408
    %2777 = vmatprep.subr.mxu0 0.0
    %2778 = vmatpush1.msra.mxu0 0.0
    %2779 = vmatprep.subr.mxu0 0.0
    %2780 = vmatpush1.msra.mxu0 0.0
    %2781 = vmatprep.subr.mxu0 0.0
    %2782 = vmatpush1.msra.mxu0 0.0
    %2783 = vmatprep.subr.mxu0 0.0
    %2784 = vmatpush1.msra.mxu0 0.0
    %2785 = vmatprep.subr.mxu0 0.0
    %2786 = vmatpush1.msra.mxu0 0.0
    %2787 = vmatprep.subr.mxu0 0.0
    %2788 = vmatpush1.msra.mxu0 0.0
    %2789 = vmatprep.subr.mxu0 0.0
    %2790 = vmatpush1.msra.mxu0 0.0
    %2791 = vmatprep.subr.mxu0 0.0
    %2792 = vmatpush1.msra.mxu0 0.0
    %2793 = vmatprep.subr.mxu0 0.0
    %2794 = vmatpush1.msra.mxu0 0.0
    %2795 = vmatprep.subr.mxu0 0.0
    %2796 = vmatpush1.msra.mxu0 0.0
    %2797 = vmatprep.subr.mxu0 0.0
    %2798 = vmatpush1.msra.mxu0 0.0
    %2799 = vmatprep.subr.mxu0 0.0
    %2800 = vmatpush1.msra.mxu0 0.0
    %2801 = vmatprep.subr.mxu0 0.0
    %2802 = vmatpush1.msra.mxu0 0.0
    %2803 = vmatprep.subr.mxu0 0.0
    %2804 = vmatpush1.msra.mxu0 0.0
    %2805 = vmatprep.subr.mxu0 0.0
    %2806 = vmatpush1.msra.mxu0 0.0
    %2807 = vmatprep.subr.mxu0 0.0
    %2808 = vmatpush1.msra.mxu0 0.0
    %2809 = vmatprep.subr.mxu0 0.0
    %2810 = vmatpush1.msra.mxu0 0.0
    %2811 = vmatprep.subr.mxu0 0.0
    %2812 = vmatpush1.msra.mxu0 0.0
    %2813 = vmatprep.subr.mxu0 0.0
    %2814 = vmatpush1.msra.mxu0 0.0
    %2815 = vmatprep.subr.mxu0 0.0
    %2816 = vmatpush1.msra.mxu0 0.0
    %2817 = vmatprep.subr.mxu0 0.0
    %2818 = vmatpush1.msra.mxu0 0.0
    %2819 = vmatprep.subr.mxu0 0.0
    %2820 = vmatpush1.msra.mxu0 0.0
    %2821 = vmatprep.subr.mxu0 0.0
    %2822 = vmatpush1.msra.mxu0 0.0
    %2823 = vmatprep.subr.mxu0 0.0
    %2824 = vmatpush1.msra.mxu0 0.0
    %2825 = vmatprep.subr.mxu0 0.0
    %2826 = vmatpush1.msra.mxu0 0.0
    %2827 = vmatprep.subr.mxu0 0.0
    %2828 = vmatpush1.msra.mxu0 0.0
    %2829 = vmatprep.subr.mxu0 0.0
    %2830 = vmatpush1.msra.mxu0 0.0
    %2831 = vmatprep.subr.mxu0 0.0
    %2832 = vmatpush1.msra.mxu0 0.0
    %2833 = vmatprep.mubr.f32.mxu0 0.0
    %2834 = vmatmul.mubr.f32.gmra.mrb[0].mxu0 %v2767
    %v2835 = vpop.f32.mrb[0].mxu0
    %v2836 = vadd.f32 0.0, %v2835
    %v2837 = vpop.f32.mrb[0].mxu0
    %2838 = vdwg.mxu0
    %v2839 = vadd.f32 %v2765, %v2836
    %s2840 = scalar_lea.vmem %s8, 8
    %v2841 = vld [vmem:[%s2840] sm:$0x3]
    %v2842 = vmul.f32 %v2839, 0.5
    %v2843 = vmul.f32 %v2842, 1.442695
    %v2844 = vpow.pop %v2843
    %2846 = vrot.lane.b32.xlu0 %v2844, 96
    %v2847 = vpop.permute.xlu0 %2846
    %v2849 = vmul.f32 %v2841, %v2847
    %v2850 = vadd.f32 %v2849, %v2839
    %s2851 = scalar_lea.vmem [#allocation16], 8
    %2852 = vst.msk [vmem:[%s2851] sm:$0x3] %vm1346, %v2839
    %s2853 = scalar_lea.vmem [#allocation17], 8
    %2854 = vst.msk [vmem:[%s2853] sm:$0x3] %vm256, %v2850
    %v2855 = vld [vmem:[%s2101] sm:$0x3]
    %v2857 = vsel %vm1198, %v2850, 0
    %2859 = vmatprep.subr.mxu0 0.0
    %2860 = vmatpush1.msra.mxu0 %v2405
    %2861 = vmatprep.subr.mxu0 0.0
    %2862 = vmatpush1.msra.mxu0 %v2406
    %2863 = vmatprep.subr.mxu0 0.0
    %2864 = vmatpush1.msra.mxu0 %v2407
    %2865 = vmatprep.subr.mxu0 0.0
    %2866 = vmatpush1.msra.mxu0 %v2408
    %2867 = vmatprep.subr.mxu0 0.0
    %2868 = vmatpush1.msra.mxu0 0.0
    %2869 = vmatprep.subr.mxu0 0.0
    %2870 = vmatpush1.msra.mxu0 0.0
    %2871 = vmatprep.subr.mxu0 0.0
    %2872 = vmatpush1.msra.mxu0 0.0
    %2873 = vmatprep.subr.mxu0 0.0
    %2874 = vmatpush1.msra.mxu0 0.0
    %2875 = vmatprep.subr.mxu0 0.0
    %2876 = vmatpush1.msra.mxu0 0.0
    %2877 = vmatprep.subr.mxu0 0.0
    %2878 = vmatpush1.msra.mxu0 0.0
    %2879 = vmatprep.subr.mxu0 0.0
    %2880 = vmatpush1.msra.mxu0 0.0
    %2881 = vmatprep.subr.mxu0 0.0
    %2882 = vmatpush1.msra.mxu0 0.0
    %2883 = vmatprep.subr.mxu0 0.0
    %2884 = vmatpush1.msra.mxu0 0.0
    %2885 = vmatprep.subr.mxu0 0.0
    %2886 = vmatpush1.msra.mxu0 0.0
    %2887 = vmatprep.subr.mxu0 0.0
    %2888 = vmatpush1.msra.mxu0 0.0
    %2889 = vmatprep.subr.mxu0 0.0
    %2890 = vmatpush1.msra.mxu0 0.0
    %2891 = vmatprep.subr.mxu0 0.0
    %2892 = vmatpush1.msra.mxu0 0.0
    %2893 = vmatprep.subr.mxu0 0.0
    %2894 = vmatpush1.msra.mxu0 0.0
    %2895 = vmatprep.subr.mxu0 0.0
    %2896 = vmatpush1.msra.mxu0 0.0
    %2897 = vmatprep.subr.mxu0 0.0
    %2898 = vmatpush1.msra.mxu0 0.0
    %2899 = vmatprep.subr.mxu0 0.0
    %2900 = vmatpush1.msra.mxu0 0.0
    %2901 = vmatprep.subr.mxu0 0.0
    %2902 = vmatpush1.msra.mxu0 0.0
    %2903 = vmatprep.subr.mxu0 0.0
    %2904 = vmatpush1.msra.mxu0 0.0
    %2905 = vmatprep.subr.mxu0 0.0
    %2906 = vmatpush1.msra.mxu0 0.0
    %2907 = vmatprep.subr.mxu0 0.0
    %2908 = vmatpush1.msra.mxu0 0.0
    %2909 = vmatprep.subr.mxu0 0.0
    %2910 = vmatpush1.msra.mxu0 0.0
    %2911 = vmatprep.subr.mxu0 0.0
    %2912 = vmatpush1.msra.mxu0 0.0
    %2913 = vmatprep.subr.mxu0 0.0
    %2914 = vmatpush1.msra.mxu0 0.0
    %2915 = vmatprep.subr.mxu0 0.0
    %2916 = vmatpush1.msra.mxu0 0.0
    %2917 = vmatprep.subr.mxu0 0.0
    %2918 = vmatpush1.msra.mxu0 0.0
    %2919 = vmatprep.subr.mxu0 0.0
    %2920 = vmatpush1.msra.mxu0 0.0
    %2921 = vmatprep.subr.mxu0 0.0
    %2922 = vmatpush1.msra.mxu0 0.0
    %2923 = vmatprep.mubr.f32.mxu0 0.0
    %2924 = vmatmul.mubr.f32.gmra.mrb[0].mxu0 %v2857
    %v2925 = vpop.f32.mrb[0].mxu0
    %v2926 = vadd.f32 0.0, %v2925
    %v2927 = vpop.f32.mrb[0].mxu0
    %2928 = vdwg.mxu0
    %v2929 = vadd.f32 %v2855, %v2926
    %s2930 = scalar_lea.vmem %s8, 10
    %v2931 = vld [vmem:[%s2930] sm:$0x3]
    %v2932 = vmul.f32 %v2929, 0.5
    %v2933 = vmul.f32 %v2932, 1.442695
    %v2934 = vpow.pop %v2933
    %2936 = vrot.lane.b32.xlu0 %v2934, 96
    %v2937 = vpop.permute.xlu0 %2936
    %v2939 = vmul.f32 %v2931, %v2937
    %v2940 = vadd.f32 %v2939, %v2929
    %s2941 = scalar_lea.vmem [#allocation16], 10
    %2942 = vst.msk [vmem:[%s2941] sm:$0x3] %vm1346, %v2929
    %s2943 = scalar_lea.vmem [#allocation17], 10
    %2944 = vst.msk [vmem:[%s2943] sm:$0x3] %vm256, %v2940
    %v2945 = vld [vmem:[%s2252] sm:$0x3]
    %v2947 = vsel %vm1198, %v2940, 0
    %2949 = vmatprep.subr.mxu0 0.0
    %2950 = vmatpush1.msra.mxu0 %v2405
    %2951 = vmatprep.subr.mxu0 0.0
    %2952 = vmatpush1.msra.mxu0 %v2406
    %2953 = vmatprep.subr.mxu0 0.0
    %2954 = vmatpush1.msra.mxu0 %v2407
    %2955 = vmatprep.subr.mxu0 0.0
    %2956 = vmatpush1.msra.mxu0 %v2408
    %2957 = vmatprep.subr.mxu0 0.0
    %2958 = vmatpush1.msra.mxu0 0.0
    %2959 = vmatprep.subr.mxu0 0.0
    %2960 = vmatpush1.msra.mxu0 0.0
    %2961 = vmatprep.subr.mxu0 0.0
    %2962 = vmatpush1.msra.mxu0 0.0
    %2963 = vmatprep.subr.mxu0 0.0
    %2964 = vmatpush1.msra.mxu0 0.0
    %2965 = vmatprep.subr.mxu0 0.0
    %2966 = vmatpush1.msra.mxu0 0.0
    %2967 = vmatprep.subr.mxu0 0.0
    %2968 = vmatpush1.msra.mxu0 0.0
    %2969 = vmatprep.subr.mxu0 0.0
    %2970 = vmatpush1.msra.mxu0 0.0
    %2971 = vmatprep.subr.mxu0 0.0
    %2972 = vmatpush1.msra.mxu0 0.0
    %2973 = vmatprep.subr.mxu0 0.0
    %2974 = vmatpush1.msra.mxu0 0.0
    %2975 = vmatprep.subr.mxu0 0.0
    %2976 = vmatpush1.msra.mxu0 0.0
    %2977 = vmatprep.subr.mxu0 0.0
    %2978 = vmatpush1.msra.mxu0 0.0
    %2979 = vmatprep.subr.mxu0 0.0
    %2980 = vmatpush1.msra.mxu0 0.0
    %2981 = vmatprep.subr.mxu0 0.0
    %2982 = vmatpush1.msra.mxu0 0.0
    %2983 = vmatprep.subr.mxu0 0.0
    %2984 = vmatpush1.msra.mxu0 0.0
    %2985 = vmatprep.subr.mxu0 0.0
    %2986 = vmatpush1.msra.mxu0 0.0
    %2987 = vmatprep.subr.mxu0 0.0
    %2988 = vmatpush1.msra.mxu0 0.0
    %2989 = vmatprep.subr.mxu0 0.0
    %2990 = vmatpush1.msra.mxu0 0.0
    %2991 = vmatprep.subr.mxu0 0.0
    %2992 = vmatpush1.msra.mxu0 0.0
    %2993 = vmatprep.subr.mxu0 0.0
    %2994 = vmatpush1.msra.mxu0 0.0
    %2995 = vmatprep.subr.mxu0 0.0
    %2996 = vmatpush1.msra.mxu0 0.0
    %2997 = vmatprep.subr.mxu0 0.0
    %2998 = vmatpush1.msra.mxu0 0.0
    %2999 = vmatprep.subr.mxu0 0.0
    %3000 = vmatpush1.msra.mxu0 0.0
    %3001 = vmatprep.subr.mxu0 0.0
    %3002 = vmatpush1.msra.mxu0 0.0
    %3003 = vmatprep.subr.mxu0 0.0
    %3004 = vmatpush1.msra.mxu0 0.0
    %3005 = vmatprep.subr.mxu0 0.0
    %3006 = vmatpush1.msra.mxu0 0.0
    %3007 = vmatprep.subr.mxu0 0.0
    %3008 = vmatpush1.msra.mxu0 0.0
    %3009 = vmatprep.subr.mxu0 0.0
    %3010 = vmatpush1.msra.mxu0 0.0
    %3011 = vmatprep.subr.mxu0 0.0
    %3012 = vmatpush1.msra.mxu0 0.0
    %3013 = vmatprep.mubr.f32.mxu0 0.0
    %3014 = vmatmul.mubr.f32.gmra.mrb[0].mxu0 %v2947
    %v3015 = vpop.f32.mrb[0].mxu0
    %v3016 = vadd.f32 0.0, %v3015
    %v3017 = vpop.f32.mrb[0].mxu0
    %3018 = vdwg.mxu0
    %v3019 = vadd.f32 %v2945, %v3016
    %s3020 = scalar_lea.vmem %s8, 12
    %v3021 = vld [vmem:[%s3020] sm:$0x3]
    %v3022 = vmul.f32 %v3019, 0.5
    %v3023 = vmul.f32 %v3022, 1.442695
    %v3024 = vpow.pop %v3023
    %3026 = vrot.lane.b32.xlu0 %v3024, 96
    %v3027 = vpop.permute.xlu0 %3026
    %v3029 = vmul.f32 %v3021, %v3027
    %v3030 = vadd.f32 %v3029, %v3019
    %s3031 = scalar_lea.vmem [#allocation16], 12
    %3032 = vst.msk [vmem:[%s3031] sm:$0x3] %vm1346, %v3019
    %s3033 = scalar_lea.vmem [#allocation17], 12
    %3034 = vst.msk [vmem:[%s3033] sm:$0x3] %vm256, %v3030
    %v3035 = vld [vmem:[%s2403] sm:$0x3]
    %v3037 = vsel %vm1198, %v3030, 0
    %3039 = vmatprep.subr.mxu0 0.0
    %3040 = vmatpush1.msra.mxu0 %v2405
    %3041 = vmatprep.subr.mxu0 0.0
    %3042 = vmatpush1.msra.mxu0 %v2406
    %3043 = vmatprep.subr.mxu0 0.0
    %3044 = vmatpush1.msra.mxu0 %v2407
    %3045 = vmatprep.subr.mxu0 0.0
    %3046 = vmatpush1.msra.mxu0 %v2408
    %3047 = vmatprep.subr.mxu0 0.0
    %3048 = vmatpush1.msra.mxu0 0.0
    %3049 = vmatprep.subr.mxu0 0.0
    %3050 = vmatpush1.msra.mxu0 0.0
    %3051 = vmatprep.subr.mxu0 0.0
    %3052 = vmatpush1.msra.mxu0 0.0
    %3053 = vmatprep.subr.mxu0 0.0
    %3054 = vmatpush1.msra.mxu0 0.0
    %3055 = vmatprep.subr.mxu0 0.0
    %3056 = vmatpush1.msra.mxu0 0.0
    %3057 = vmatprep.subr.mxu0 0.0
    %3058 = vmatpush1.msra.mxu0 0.0
    %3059 = vmatprep.subr.mxu0 0.0
    %3060 = vmatpush1.msra.mxu0 0.0
    %3061 = vmatprep.subr.mxu0 0.0
    %3062 = vmatpush1.msra.mxu0 0.0
    %3063 = vmatprep.subr.mxu0 0.0
    %3064 = vmatpush1.msra.mxu0 0.0
    %3065 = vmatprep.subr.mxu0 0.0
    %3066 = vmatpush1.msra.mxu0 0.0
    %3067 = vmatprep.subr.mxu0 0.0
    %3068 = vmatpush1.msra.mxu0 0.0
    %3069 = vmatprep.subr.mxu0 0.0
    %3070 = vmatpush1.msra.mxu0 0.0
    %3071 = vmatprep.subr.mxu0 0.0
    %3072 = vmatpush1.msra.mxu0 0.0
    %3073 = vmatprep.subr.mxu0 0.0
    %3074 = vmatpush1.msra.mxu0 0.0
    %3075 = vmatprep.subr.mxu0 0.0
    %3076 = vmatpush1.msra.mxu0 0.0
    %3077 = vmatprep.subr.mxu0 0.0
    %3078 = vmatpush1.msra.mxu0 0.0
    %3079 = vmatprep.subr.mxu0 0.0
    %3080 = vmatpush1.msra.mxu0 0.0
    %3081 = vmatprep.subr.mxu0 0.0
    %3082 = vmatpush1.msra.mxu0 0.0
    %3083 = vmatprep.subr.mxu0 0.0
    %3084 = vmatpush1.msra.mxu0 0.0
    %3085 = vmatprep.subr.mxu0 0.0
    %3086 = vmatpush1.msra.mxu0 0.0
    %3087 = vmatprep.subr.mxu0 0.0
    %3088 = vmatpush1.msra.mxu0 0.0
    %3089 = vmatprep.subr.mxu0 0.0
    %3090 = vmatpush1.msra.mxu0 0.0
    %3091 = vmatprep.subr.mxu0 0.0
    %3092 = vmatpush1.msra.mxu0 0.0
    %3093 = vmatprep.subr.mxu0 0.0
    %3094 = vmatpush1.msra.mxu0 0.0
    %3095 = vmatprep.subr.mxu0 0.0
    %3096 = vmatpush1.msra.mxu0 0.0
    %3097 = vmatprep.subr.mxu0 0.0
    %3098 = vmatpush1.msra.mxu0 0.0
    %3099 = vmatprep.subr.mxu0 0.0
    %3100 = vmatpush1.msra.mxu0 0.0
    %3101 = vmatprep.subr.mxu0 0.0
    %3102 = vmatpush1.msra.mxu0 0.0
    %3103 = vmatprep.mubr.f32.mxu0 0.0
    %3104 = vmatmul.mubr.f32.gmra.mrb[0].mxu0 %v3037
    %v3105 = vpop.f32.mrb[0].mxu0
    %v3106 = vadd.f32 0.0, %v3105
    %v3107 = vpop.f32.mrb[0].mxu0
    %3108 = vdwg.mxu0
    %v3109 = vadd.f32 %v3035, %v3106
    %s3110 = scalar_lea.vmem %s8, 14
    %v3111 = vld [vmem:[%s3110] sm:$0x3]
    %v3112 = vmul.f32 %v3109, 0.5
    %v3113 = vmul.f32 %v3112, 1.442695
    %v3114 = vpow.pop %v3113
    %3116 = vrot.lane.b32.xlu0 %v3114, 96
    %v3117 = vpop.permute.xlu0 %3116
    %v3119 = vmul.f32 %v3111, %v3117
    %v3120 = vadd.f32 %v3119, %v3109
    %s3121 = scalar_lea.vmem [#allocation16], 14
    %3122 = vst.msk [vmem:[%s3121] sm:$0x3] %vm1346, %v3109
    %s3123 = scalar_lea.vmem [#allocation17], 14
    %3124 = vst.msk [vmem:[%s3123] sm:$0x3] %vm256, %v3120
    // Predicated region
    $region62: #{tpu_custom_call.1} parent=1 // pred_check
      _
    $region63: #{tpu_custom_call.1} parent=1 // pred_check_branch
      %3126 = sbr.rel (0) target = $region65
    $region64: #{tpu_custom_call.1} parent=1 // pred_region
      %s3128 = ssub.s32 256, 256
      %3129 = vsyncadd [#allocation7], %s3128
      %s3130 = sshll.u32 [#allocation16], 4
      %s3131 = int_to_ptr.vmem [resolvable:$true] %s3130
      %3136 = dma.vmem_to_hbm [thread:$0]  %s3131, 256, %s9, [#allocation7], 32, 32, 2
    $region65: #{tpu_custom_call.1} parent=1 // pred_fallthru
      _
    // Predicated region
    $region66: #{tpu_custom_call.1} parent=1 // pred_check
      _
    $region67: #{tpu_custom_call.1} parent=1 // pred_check_branch
      %3138 = sbr.rel (0) target = $region69
    $region68: #{tpu_custom_call.1} parent=1 // pred_region
      %s3140 = ssub.s32 256, 256
      %3141 = vsyncadd [#allocation18], %s3140
      %s3142 = sshll.u32 [#allocation17], 4
      %s3143 = int_to_ptr.vmem [resolvable:$true] %s3142
      %3148 = dma.vmem_to_hbm [thread:$0]  %s3143, 256, %s10, [#allocation18], 32, 32, 2
    $region69: #{tpu_custom_call.1} parent=1 // pred_fallthru
      _
    // Predicated region
    $region70: #{tpu_custom_call.1} parent=1 // pred_check
      _
    $region71: #{tpu_custom_call.1} parent=1 // pred_check_branch
      %3150 = sbr.rel (0) target = $region73
    $region72: #{tpu_custom_call.1} parent=1 // pred_region
      %3151 = dma.done [#allocation7], 256
    $region73: #{tpu_custom_call.1} parent=1 // pred_fallthru
      _
    // Predicated region
    $region74: #{tpu_custom_call.1} parent=1 // pred_check
      _
    $region75: #{tpu_custom_call.1} parent=1 // pred_check_branch
      %3153 = sbr.rel (0) target = $region77
    $region76: #{tpu_custom_call.1} parent=1 // pred_region
      %3154 = dma.done [#allocation18], 256
    $region77: #{tpu_custom_call.1} parent=1 // pred_fallthru
      _
    %3155 = vsyncpa [#allocation6], 1
    %3156 = vsyncpa [#allocation9], 1
    %3157 = vsyncpa [#allocation12], 1
    %3158 = vsyncpa [#allocation15], 1
    %3159 = vsyncpa [#allocation7], 1
    %3160 = vsyncpa [#allocation18], 1

</llo_original>
